<compile_context>
chip_gen: v7x
topology: tpu7x:2x2x1
jax: 0.10.0
libtpu: 0.0.40
codegen_flags: <defaults>
</compile_context>

<pallas_src>
import functools

import jax
import jax.numpy as jnp
from jax import lax
from jax.experimental import pallas as pl
from jax.experimental.pallas import tpu as pltpu

ROW_CHUNK = 32  # rows per TopK sub-block (bounds live vregs in the threshold loop)


def joint_sae_nfm_kernel(x_ref, w_enc_ref, b_enc_ref, w_big_ref,
                         emb_ref, emb_sq_ref, w_m1_ref, b_m1_ref,
                         w_m2_big_ref, bias_ref,
                         packed_ref, feat_ref, feats_scr, *, k):
    cd = w_enc_ref.dtype                     # MXU operand dtype (f32 or bf16)
    bt, f = feats_scr.shape

    # --- TopK SAE encoder: ReLU(x @ W_enc^T + b_enc); staged in f32 VMEM scratch ---
    feats = jnp.dot(x_ref[...].astype(cd), w_enc_ref[...],
                    preferred_element_type=jnp.float32)
    feats_scr[...] = jnp.maximum(feats + b_enc_ref[...], 0.0)

    # --- TopK via per-row threshold, chunked over ROW_CHUNK-row sub-blocks ---
    # Post-ReLU activations are >= 0, so their IEEE-754 bit patterns order the
    # same as their values: run the masking loop on an int32 bitcast view with
    # a -1 sentinel (integer compares, no -inf handling).
    rc = ROW_CHUNK if bt % ROW_CHUNK == 0 else bt
    n_chunks = bt // rc
    prefold = (f % 128 == 0) and (f > 128)

    def row_max(v):                          # (rc, f) int32 -> (rc, 1) int32
        if prefold:                          # VPU-fold lane blocks, then one XLU reduce
            folded = v[:, :128]
            for j in range(1, f // 128):
                folded = jnp.maximum(folded, v[:, j * 128:(j + 1) * 128])
        else:
            folded = v
        return jnp.max(folded, axis=-1, keepdims=True)

    def topk_chunk(c, carry):
        r0 = pl.multiple_of(c * rc, rc)
        cur = pltpu.bitcast(feats_scr[pl.ds(r0, rc), :], jnp.int32)
        # k-1 passes: mask out the current row max each time.
        # NOTE: exact ties among the top-k are all masked together (same caveat
        # as v1; matches torch.topk for distinct activations).
        for _ in range(k - 1):
            cur = jnp.where(cur >= row_max(cur), jnp.int32(-1), cur)
        thr = row_max(cur)                   # bit pattern of the k-th largest value
        fch = feats_scr[pl.ds(r0, rc), :]    # reload: keeps the chain's live set small
        sp = jnp.where(pltpu.bitcast(fch, jnp.int32) >= thr, fch, 0.0)
        feats_scr[pl.ds(r0, rc), :] = sp
        feat_ref[pl.ds(r0, rc), :] = sp.astype(feat_ref.dtype)
        return carry

    lax.fori_loop(0, n_chunks, topk_chunk, 0,
                  unroll=2 if (n_chunks >= 2 and n_chunks % 2 == 0) else 1)

    # --- downstream matmuls on the sparse features (f32 accumulation) ---
    sparse = feats_scr[...]
    sp_c = sparse.astype(cd)

    # fused SAE decoder + NFM linear + "final" column blocks: one (F, 4D) matmul
    rl = jnp.dot(sp_c, w_big_ref[...], preferred_element_type=jnp.float32)

    # NFM bilinear interaction: 0.5 * ((s E)^2 - (s^2)(E^2)); E^2 precomputed.
    sum_emb = jnp.dot(sp_c, emb_ref[...], preferred_element_type=jnp.float32)
    sum_sq = jnp.dot((sparse * sparse).astype(cd), emb_sq_ref[...],
                     preferred_element_type=jnp.float32)
    inter_vec = 0.5 * (sum_emb * sum_emb - sum_sq)

    # interaction MLP: Dropout (identity in eval) -> Linear -> ReLU -> Linear,
    # with the output layer lane-packed into the [final|.|.|inter] slots.
    # TODO(synk): training-mode dropout (NFM_DROPOUT=0.15) not implemented; eval semantics only.
    h = jnp.dot(inter_vec.astype(cd), w_m1_ref[...],
                preferred_element_type=jnp.float32) + b_m1_ref[...]
    h = jnp.maximum(h, 0.0)
    mm2 = jnp.dot(h.astype(cd), w_m2_big_ref[...],
                  preferred_element_type=jnp.float32)

    # packed = [final | recon | lin | inter]: straight off the MXU + one VPU add.
    packed_ref[...] = rl + mm2 + bias_ref[...]


def _pick_batch_tile(B):
    """Prefer >= 4 grid steps (2 per v7x TensorCore + pipeline overlap of the
    x/weight DMA), rows a multiple of ROW_CHUNK.  On single-TC v6e with large B,
    256-row tiles can be better (256-wide MXU): pass batch_tile explicitly."""
    for t in (256, 128, 64, 32):
        if B % t == 0 and B // t >= 4:
            return t
    for t in (256, 128, 64, 32):
        if B % t == 0:
            return t
    return B


def joint_sae_nfm_forward(x, params, *, k, batch_tile=None,
                          compute_dtype=jnp.float32,
                          features_dtype=jnp.float32):
    B, D = x.shape
    F = params["w_enc"].shape[0]
    E = params["emb"].shape[1]
    assert k >= 1
    if batch_tile is None:
        batch_tile = _pick_batch_tile(B)
    assert B % batch_tile == 0

    cd = compute_dtype
    f32 = jnp.float32

    # One-time wrapper-side layout work: pre-transpose, fuse, lane-pack, E^2.
    w_enc_t = params["w_enc"].T.astype(cd)                       # (D, F)
    w_dec_t = params["w_dec"].T.astype(f32)                      # (F, D)
    w_lin_t = params["w_lin"].T.astype(f32)                      # (F, D)
    # Packed output layout: [final | recon | lin | inter] (each D lanes wide).
    w_big = jnp.concatenate(
        [w_dec_t + w_lin_t, w_dec_t, w_lin_t, jnp.zeros((F, D), f32)],
        axis=1).astype(cd)                                       # (F, 4D)
    w_m2_t = params["w_m2"].T.astype(f32)                        # (E, D)
    zeros_ed = jnp.zeros((E, D), f32)
    w_m2_big = jnp.concatenate([w_m2_t, zeros_ed, zeros_ed, w_m2_t],
                               axis=1).astype(cd)                # (E, 4D)
    b_lin = params["b_lin"].astype(f32)                          # (1, D)
    b_m2 = params["b_m2"].astype(f32)                            # (1, D)
    zeros_d = jnp.zeros((1, D), f32)
    bias_packed = jnp.concatenate([b_lin + b_m2, zeros_d, b_lin, b_m2],
                                  axis=1)                        # (1, 4D)
    emb = params["emb"].astype(cd)                               # (F, E)
    # TODO(synk): at production F, drop emb_sq (square emb in-kernel), keep the
    # F-scaling weights in HBM (memory_space=pl.ANY) with an F-chunk reduction
    # grid, and single-buffer grid-invariant weights (pipeline_mode=pl.Buffered(1)).
    emb_sq = (params["emb"] * params["emb"]).astype(cd)          # (F, E)
    w_m1_t = params["w_m1"].T.astype(cd)                         # (E, E)
    b_enc = params["b_enc"].astype(f32)                          # (1, F)
    b_m1 = params["b_m1"].astype(f32)                            # (1, E)

    full = lambda i: (0, 0)            # grid-invariant weight blocks
    row = lambda i: (i, 0)             # batch-tiled arrays

    in_specs = [
        pl.BlockSpec((batch_tile, D), row),      # x
        pl.BlockSpec((D, F), full),              # w_enc^T
        pl.BlockSpec((1, F), full),              # b_enc
        pl.BlockSpec((F, 4 * D), full),          # [wd+wl | wd | wl | 0]
        pl.BlockSpec((F, E), full),              # emb
        pl.BlockSpec((F, E), full),              # emb^2 (precomputed)
        pl.BlockSpec((E, E), full),              # w_m1^T
        pl.BlockSpec((1, E), full),              # b_m1
        pl.BlockSpec((E, 4 * D), full),          # [wm2 | 0 | 0 | wm2]
        pl.BlockSpec((1, 4 * D), full),          # [b_lin+b_m2 | 0 | b_lin | b_m2]
    ]
    out_specs = [
        pl.BlockSpec((batch_tile, 4 * D), row),  # packed [final|recon|lin|inter]
        pl.BlockSpec((batch_tile, F), row),      # primary_features
    ]
    out_shape = (
        jax.ShapeDtypeStruct((B, 4 * D), jnp.float32),
        jax.ShapeDtypeStruct((B, F), features_dtype),
    )

    packed, feats = pl.pallas_call(
        functools.partial(joint_sae_nfm_kernel, k=k),
        out_shape=out_shape,
        grid_spec=pltpu.PrefetchScalarGridSpec(
            num_scalar_prefetch=0,
            grid=(B // batch_tile,),
            in_specs=in_specs,
            out_specs=out_specs,
            scratch_shapes=[pltpu.VMEM((batch_tile, F), jnp.float32)],
        ),
        compiler_params=pltpu.CompilerParams(
            dimension_semantics=("parallel",),
            vmem_limit_bytes=32 * 1024 * 1024),
    )(x, w_enc_t, b_enc, w_big, emb, emb_sq, w_m1_t, b_m1, w_m2_big, bias_packed)

    final = packed[:, :D]
    recon = packed[:, D:2 * D]
    lin = packed[:, 2 * D:3 * D]
    inter = packed[:, 3 * D:]
    return final, feats, recon, lin, inter


def make_params(key, input_dim, sae_features, nfm_embedding_dim):
    """Deterministic init mirroring the PyTorch module's initialize_weights()."""
    D, F, E = input_dim, sae_features, nfm_embedding_dim
    ks = jax.random.split(key, 6)
    w_dec = 0.1 * jax.random.normal(ks[0], (D, F), jnp.float32)     # decoder.weight
    w_enc = w_dec.T                                                  # encoder.weight = decoder.weight.T
    b_enc = jnp.zeros((1, F), jnp.float32)
    emb = 0.05 * jax.random.normal(ks[1], (F, E), jnp.float32)       # NFM_INIT_WEIGHT
    w_lin = 0.01 * jax.random.normal(ks[2], (D, F), jnp.float32)
    b_lin = jnp.zeros((1, D), jnp.float32)
    w_m1 = 0.01 * jax.random.normal(ks[3], (E, E), jnp.float32)
    b_m1 = jnp.zeros((1, E), jnp.float32)
    w_m2 = 0.01 * jax.random.normal(ks[4], (D, E), jnp.float32)
    b_m2 = jnp.zeros((1, D), jnp.float32)
    return dict(w_enc=w_enc, b_enc=b_enc, w_dec=w_dec, emb=emb,
                w_lin=w_lin, b_lin=b_lin, w_m1=w_m1, b_m1=b_m1,
                w_m2=w_m2, b_m2=b_m2)


def reference_forward(x, p, k):
    """Pure-JAX reference of the PyTorch forward (eval mode)."""
    feats = jnp.maximum(x @ p["w_enc"].T + p["b_enc"], 0.0)
    vals, _ = jax.lax.top_k(feats, k)
    thr = vals[:, k - 1:k]
    sparse = jnp.where(feats >= thr, feats, 0.0)
    recon = sparse @ p["w_dec"].T
    sum_emb = sparse @ p["emb"]
    sum_sq = (sparse * sparse) @ (p["emb"] * p["emb"])
    inter_vec = 0.5 * (sum_emb ** 2 - sum_sq)
    h = jnp.maximum(inter_vec @ p["w_m1"].T + p["b_m1"], 0.0)
    inter_out = h @ p["w_m2"].T + p["b_m2"]
    lin_out = sparse @ p["w_lin"].T + p["b_lin"]
    return recon + lin_out + inter_out, sparse, recon, lin_out, inter_out


if __name__ == "__main__":
    # batch, input_dim, sae_features, nfm_embedding_dim, sae_k
    B, D, F, E, K = 256, 32, 256, 64, 16

    key = jax.random.PRNGKey(0)
    k_x, k_p = jax.random.split(key)
    x = jax.random.normal(k_x, (B, D), jnp.float32)
    params = make_params(k_p, D, F, E)

    # f32 path: strict correctness check against the pure-JAX reference.
    outs = joint_sae_nfm_forward(x, params, k=K)
    outs = jax.block_until_ready(outs)
    refs = reference_forward(x, params, K)
    names = ("final", "features", "recon", "linear", "interaction")
    for name, o, r in zip(names, outs, refs):
        assert o.shape == r.shape, f"{name}: shape {o.shape} vs {r.shape}"
        assert jnp.allclose(o, r, atol=1e-4, rtol=1e-4), f"mismatch vs reference: {name}"

    # bf16 MXU-operand path (all generations, incl. v5e) + bf16 feature output.
    outs_b = joint_sae_nfm_forward(x, params, k=K,
                                   compute_dtype=jnp.bfloat16,
                                   features_dtype=jnp.bfloat16)
    outs_b = jax.block_until_ready(outs_b)
    for o in outs_b:
        assert bool(jnp.all(jnp.isfinite(o.astype(jnp.float32)))), "non-finite bf16 output"
    # bf16 encoder logits can flip near-threshold selections: check selection
    # overlap against the f32 path instead of a tight allclose.
    sel_f32 = outs[1] > 0
    sel_b16 = outs_b[1].astype(jnp.float32) > 0
    overlap = jnp.sum(sel_f32 & sel_b16) / jnp.maximum(jnp.sum(sel_f32), 1)
    assert float(overlap) >= 0.95, f"bf16 TopK selection overlap too low: {float(overlap):.3f}"

    print("KERNEL_OK")
</pallas_src>

<mosaic_0001>
module attributes {stable_mosaic.version = 11 : i64} {
  func.func @joint_sae_nfm_kernel(%arg0: i32, %arg1: memref<64x32xf32, #tpu.memory_space<vmem>>, %arg2: memref<32x256xf32, #tpu.memory_space<vmem>>, %arg3: memref<1x256xf32, #tpu.memory_space<vmem>>, %arg4: memref<256x128xf32, #tpu.memory_space<vmem>>, %arg5: memref<256x64xf32, #tpu.memory_space<vmem>>, %arg6: memref<256x64xf32, #tpu.memory_space<vmem>>, %arg7: memref<64x64xf32, #tpu.memory_space<vmem>>, %arg8: memref<1x64xf32, #tpu.memory_space<vmem>>, %arg9: memref<64x128xf32, #tpu.memory_space<vmem>>, %arg10: memref<1x128xf32, #tpu.memory_space<vmem>>, %arg11: memref<64x128xf32, #tpu.memory_space<vmem>>, %arg12: memref<64x256xf32, #tpu.memory_space<vmem>>, %arg13: memref<64x256xf32, #tpu.memory_space<vmem>>) attributes {dimension_semantics = [#tpu.dimension_semantics<parallel>], iteration_bounds = array<i64: 4>, scalar_prefetch = 0 : i64, scratch_operands = 1 : i64, tpu.core_type = #tpu.core_type<tc>, window_params = [{transform_indices = @transform_0, window_bounds = array<i64: 64, 32>}, {pipeline_mode = #tpu.pipeline_mode<synchronous>, transform_indices = @transform_1, window_bounds = array<i64: 32, 256>}, {pipeline_mode = #tpu.pipeline_mode<synchronous>, transform_indices = @transform_2, window_bounds = array<i64: 1, 256>}, {pipeline_mode = #tpu.pipeline_mode<synchronous>, transform_indices = @transform_3, window_bounds = array<i64: 256, 128>}, {pipeline_mode = #tpu.pipeline_mode<synchronous>, transform_indices = @transform_4, window_bounds = array<i64: 256, 64>}, {pipeline_mode = #tpu.pipeline_mode<synchronous>, transform_indices = @transform_5, window_bounds = array<i64: 256, 64>}, {pipeline_mode = #tpu.pipeline_mode<synchronous>, transform_indices = @transform_6, window_bounds = array<i64: 64, 64>}, {pipeline_mode = #tpu.pipeline_mode<synchronous>, transform_indices = @transform_7, window_bounds = array<i64: 1, 64>}, {pipeline_mode = #tpu.pipeline_mode<synchronous>, transform_indices = @transform_8, window_bounds = array<i64: 64, 128>}, {pipeline_mode = #tpu.pipeline_mode<synchronous>, transform_indices = @transform_9, window_bounds = array<i64: 1, 128>}, {transform_indices = @transform_10, window_bounds = array<i64: 64, 128>}, {transform_indices = @transform_11, window_bounds = array<i64: 64, 256>}]} {
    %c0 = arith.constant 0 : index
    %c0_0 = arith.constant 0 : index
    %0 = vector.load %arg1[%c0, %c0_0] : memref<64x32xf32, #tpu.memory_space<vmem>>, vector<64x32xf32>
    %c0_1 = arith.constant 0 : index
    %c0_2 = arith.constant 0 : index
    %1 = vector.load %arg2[%c0_1, %c0_2] : memref<32x256xf32, #tpu.memory_space<vmem>>, vector<32x256xf32>
    %cst = arith.constant dense<0.000000e+00> : vector<64x256xf32>
    %2 = tpu.matmul %0, %1, %cst {dimension_numbers = #tpu.dot_dimension_numbers<[1], [0], [0], [1], [0, 0, 1, 1], [], []>} : vector<64x32xf32>, vector<32x256xf32>, vector<64x256xf32> -> vector<64x256xf32>
    %c0_3 = arith.constant 0 : index
    %c0_4 = arith.constant 0 : index
    %3 = vector.load %arg3[%c0_3, %c0_4] : memref<1x256xf32, #tpu.memory_space<vmem>>, vector<1x256xf32>
    %4 = vector.broadcast %3 : vector<1x256xf32> to vector<64x256xf32>
    %5 = arith.addf %2, %4 : vector<64x256xf32>
    %cst_5 = arith.constant 0.000000e+00 : f32
    %6 = vector.broadcast %cst_5 : f32 to vector<64x256xf32>
    %7 = arith.maximumf %5, %6 : vector<64x256xf32>
    %c0_6 = arith.constant 0 : index
    %c0_7 = arith.constant 0 : index
    %8 = vector.load %arg13[%c0_6, %c0_7] : memref<64x256xf32, #tpu.memory_space<vmem>>, vector<64x256xf32>
    tpu.vector_store %arg13[%c0_6, %c0_7], %7 {strides = array<i32>} : memref<64x256xf32, #tpu.memory_space<vmem>>, vector<64x256xf32>,
    %c0_i32 = arith.constant 0 : i32
    %c32_i32 = arith.constant 32 : i32
    %9 = arith.muli %c0_i32, %c32_i32 : i32
    %10 = tpu.assume_multiple %9, 32 : i32
    %11 = arith.index_cast %10 : i32 to index
    %c0_8 = arith.constant 0 : index
    %12 = vector.load %arg13[%11, %c0_8] : memref<64x256xf32, #tpu.memory_space<vmem>>, vector<32x256xf32>
    %13 = tpu.bitcast %12 : vector<32x256xf32> -> vector<32x256xi32>
    %14 = vector.extract_strided_slice %13 {offsets = [0, 0], sizes = [32, 128], strides = [1, 1]} : vector<32x256xi32> to vector<32x128xi32>
    %15 = vector.extract_strided_slice %13 {offsets = [0, 128], sizes = [32, 128], strides = [1, 1]} : vector<32x256xi32> to vector<32x128xi32>
    %16 = arith.maxsi %14, %15 : vector<32x128xi32>
    %cst_9 = arith.constant dense<-2147483648> : vector<32xi32>
    %17 = vector.multi_reduction <maxsi>, %16, %cst_9 [1] : vector<32x128xi32> to vector<32xi32>
    %18 = vector.shape_cast %17 : vector<32xi32> to vector<32x1xi32>
    %19 = vector.broadcast %18 : vector<32x1xi32> to vector<32x256xi32>
    %20 = arith.cmpi sge, %13, %19 : vector<32x256xi32>
    %c-1_i32 = arith.constant -1 : i32
    %21 = vector.broadcast %c-1_i32 : i32 to vector<32x256xi32>
    %22 = arith.select %20, %21, %13 : vector<32x256xi1>, vector<32x256xi32>
    %23 = vector.extract_strided_slice %22 {offsets = [0, 0], sizes = [32, 128], strides = [1, 1]} : vector<32x256xi32> to vector<32x128xi32>
    %24 = vector.extract_strided_slice %22 {offsets = [0, 128], sizes = [32, 128], strides = [1, 1]} : vector<32x256xi32> to vector<32x128xi32>
    %25 = arith.maxsi %23, %24 : vector<32x128xi32>
    %cst_10 = arith.constant dense<-2147483648> : vector<32xi32>
    %26 = vector.multi_reduction <maxsi>, %25, %cst_10 [1] : vector<32x128xi32> to vector<32xi32>
    %27 = vector.shape_cast %26 : vector<32xi32> to vector<32x1xi32>
    %28 = vector.broadcast %27 : vector<32x1xi32> to vector<32x256xi32>
    %29 = arith.cmpi sge, %22, %28 : vector<32x256xi32>
    %c-1_i32_11 = arith.constant -1 : i32
    %30 = vector.broadcast %c-1_i32_11 : i32 to vector<32x256xi32>
    %31 = arith.select %29, %30, %22 : vector<32x256xi1>, vector<32x256xi32>
    %32 = vector.extract_strided_slice %31 {offsets = [0, 0], sizes = [32, 128], strides = [1, 1]} : vector<32x256xi32> to vector<32x128xi32>
    %33 = vector.extract_strided_slice %31 {offsets = [0, 128], sizes = [32, 128], strides = [1, 1]} : vector<32x256xi32> to vector<32x128xi32>
    %34 = arith.maxsi %32, %33 : vector<32x128xi32>
    %cst_12 = arith.constant dense<-2147483648> : vector<32xi32>
    %35 = vector.multi_reduction <maxsi>, %34, %cst_12 [1] : vector<32x128xi32> to vector<32xi32>
    %36 = vector.shape_cast %35 : vector<32xi32> to vector<32x1xi32>
    %37 = vector.broadcast %36 : vector<32x1xi32> to vector<32x256xi32>
    %38 = arith.cmpi sge, %31, %37 : vector<32x256xi32>
    %c-1_i32_13 = arith.constant -1 : i32
    %39 = vector.broadcast %c-1_i32_13 : i32 to vector<32x256xi32>
    %40 = arith.select %38, %39, %31 : vector<32x256xi1>, vector<32x256xi32>
    %41 = vector.extract_strided_slice %40 {offsets = [0, 0], sizes = [32, 128], strides = [1, 1]} : vector<32x256xi32> to vector<32x128xi32>
    %42 = vector.extract_strided_slice %40 {offsets = [0, 128], sizes = [32, 128], strides = [1, 1]} : vector<32x256xi32> to vector<32x128xi32>
    %43 = arith.maxsi %41, %42 : vector<32x128xi32>
    %cst_14 = arith.constant dense<-2147483648> : vector<32xi32>
    %44 = vector.multi_reduction <maxsi>, %43, %cst_14 [1] : vector<32x128xi32> to vector<32xi32>
    %45 = vector.shape_cast %44 : vector<32xi32> to vector<32x1xi32>
    %46 = vector.broadcast %45 : vector<32x1xi32> to vector<32x256xi32>
    %47 = arith.cmpi sge, %40, %46 : vector<32x256xi32>
    %c-1_i32_15 = arith.constant -1 : i32
    %48 = vector.broadcast %c-1_i32_15 : i32 to vector<32x256xi32>
    %49 = arith.select %47, %48, %40 : vector<32x256xi1>, vector<32x256xi32>
    %50 = vector.extract_strided_slice %49 {offsets = [0, 0], sizes = [32, 128], strides = [1, 1]} : vector<32x256xi32> to vector<32x128xi32>
    %51 = vector.extract_strided_slice %49 {offsets = [0, 128], sizes = [32, 128], strides = [1, 1]} : vector<32x256xi32> to vector<32x128xi32>
    %52 = arith.maxsi %50, %51 : vector<32x128xi32>
    %cst_16 = arith.constant dense<-2147483648> : vector<32xi32>
    %53 = vector.multi_reduction <maxsi>, %52, %cst_16 [1] : vector<32x128xi32> to vector<32xi32>
    %54 = vector.shape_cast %53 : vector<32xi32> to vector<32x1xi32>
    %55 = vector.broadcast %54 : vector<32x1xi32> to vector<32x256xi32>
    %56 = arith.cmpi sge, %49, %55 : vector<32x256xi32>
    %c-1_i32_17 = arith.constant -1 : i32
    %57 = vector.broadcast %c-1_i32_17 : i32 to vector<32x256xi32>
    %58 = arith.select %56, %57, %49 : vector<32x256xi1>, vector<32x256xi32>
    %59 = vector.extract_strided_slice %58 {offsets = [0, 0], sizes = [32, 128], strides = [1, 1]} : vector<32x256xi32> to vector<32x128xi32>
    %60 = vector.extract_strided_slice %58 {offsets = [0, 128], sizes = [32, 128], strides = [1, 1]} : vector<32x256xi32> to vector<32x128xi32>
    %61 = arith.maxsi %59, %60 : vector<32x128xi32>
    %cst_18 = arith.constant dense<-2147483648> : vector<32xi32>
    %62 = vector.multi_reduction <maxsi>, %61, %cst_18 [1] : vector<32x128xi32> to vector<32xi32>
    %63 = vector.shape_cast %62 : vector<32xi32> to vector<32x1xi32>
    %64 = vector.broadcast %63 : vector<32x1xi32> to vector<32x256xi32>
    %65 = arith.cmpi sge, %58, %64 : vector<32x256xi32>
    %c-1_i32_19 = arith.constant -1 : i32
    %66 = vector.broadcast %c-1_i32_19 : i32 to vector<32x256xi32>
    %67 = arith.select %65, %66, %58 : vector<32x256xi1>, vector<32x256xi32>
    %68 = vector.extract_strided_slice %67 {offsets = [0, 0], sizes = [32, 128], strides = [1, 1]} : vector<32x256xi32> to vector<32x128xi32>
    %69 = vector.extract_strided_slice %67 {offsets = [0, 128], sizes = [32, 128], strides = [1, 1]} : vector<32x256xi32> to vector<32x128xi32>
    %70 = arith.maxsi %68, %69 : vector<32x128xi32>
    %cst_20 = arith.constant dense<-2147483648> : vector<32xi32>
    %71 = vector.multi_reduction <maxsi>, %70, %cst_20 [1] : vector<32x128xi32> to vector<32xi32>
    %72 = vector.shape_cast %71 : vector<32xi32> to vector<32x1xi32>
    %73 = vector.broadcast %72 : vector<32x1xi32> to vector<32x256xi32>
    %74 = arith.cmpi sge, %67, %73 : vector<32x256xi32>
    %c-1_i32_21 = arith.constant -1 : i32
    %75 = vector.broadcast %c-1_i32_21 : i32 to vector<32x256xi32>
    %76 = arith.select %74, %75, %67 : vector<32x256xi1>, vector<32x256xi32>
    %77 = vector.extract_strided_slice %76 {offsets = [0, 0], sizes = [32, 128], strides = [1, 1]} : vector<32x256xi32> to vector<32x128xi32>
    %78 = vector.extract_strided_slice %76 {offsets = [0, 128], sizes = [32, 128], strides = [1, 1]} : vector<32x256xi32> to vector<32x128xi32>
    %79 = arith.maxsi %77, %78 : vector<32x128xi32>
    %cst_22 = arith.constant dense<-2147483648> : vector<32xi32>
    %80 = vector.multi_reduction <maxsi>, %79, %cst_22 [1] : vector<32x128xi32> to vector<32xi32>
    %81 = vector.shape_cast %80 : vector<32xi32> to vector<32x1xi32>
    %82 = vector.broadcast %81 : vector<32x1xi32> to vector<32x256xi32>
    %83 = arith.cmpi sge, %76, %82 : vector<32x256xi32>
    %c-1_i32_23 = arith.constant -1 : i32
    %84 = vector.broadcast %c-1_i32_23 : i32 to vector<32x256xi32>
    %85 = arith.select %83, %84, %76 : vector<32x256xi1>, vector<32x256xi32>
    %86 = vector.extract_strided_slice %85 {offsets = [0, 0], sizes = [32, 128], strides = [1, 1]} : vector<32x256xi32> to vector<32x128xi32>
    %87 = vector.extract_strided_slice %85 {offsets = [0, 128], sizes = [32, 128], strides = [1, 1]} : vector<32x256xi32> to vector<32x128xi32>
    %88 = arith.maxsi %86, %87 : vector<32x128xi32>
    %cst_24 = arith.constant dense<-2147483648> : vector<32xi32>
    %89 = vector.multi_reduction <maxsi>, %88, %cst_24 [1] : vector<32x128xi32> to vector<32xi32>
    %90 = vector.shape_cast %89 : vector<32xi32> to vector<32x1xi32>
    %91 = vector.broadcast %90 : vector<32x1xi32> to vector<32x256xi32>
    %92 = arith.cmpi sge, %85, %91 : vector<32x256xi32>
    %c-1_i32_25 = arith.constant -1 : i32
    %93 = vector.broadcast %c-1_i32_25 : i32 to vector<32x256xi32>
    %94 = arith.select %92, %93, %85 : vector<32x256xi1>, vector<32x256xi32>
    %95 = vector.extract_strided_slice %94 {offsets = [0, 0], sizes = [32, 128], strides = [1, 1]} : vector<32x256xi32> to vector<32x128xi32>
    %96 = vector.extract_strided_slice %94 {offsets = [0, 128], sizes = [32, 128], strides = [1, 1]} : vector<32x256xi32> to vector<32x128xi32>
    %97 = arith.maxsi %95, %96 : vector<32x128xi32>
    %cst_26 = arith.constant dense<-2147483648> : vector<32xi32>
    %98 = vector.multi_reduction <maxsi>, %97, %cst_26 [1] : vector<32x128xi32> to vector<32xi32>
    %99 = vector.shape_cast %98 : vector<32xi32> to vector<32x1xi32>
    %100 = vector.broadcast %99 : vector<32x1xi32> to vector<32x256xi32>
    %101 = arith.cmpi sge, %94, %100 : vector<32x256xi32>
    %c-1_i32_27 = arith.constant -1 : i32
    %102 = vector.broadcast %c-1_i32_27 : i32 to vector<32x256xi32>
    %103 = arith.select %101, %102, %94 : vector<32x256xi1>, vector<32x256xi32>
    %104 = vector.extract_strided_slice %103 {offsets = [0, 0], sizes = [32, 128], strides = [1, 1]} : vector<32x256xi32> to vector<32x128xi32>
    %105 = vector.extract_strided_slice %103 {offsets = [0, 128], sizes = [32, 128], strides = [1, 1]} : vector<32x256xi32> to vector<32x128xi32>
    %106 = arith.maxsi %104, %105 : vector<32x128xi32>
    %cst_28 = arith.constant dense<-2147483648> : vector<32xi32>
    %107 = vector.multi_reduction <maxsi>, %106, %cst_28 [1] : vector<32x128xi32> to vector<32xi32>
    %108 = vector.shape_cast %107 : vector<32xi32> to vector<32x1xi32>
    %109 = vector.broadcast %108 : vector<32x1xi32> to vector<32x256xi32>
    %110 = arith.cmpi sge, %103, %109 : vector<32x256xi32>
    %c-1_i32_29 = arith.constant -1 : i32
    %111 = vector.broadcast %c-1_i32_29 : i32 to vector<32x256xi32>
    %112 = arith.select %110, %111, %103 : vector<32x256xi1>, vector<32x256xi32>
    %113 = vector.extract_strided_slice %112 {offsets = [0, 0], sizes = [32, 128], strides = [1, 1]} : vector<32x256xi32> to vector<32x128xi32>
    %114 = vector.extract_strided_slice %112 {offsets = [0, 128], sizes = [32, 128], strides = [1, 1]} : vector<32x256xi32> to vector<32x128xi32>
    %115 = arith.maxsi %113, %114 : vector<32x128xi32>
    %cst_30 = arith.constant dense<-2147483648> : vector<32xi32>
    %116 = vector.multi_reduction <maxsi>, %115, %cst_30 [1] : vector<32x128xi32> to vector<32xi32>
    %117 = vector.shape_cast %116 : vector<32xi32> to vector<32x1xi32>
    %118 = vector.broadcast %117 : vector<32x1xi32> to vector<32x256xi32>
    %119 = arith.cmpi sge, %112, %118 : vector<32x256xi32>
    %c-1_i32_31 = arith.constant -1 : i32
    %120 = vector.broadcast %c-1_i32_31 : i32 to vector<32x256xi32>
    %121 = arith.select %119, %120, %112 : vector<32x256xi1>, vector<32x256xi32>
    %122 = vector.extract_strided_slice %121 {offsets = [0, 0], sizes = [32, 128], strides = [1, 1]} : vector<32x256xi32> to vector<32x128xi32>
    %123 = vector.extract_strided_slice %121 {offsets = [0, 128], sizes = [32, 128], strides = [1, 1]} : vector<32x256xi32> to vector<32x128xi32>
    %124 = arith.maxsi %122, %123 : vector<32x128xi32>
    %cst_32 = arith.constant dense<-2147483648> : vector<32xi32>
    %125 = vector.multi_reduction <maxsi>, %124, %cst_32 [1] : vector<32x128xi32> to vector<32xi32>
    %126 = vector.shape_cast %125 : vector<32xi32> to vector<32x1xi32>
    %127 = vector.broadcast %126 : vector<32x1xi32> to vector<32x256xi32>
    %128 = arith.cmpi sge, %121, %127 : vector<32x256xi32>
    %c-1_i32_33 = arith.constant -1 : i32
    %129 = vector.broadcast %c-1_i32_33 : i32 to vector<32x256xi32>
    %130 = arith.select %128, %129, %121 : vector<32x256xi1>, vector<32x256xi32>
    %131 = vector.extract_strided_slice %130 {offsets = [0, 0], sizes = [32, 128], strides = [1, 1]} : vector<32x256xi32> to vector<32x128xi32>
    %132 = vector.extract_strided_slice %130 {offsets = [0, 128], sizes = [32, 128], strides = [1, 1]} : vector<32x256xi32> to vector<32x128xi32>
    %133 = arith.maxsi %131, %132 : vector<32x128xi32>
    %cst_34 = arith.constant dense<-2147483648> : vector<32xi32>
    %134 = vector.multi_reduction <maxsi>, %133, %cst_34 [1] : vector<32x128xi32> to vector<32xi32>
    %135 = vector.shape_cast %134 : vector<32xi32> to vector<32x1xi32>
    %136 = vector.broadcast %135 : vector<32x1xi32> to vector<32x256xi32>
    %137 = arith.cmpi sge, %130, %136 : vector<32x256xi32>
    %c-1_i32_35 = arith.constant -1 : i32
    %138 = vector.broadcast %c-1_i32_35 : i32 to vector<32x256xi32>
    %139 = arith.select %137, %138, %130 : vector<32x256xi1>, vector<32x256xi32>
    %140 = vector.extract_strided_slice %139 {offsets = [0, 0], sizes = [32, 128], strides = [1, 1]} : vector<32x256xi32> to vector<32x128xi32>
    %141 = vector.extract_strided_slice %139 {offsets = [0, 128], sizes = [32, 128], strides = [1, 1]} : vector<32x256xi32> to vector<32x128xi32>
    %142 = arith.maxsi %140, %141 : vector<32x128xi32>
    %cst_36 = arith.constant dense<-2147483648> : vector<32xi32>
    %143 = vector.multi_reduction <maxsi>, %142, %cst_36 [1] : vector<32x128xi32> to vector<32xi32>
    %144 = vector.shape_cast %143 : vector<32xi32> to vector<32x1xi32>
    %145 = vector.broadcast %144 : vector<32x1xi32> to vector<32x256xi32>
    %146 = arith.cmpi sge, %139, %145 : vector<32x256xi32>
    %c-1_i32_37 = arith.constant -1 : i32
    %147 = vector.broadcast %c-1_i32_37 : i32 to vector<32x256xi32>
    %148 = arith.select %146, %147, %139 : vector<32x256xi1>, vector<32x256xi32>
    %149 = vector.extract_strided_slice %148 {offsets = [0, 0], sizes = [32, 128], strides = [1, 1]} : vector<32x256xi32> to vector<32x128xi32>
    %150 = vector.extract_strided_slice %148 {offsets = [0, 128], sizes = [32, 128], strides = [1, 1]} : vector<32x256xi32> to vector<32x128xi32>
    %151 = arith.maxsi %149, %150 : vector<32x128xi32>
    %cst_38 = arith.constant dense<-2147483648> : vector<32xi32>
    %152 = vector.multi_reduction <maxsi>, %151, %cst_38 [1] : vector<32x128xi32> to vector<32xi32>
    %153 = vector.shape_cast %152 : vector<32xi32> to vector<32x1xi32>
    %154 = arith.index_cast %10 : i32 to index
    %c0_39 = arith.constant 0 : index
    %155 = vector.load %arg13[%154, %c0_39] : memref<64x256xf32, #tpu.memory_space<vmem>>, vector<32x256xf32>
    %156 = tpu.bitcast %155 : vector<32x256xf32> -> vector<32x256xi32>
    %157 = vector.broadcast %153 : vector<32x1xi32> to vector<32x256xi32>
    %158 = arith.cmpi sge, %156, %157 : vector<32x256xi32>
    %cst_40 = arith.constant 0.000000e+00 : f32
    %159 = vector.broadcast %cst_40 : f32 to vector<32x256xf32>
    %160 = arith.select %158, %155, %159 : vector<32x256xi1>, vector<32x256xf32>
    %161 = arith.index_cast %10 : i32 to index
    %c0_41 = arith.constant 0 : index
    %162 = vector.load %arg13[%161, %c0_41] : memref<64x256xf32, #tpu.memory_space<vmem>>, vector<32x256xf32>
    tpu.vector_store %arg13[%161, %c0_41], %160 {strides = array<i32>} : memref<64x256xf32, #tpu.memory_space<vmem>>, vector<32x256xf32>,
    %163 = arith.index_cast %10 : i32 to index
    %c0_42 = arith.constant 0 : index
    %164 = vector.load %arg12[%163, %c0_42] : memref<64x256xf32, #tpu.memory_space<vmem>>, vector<32x256xf32>
    tpu.vector_store %arg12[%163, %c0_42], %160 {strides = array<i32>} : memref<64x256xf32, #tpu.memory_space<vmem>>, vector<32x256xf32>,
    %c1_i32 = arith.constant 1 : i32
    %c32_i32_43 = arith.constant 32 : i32
    %165 = arith.muli %c1_i32, %c32_i32_43 : i32
    %166 = tpu.assume_multiple %165, 32 : i32
    %167 = arith.index_cast %166 : i32 to index
    %c0_44 = arith.constant 0 : index
    %168 = vector.load %arg13[%167, %c0_44] : memref<64x256xf32, #tpu.memory_space<vmem>>, vector<32x256xf32>
    %169 = tpu.bitcast %168 : vector<32x256xf32> -> vector<32x256xi32>
    %170 = vector.extract_strided_slice %169 {offsets = [0, 0], sizes = [32, 128], strides = [1, 1]} : vector<32x256xi32> to vector<32x128xi32>
    %171 = vector.extract_strided_slice %169 {offsets = [0, 128], sizes = [32, 128], strides = [1, 1]} : vector<32x256xi32> to vector<32x128xi32>
    %172 = arith.maxsi %170, %171 : vector<32x128xi32>
    %cst_45 = arith.constant dense<-2147483648> : vector<32xi32>
    %173 = vector.multi_reduction <maxsi>, %172, %cst_45 [1] : vector<32x128xi32> to vector<32xi32>
    %174 = vector.shape_cast %173 : vector<32xi32> to vector<32x1xi32>
    %175 = vector.broadcast %174 : vector<32x1xi32> to vector<32x256xi32>
    %176 = arith.cmpi sge, %169, %175 : vector<32x256xi32>
    %c-1_i32_46 = arith.constant -1 : i32
    %177 = vector.broadcast %c-1_i32_46 : i32 to vector<32x256xi32>
    %178 = arith.select %176, %177, %169 : vector<32x256xi1>, vector<32x256xi32>
    %179 = vector.extract_strided_slice %178 {offsets = [0, 0], sizes = [32, 128], strides = [1, 1]} : vector<32x256xi32> to vector<32x128xi32>
    %180 = vector.extract_strided_slice %178 {offsets = [0, 128], sizes = [32, 128], strides = [1, 1]} : vector<32x256xi32> to vector<32x128xi32>
    %181 = arith.maxsi %179, %180 : vector<32x128xi32>
    %cst_47 = arith.constant dense<-2147483648> : vector<32xi32>
    %182 = vector.multi_reduction <maxsi>, %181, %cst_47 [1] : vector<32x128xi32> to vector<32xi32>
    %183 = vector.shape_cast %182 : vector<32xi32> to vector<32x1xi32>
    %184 = vector.broadcast %183 : vector<32x1xi32> to vector<32x256xi32>
    %185 = arith.cmpi sge, %178, %184 : vector<32x256xi32>
    %c-1_i32_48 = arith.constant -1 : i32
    %186 = vector.broadcast %c-1_i32_48 : i32 to vector<32x256xi32>
    %187 = arith.select %185, %186, %178 : vector<32x256xi1>, vector<32x256xi32>
    %188 = vector.extract_strided_slice %187 {offsets = [0, 0], sizes = [32, 128], strides = [1, 1]} : vector<32x256xi32> to vector<32x128xi32>
    %189 = vector.extract_strided_slice %187 {offsets = [0, 128], sizes = [32, 128], strides = [1, 1]} : vector<32x256xi32> to vector<32x128xi32>
    %190 = arith.maxsi %188, %189 : vector<32x128xi32>
    %cst_49 = arith.constant dense<-2147483648> : vector<32xi32>
    %191 = vector.multi_reduction <maxsi>, %190, %cst_49 [1] : vector<32x128xi32> to vector<32xi32>
    %192 = vector.shape_cast %191 : vector<32xi32> to vector<32x1xi32>
    %193 = vector.broadcast %192 : vector<32x1xi32> to vector<32x256xi32>
    %194 = arith.cmpi sge, %187, %193 : vector<32x256xi32>
    %c-1_i32_50 = arith.constant -1 : i32
    %195 = vector.broadcast %c-1_i32_50 : i32 to vector<32x256xi32>
    %196 = arith.select %194, %195, %187 : vector<32x256xi1>, vector<32x256xi32>
    %197 = vector.extract_strided_slice %196 {offsets = [0, 0], sizes = [32, 128], strides = [1, 1]} : vector<32x256xi32> to vector<32x128xi32>
    %198 = vector.extract_strided_slice %196 {offsets = [0, 128], sizes = [32, 128], strides = [1, 1]} : vector<32x256xi32> to vector<32x128xi32>
    %199 = arith.maxsi %197, %198 : vector<32x128xi32>
    %cst_51 = arith.constant dense<-2147483648> : vector<32xi32>
    %200 = vector.multi_reduction <maxsi>, %199, %cst_51 [1] : vector<32x128xi32> to vector<32xi32>
    %201 = vector.shape_cast %200 : vector<32xi32> to vector<32x1xi32>
    %202 = vector.broadcast %201 : vector<32x1xi32> to vector<32x256xi32>
    %203 = arith.cmpi sge, %196, %202 : vector<32x256xi32>
    %c-1_i32_52 = arith.constant -1 : i32
    %204 = vector.broadcast %c-1_i32_52 : i32 to vector<32x256xi32>
    %205 = arith.select %203, %204, %196 : vector<32x256xi1>, vector<32x256xi32>
    %206 = vector.extract_strided_slice %205 {offsets = [0, 0], sizes = [32, 128], strides = [1, 1]} : vector<32x256xi32> to vector<32x128xi32>
    %207 = vector.extract_strided_slice %205 {offsets = [0, 128], sizes = [32, 128], strides = [1, 1]} : vector<32x256xi32> to vector<32x128xi32>
    %208 = arith.maxsi %206, %207 : vector<32x128xi32>
    %cst_53 = arith.constant dense<-2147483648> : vector<32xi32>
    %209 = vector.multi_reduction <maxsi>, %208, %cst_53 [1] : vector<32x128xi32> to vector<32xi32>
    %210 = vector.shape_cast %209 : vector<32xi32> to vector<32x1xi32>
    %211 = vector.broadcast %210 : vector<32x1xi32> to vector<32x256xi32>
    %212 = arith.cmpi sge, %205, %211 : vector<32x256xi32>
    %c-1_i32_54 = arith.constant -1 : i32
    %213 = vector.broadcast %c-1_i32_54 : i32 to vector<32x256xi32>
    %214 = arith.select %212, %213, %205 : vector<32x256xi1>, vector<32x256xi32>
    %215 = vector.extract_strided_slice %214 {offsets = [0, 0], sizes = [32, 128], strides = [1, 1]} : vector<32x256xi32> to vector<32x128xi32>
    %216 = vector.extract_strided_slice %214 {offsets = [0, 128], sizes = [32, 128], strides = [1, 1]} : vector<32x256xi32> to vector<32x128xi32>
    %217 = arith.maxsi %215, %216 : vector<32x128xi32>
    %cst_55 = arith.constant dense<-2147483648> : vector<32xi32>
    %218 = vector.multi_reduction <maxsi>, %217, %cst_55 [1] : vector<32x128xi32> to vector<32xi32>
    %219 = vector.shape_cast %218 : vector<32xi32> to vector<32x1xi32>
    %220 = vector.broadcast %219 : vector<32x1xi32> to vector<32x256xi32>
    %221 = arith.cmpi sge, %214, %220 : vector<32x256xi32>
    %c-1_i32_56 = arith.constant -1 : i32
    %222 = vector.broadcast %c-1_i32_56 : i32 to vector<32x256xi32>
    %223 = arith.select %221, %222, %214 : vector<32x256xi1>, vector<32x256xi32>
    %224 = vector.extract_strided_slice %223 {offsets = [0, 0], sizes = [32, 128], strides = [1, 1]} : vector<32x256xi32> to vector<32x128xi32>
    %225 = vector.extract_strided_slice %223 {offsets = [0, 128], sizes = [32, 128], strides = [1, 1]} : vector<32x256xi32> to vector<32x128xi32>
    %226 = arith.maxsi %224, %225 : vector<32x128xi32>
    %cst_57 = arith.constant dense<-2147483648> : vector<32xi32>
    %227 = vector.multi_reduction <maxsi>, %226, %cst_57 [1] : vector<32x128xi32> to vector<32xi32>
    %228 = vector.shape_cast %227 : vector<32xi32> to vector<32x1xi32>
    %229 = vector.broadcast %228 : vector<32x1xi32> to vector<32x256xi32>
    %230 = arith.cmpi sge, %223, %229 : vector<32x256xi32>
    %c-1_i32_58 = arith.constant -1 : i32
    %231 = vector.broadcast %c-1_i32_58 : i32 to vector<32x256xi32>
    %232 = arith.select %230, %231, %223 : vector<32x256xi1>, vector<32x256xi32>
    %233 = vector.extract_strided_slice %232 {offsets = [0, 0], sizes = [32, 128], strides = [1, 1]} : vector<32x256xi32> to vector<32x128xi32>
    %234 = vector.extract_strided_slice %232 {offsets = [0, 128], sizes = [32, 128], strides = [1, 1]} : vector<32x256xi32> to vector<32x128xi32>
    %235 = arith.maxsi %233, %234 : vector<32x128xi32>
    %cst_59 = arith.constant dense<-2147483648> : vector<32xi32>
    %236 = vector.multi_reduction <maxsi>, %235, %cst_59 [1] : vector<32x128xi32> to vector<32xi32>
    %237 = vector.shape_cast %236 : vector<32xi32> to vector<32x1xi32>
    %238 = vector.broadcast %237 : vector<32x1xi32> to vector<32x256xi32>
    %239 = arith.cmpi sge, %232, %238 : vector<32x256xi32>
    %c-1_i32_60 = arith.constant -1 : i32
    %240 = vector.broadcast %c-1_i32_60 : i32 to vector<32x256xi32>
    %241 = arith.select %239, %240, %232 : vector<32x256xi1>, vector<32x256xi32>
    %242 = vector.extract_strided_slice %241 {offsets = [0, 0], sizes = [32, 128], strides = [1, 1]} : vector<32x256xi32> to vector<32x128xi32>
    %243 = vector.extract_strided_slice %241 {offsets = [0, 128], sizes = [32, 128], strides = [1, 1]} : vector<32x256xi32> to vector<32x128xi32>
    %244 = arith.maxsi %242, %243 : vector<32x128xi32>
    %cst_61 = arith.constant dense<-2147483648> : vector<32xi32>
    %245 = vector.multi_reduction <maxsi>, %244, %cst_61 [1] : vector<32x128xi32> to vector<32xi32>
    %246 = vector.shape_cast %245 : vector<32xi32> to vector<32x1xi32>
    %247 = vector.broadcast %246 : vector<32x1xi32> to vector<32x256xi32>
    %248 = arith.cmpi sge, %241, %247 : vector<32x256xi32>
    %c-1_i32_62 = arith.constant -1 : i32
    %249 = vector.broadcast %c-1_i32_62 : i32 to vector<32x256xi32>
    %250 = arith.select %248, %249, %241 : vector<32x256xi1>, vector<32x256xi32>
    %251 = vector.extract_strided_slice %250 {offsets = [0, 0], sizes = [32, 128], strides = [1, 1]} : vector<32x256xi32> to vector<32x128xi32>
    %252 = vector.extract_strided_slice %250 {offsets = [0, 128], sizes = [32, 128], strides = [1, 1]} : vector<32x256xi32> to vector<32x128xi32>
    %253 = arith.maxsi %251, %252 : vector<32x128xi32>
    %cst_63 = arith.constant dense<-2147483648> : vector<32xi32>
    %254 = vector.multi_reduction <maxsi>, %253, %cst_63 [1] : vector<32x128xi32> to vector<32xi32>
    %255 = vector.shape_cast %254 : vector<32xi32> to vector<32x1xi32>
    %256 = vector.broadcast %255 : vector<32x1xi32> to vector<32x256xi32>
    %257 = arith.cmpi sge, %250, %256 : vector<32x256xi32>
    %c-1_i32_64 = arith.constant -1 : i32
    %258 = vector.broadcast %c-1_i32_64 : i32 to vector<32x256xi32>
    %259 = arith.select %257, %258, %250 : vector<32x256xi1>, vector<32x256xi32>
    %260 = vector.extract_strided_slice %259 {offsets = [0, 0], sizes = [32, 128], strides = [1, 1]} : vector<32x256xi32> to vector<32x128xi32>
    %261 = vector.extract_strided_slice %259 {offsets = [0, 128], sizes = [32, 128], strides = [1, 1]} : vector<32x256xi32> to vector<32x128xi32>
    %262 = arith.maxsi %260, %261 : vector<32x128xi32>
    %cst_65 = arith.constant dense<-2147483648> : vector<32xi32>
    %263 = vector.multi_reduction <maxsi>, %262, %cst_65 [1] : vector<32x128xi32> to vector<32xi32>
    %264 = vector.shape_cast %263 : vector<32xi32> to vector<32x1xi32>
    %265 = vector.broadcast %264 : vector<32x1xi32> to vector<32x256xi32>
    %266 = arith.cmpi sge, %259, %265 : vector<32x256xi32>
    %c-1_i32_66 = arith.constant -1 : i32
    %267 = vector.broadcast %c-1_i32_66 : i32 to vector<32x256xi32>
    %268 = arith.select %266, %267, %259 : vector<32x256xi1>, vector<32x256xi32>
    %269 = vector.extract_strided_slice %268 {offsets = [0, 0], sizes = [32, 128], strides = [1, 1]} : vector<32x256xi32> to vector<32x128xi32>
    %270 = vector.extract_strided_slice %268 {offsets = [0, 128], sizes = [32, 128], strides = [1, 1]} : vector<32x256xi32> to vector<32x128xi32>
    %271 = arith.maxsi %269, %270 : vector<32x128xi32>
    %cst_67 = arith.constant dense<-2147483648> : vector<32xi32>
    %272 = vector.multi_reduction <maxsi>, %271, %cst_67 [1] : vector<32x128xi32> to vector<32xi32>
    %273 = vector.shape_cast %272 : vector<32xi32> to vector<32x1xi32>
    %274 = vector.broadcast %273 : vector<32x1xi32> to vector<32x256xi32>
    %275 = arith.cmpi sge, %268, %274 : vector<32x256xi32>
    %c-1_i32_68 = arith.constant -1 : i32
    %276 = vector.broadcast %c-1_i32_68 : i32 to vector<32x256xi32>
    %277 = arith.select %275, %276, %268 : vector<32x256xi1>, vector<32x256xi32>
    %278 = vector.extract_strided_slice %277 {offsets = [0, 0], sizes = [32, 128], strides = [1, 1]} : vector<32x256xi32> to vector<32x128xi32>
    %279 = vector.extract_strided_slice %277 {offsets = [0, 128], sizes = [32, 128], strides = [1, 1]} : vector<32x256xi32> to vector<32x128xi32>
    %280 = arith.maxsi %278, %279 : vector<32x128xi32>
    %cst_69 = arith.constant dense<-2147483648> : vector<32xi32>
    %281 = vector.multi_reduction <maxsi>, %280, %cst_69 [1] : vector<32x128xi32> to vector<32xi32>
    %282 = vector.shape_cast %281 : vector<32xi32> to vector<32x1xi32>
    %283 = vector.broadcast %282 : vector<32x1xi32> to vector<32x256xi32>
    %284 = arith.cmpi sge, %277, %283 : vector<32x256xi32>
    %c-1_i32_70 = arith.constant -1 : i32
    %285 = vector.broadcast %c-1_i32_70 : i32 to vector<32x256xi32>
    %286 = arith.select %284, %285, %277 : vector<32x256xi1>, vector<32x256xi32>
    %287 = vector.extract_strided_slice %286 {offsets = [0, 0], sizes = [32, 128], strides = [1, 1]} : vector<32x256xi32> to vector<32x128xi32>
    %288 = vector.extract_strided_slice %286 {offsets = [0, 128], sizes = [32, 128], strides = [1, 1]} : vector<32x256xi32> to vector<32x128xi32>
    %289 = arith.maxsi %287, %288 : vector<32x128xi32>
    %cst_71 = arith.constant dense<-2147483648> : vector<32xi32>
    %290 = vector.multi_reduction <maxsi>, %289, %cst_71 [1] : vector<32x128xi32> to vector<32xi32>
    %291 = vector.shape_cast %290 : vector<32xi32> to vector<32x1xi32>
    %292 = vector.broadcast %291 : vector<32x1xi32> to vector<32x256xi32>
    %293 = arith.cmpi sge, %286, %292 : vector<32x256xi32>
    %c-1_i32_72 = arith.constant -1 : i32
    %294 = vector.broadcast %c-1_i32_72 : i32 to vector<32x256xi32>
    %295 = arith.select %293, %294, %286 : vector<32x256xi1>, vector<32x256xi32>
    %296 = vector.extract_strided_slice %295 {offsets = [0, 0], sizes = [32, 128], strides = [1, 1]} : vector<32x256xi32> to vector<32x128xi32>
    %297 = vector.extract_strided_slice %295 {offsets = [0, 128], sizes = [32, 128], strides = [1, 1]} : vector<32x256xi32> to vector<32x128xi32>
    %298 = arith.maxsi %296, %297 : vector<32x128xi32>
    %cst_73 = arith.constant dense<-2147483648> : vector<32xi32>
    %299 = vector.multi_reduction <maxsi>, %298, %cst_73 [1] : vector<32x128xi32> to vector<32xi32>
    %300 = vector.shape_cast %299 : vector<32xi32> to vector<32x1xi32>
    %301 = vector.broadcast %300 : vector<32x1xi32> to vector<32x256xi32>
    %302 = arith.cmpi sge, %295, %301 : vector<32x256xi32>
    %c-1_i32_74 = arith.constant -1 : i32
    %303 = vector.broadcast %c-1_i32_74 : i32 to vector<32x256xi32>
    %304 = arith.select %302, %303, %295 : vector<32x256xi1>, vector<32x256xi32>
    %305 = vector.extract_strided_slice %304 {offsets = [0, 0], sizes = [32, 128], strides = [1, 1]} : vector<32x256xi32> to vector<32x128xi32>
    %306 = vector.extract_strided_slice %304 {offsets = [0, 128], sizes = [32, 128], strides = [1, 1]} : vector<32x256xi32> to vector<32x128xi32>
    %307 = arith.maxsi %305, %306 : vector<32x128xi32>
    %cst_75 = arith.constant dense<-2147483648> : vector<32xi32>
    %308 = vector.multi_reduction <maxsi>, %307, %cst_75 [1] : vector<32x128xi32> to vector<32xi32>
    %309 = vector.shape_cast %308 : vector<32xi32> to vector<32x1xi32>
    %310 = arith.index_cast %166 : i32 to index
    %c0_76 = arith.constant 0 : index
    %311 = vector.load %arg13[%310, %c0_76] : memref<64x256xf32, #tpu.memory_space<vmem>>, vector<32x256xf32>
    %312 = tpu.bitcast %311 : vector<32x256xf32> -> vector<32x256xi32>
    %313 = vector.broadcast %309 : vector<32x1xi32> to vector<32x256xi32>
    %314 = arith.cmpi sge, %312, %313 : vector<32x256xi32>
    %cst_77 = arith.constant 0.000000e+00 : f32
    %315 = vector.broadcast %cst_77 : f32 to vector<32x256xf32>
    %316 = arith.select %314, %311, %315 : vector<32x256xi1>, vector<32x256xf32>
    %317 = arith.index_cast %166 : i32 to index
    %c0_78 = arith.constant 0 : index
    %318 = vector.load %arg13[%317, %c0_78] : memref<64x256xf32, #tpu.memory_space<vmem>>, vector<32x256xf32>
    tpu.vector_store %arg13[%317, %c0_78], %316 {strides = array<i32>} : memref<64x256xf32, #tpu.memory_space<vmem>>, vector<32x256xf32>,
    %319 = arith.index_cast %166 : i32 to index
    %c0_79 = arith.constant 0 : index
    %320 = vector.load %arg12[%319, %c0_79] : memref<64x256xf32, #tpu.memory_space<vmem>>, vector<32x256xf32>
    tpu.vector_store %arg12[%319, %c0_79], %316 {strides = array<i32>} : memref<64x256xf32, #tpu.memory_space<vmem>>, vector<32x256xf32>,
    %c2_i32 = arith.constant 2 : i32
    %c0_80 = arith.constant 0 : index
    %c0_81 = arith.constant 0 : index
    %321 = vector.load %arg13[%c0_80, %c0_81] : memref<64x256xf32, #tpu.memory_space<vmem>>, vector<64x256xf32>
    %c0_82 = arith.constant 0 : index
    %c0_83 = arith.constant 0 : index
    %322 = vector.load %arg4[%c0_82, %c0_83] : memref<256x128xf32, #tpu.memory_space<vmem>>, vector<256x128xf32>
    %cst_84 = arith.constant dense<0.000000e+00> : vector<64x128xf32>
    %323 = tpu.matmul %321, %322, %cst_84 {dimension_numbers = #tpu.dot_dimension_numbers<[1], [0], [0], [1], [0, 0, 1, 1], [], []>} : vector<64x256xf32>, vector<256x128xf32>, vector<64x128xf32> -> vector<64x128xf32>
    %c0_85 = arith.constant 0 : index
    %c0_86 = arith.constant 0 : index
    %324 = vector.load %arg5[%c0_85, %c0_86] : memref<256x64xf32, #tpu.memory_space<vmem>>, vector<256x64xf32>
    %cst_87 = arith.constant dense<0.000000e+00> : vector<64x64xf32>
    %325 = tpu.matmul %321, %324, %cst_87 {dimension_numbers = #tpu.dot_dimension_numbers<[1], [0], [0], [1], [0, 0, 1, 1], [], []>} : vector<64x256xf32>, vector<256x64xf32>, vector<64x64xf32> -> vector<64x64xf32>
    %326 = arith.mulf %321, %321 : vector<64x256xf32>
    %c0_88 = arith.constant 0 : index
    %c0_89 = arith.constant 0 : index
    %327 = vector.load %arg6[%c0_88, %c0_89] : memref<256x64xf32, #tpu.memory_space<vmem>>, vector<256x64xf32>
    %cst_90 = arith.constant dense<0.000000e+00> : vector<64x64xf32>
    %328 = tpu.matmul %326, %327, %cst_90 {dimension_numbers = #tpu.dot_dimension_numbers<[1], [0], [0], [1], [0, 0, 1, 1], [], []>} : vector<64x256xf32>, vector<256x64xf32>, vector<64x64xf32> -> vector<64x64xf32>
    %329 = arith.mulf %325, %325 : vector<64x64xf32>
    %330 = arith.subf %329, %328 : vector<64x64xf32>
    %cst_91 = arith.constant 5.000000e-01 : f32
    %331 = vector.broadcast %cst_91 : f32 to vector<64x64xf32>
    %332 = arith.mulf %331, %330 : vector<64x64xf32>
    %c0_92 = arith.constant 0 : index
    %c0_93 = arith.constant 0 : index
    %333 = vector.load %arg7[%c0_92, %c0_93] : memref<64x64xf32, #tpu.memory_space<vmem>>, vector<64x64xf32>
    %cst_94 = arith.constant dense<0.000000e+00> : vector<64x64xf32>
    %334 = tpu.matmul %332, %333, %cst_94 {dimension_numbers = #tpu.dot_dimension_numbers<[1], [0], [0], [1], [0, 0, 1, 1], [], []>} : vector<64x64xf32>, vector<64x64xf32>, vector<64x64xf32> -> vector<64x64xf32>
    %c0_95 = arith.constant 0 : index
    %c0_96 = arith.constant 0 : index
    %335 = vector.load %arg8[%c0_95, %c0_96] : memref<1x64xf32, #tpu.memory_space<vmem>>, vector<1x64xf32>
    %336 = vector.broadcast %335 : vector<1x64xf32> to vector<64x64xf32>
    %337 = arith.addf %334, %336 : vector<64x64xf32>
    %cst_97 = arith.constant 0.000000e+00 : f32
    %338 = vector.broadcast %cst_97 : f32 to vector<64x64xf32>
    %339 = arith.maximumf %337, %338 : vector<64x64xf32>
    %c0_98 = arith.constant 0 : index
    %c0_99 = arith.constant 0 : index
    %340 = vector.load %arg9[%c0_98, %c0_99] : memref<64x128xf32, #tpu.memory_space<vmem>>, vector<64x128xf32>
    %cst_100 = arith.constant dense<0.000000e+00> : vector<64x128xf32>
    %341 = tpu.matmul %339, %340, %cst_100 {dimension_numbers = #tpu.dot_dimension_numbers<[1], [0], [0], [1], [0, 0, 1, 1], [], []>} : vector<64x64xf32>, vector<64x128xf32>, vector<64x128xf32> -> vector<64x128xf32>
    %342 = arith.addf %323, %341 : vector<64x128xf32>
    %c0_101 = arith.constant 0 : index
    %c0_102 = arith.constant 0 : index
    %343 = vector.load %arg10[%c0_101, %c0_102] : memref<1x128xf32, #tpu.memory_space<vmem>>, vector<1x128xf32>
    %344 = vector.broadcast %343 : vector<1x128xf32> to vector<64x128xf32>
    %345 = arith.addf %342, %344 : vector<64x128xf32>
    %c0_103 = arith.constant 0 : index
    %c0_104 = arith.constant 0 : index
    %346 = vector.load %arg11[%c0_103, %c0_104] : memref<64x128xf32, #tpu.memory_space<vmem>>, vector<64x128xf32>
    tpu.vector_store %arg11[%c0_103, %c0_104], %345 {strides = array<i32>} : memref<64x128xf32, #tpu.memory_space<vmem>>, vector<64x128xf32>,
    return
  }
  func.func @transform_0(%arg0: i32) -> (i32, i32) {
    %c0_i32 = arith.constant 0 : i32
    %c0_i32_0 = arith.constant 0 : i32
    return %arg0, %c0_i32 : i32, i32
  }
  func.func @transform_1(%arg0: i32) -> (i32, i32) {
    %c0_i32 = arith.constant 0 : i32
    %c0_i32_0 = arith.constant 0 : i32
    %c0_i32_1 = arith.constant 0 : i32
    return %c0_i32, %c0_i32_0 : i32, i32
  }
  func.func @transform_2(%arg0: i32) -> (i32, i32) {
    %c0_i32 = arith.constant 0 : i32
    %c0_i32_0 = arith.constant 0 : i32
    %c0_i32_1 = arith.constant 0 : i32
    return %c0_i32, %c0_i32_0 : i32, i32
  }
  func.func @transform_3(%arg0: i32) -> (i32, i32) {
    %c0_i32 = arith.constant 0 : i32
    %c0_i32_0 = arith.constant 0 : i32
    %c0_i32_1 = arith.constant 0 : i32
    return %c0_i32, %c0_i32_0 : i32, i32
  }
  func.func @transform_4(%arg0: i32) -> (i32, i32) {
    %c0_i32 = arith.constant 0 : i32
    %c0_i32_0 = arith.constant 0 : i32
    %c0_i32_1 = arith.constant 0 : i32
    return %c0_i32, %c0_i32_0 : i32, i32
  }
  func.func @transform_5(%arg0: i32) -> (i32, i32) {
    %c0_i32 = arith.constant 0 : i32
    %c0_i32_0 = arith.constant 0 : i32
    %c0_i32_1 = arith.constant 0 : i32
    return %c0_i32, %c0_i32_0 : i32, i32
  }
  func.func @transform_6(%arg0: i32) -> (i32, i32) {
    %c0_i32 = arith.constant 0 : i32
    %c0_i32_0 = arith.constant 0 : i32
    %c0_i32_1 = arith.constant 0 : i32
    return %c0_i32, %c0_i32_0 : i32, i32
  }
  func.func @transform_7(%arg0: i32) -> (i32, i32) {
    %c0_i32 = arith.constant 0 : i32
    %c0_i32_0 = arith.constant 0 : i32
    %c0_i32_1 = arith.constant 0 : i32
    return %c0_i32, %c0_i32_0 : i32, i32
  }
  func.func @transform_8(%arg0: i32) -> (i32, i32) {
    %c0_i32 = arith.constant 0 : i32
    %c0_i32_0 = arith.constant 0 : i32
    %c0_i32_1 = arith.constant 0 : i32
    return %c0_i32, %c0_i32_0 : i32, i32
  }
  func.func @transform_9(%arg0: i32) -> (i32, i32) {
    %c0_i32 = arith.constant 0 : i32
    %c0_i32_0 = arith.constant 0 : i32
    %c0_i32_1 = arith.constant 0 : i32
    return %c0_i32, %c0_i32_0 : i32, i32
  }
  func.func @transform_10(%arg0: i32) -> (i32, i32) {
    %c0_i32 = arith.constant 0 : i32
    %c0_i32_0 = arith.constant 0 : i32
    return %arg0, %c0_i32 : i32, i32
  }
  func.func @transform_11(%arg0: i32) -> (i32, i32) {
    %c0_i32 = arith.constant 0 : i32
    %c0_i32_0 = arith.constant 0 : i32
    return %arg0, %c0_i32 : i32, i32
  }
}

</mosaic_0001>

<llo_original>
// kernel: tpu_custom_call.1
$region0: #{tpu_custom_call.1}
  #allocation0 [shape = 'u32[]', space=smem, size = 0x4, offset = 0x4, fixed_abs, tag = 'smem constant byte address 0x4 - core index']
  #allocation1 [shape = 'u32[144,128]{1,0:T(1,128)}', space=vmem, size = 0x12000, scoped, tag = 'internal scratch']
  #allocation2 [shape = 'f32[64,256]{1,0:T(8,128)}', space=vmem, size = 0x10000, scoped, tag = 'scratch operand']
  %s0 = inlined_call_operand.vmem [shape: f32[256,32], index: 0, kind: input, shape index: {}]
  %s1 = inlined_call_operand.vmem [shape: f32[32,256], index: 1, kind: input, shape index: {}]
  %s2 = inlined_call_operand.vmem [shape: f32[1,256], index: 2, kind: input, shape index: {}]
  %s3 = inlined_call_operand.vmem [shape: f32[256,128], index: 3, kind: input, shape index: {}]
  %s4 = inlined_call_operand.vmem [shape: f32[256,64], index: 4, kind: input, shape index: {}]
  %s5 = inlined_call_operand.vmem [shape: f32[256,64], index: 5, kind: input, shape index: {}]
  %s6 = inlined_call_operand.vmem [shape: f32[64,64], index: 6, kind: input, shape index: {}]
  %s7 = inlined_call_operand.vmem [shape: f32[1,64], index: 7, kind: input, shape index: {}]
  %s8 = inlined_call_operand.vmem [shape: f32[64,128], index: 8, kind: input, shape index: {}]
  %s9 = inlined_call_operand.vmem [shape: f32[1,128], index: 9, kind: input, shape index: {}]
  %s10 = inlined_call_operand.hbm [shape: f32[256,128], index: 10, kind: output, shape index: {0}]
  %s11 = inlined_call_operand.hbm [shape: f32[256,256], index: 11, kind: output, shape index: {1}]
  %12 = xla_tuple %s10, %s11
  %s13 = sld [smem:[#allocation0]]
  $region81: #{tpu_custom_call.1} parent=0
    _
  %s15 = ssub.s32 1, %s13
  %s16 = scalar_select 0, %s15, %s13
  $region1: #{tpu_custom_call.1} parent=0
    #allocation3 [shape = 'u8[65536]{0}', space=vmem, size = 0x10000, scoped, tag = 'output window, operand 0']
    #allocation4 [shape = 's32[2]{0}', space=sflag, size = 0x8, scoped, tag = 'scoped memory for tpu_custom_call.1']
    #allocation5 [shape = 'u8[131072]{0}', space=vmem, size = 0x20000, scoped, tag = 'output window, operand 1']
    #allocation6 [shape = 's32[2]{0}', space=sflag, size = 0x8, scoped, tag = 'scoped memory for tpu_custom_call.1']
    %17 = vsyncpa [#allocation4], 0
    %s18 = scalar_lea.sflag [#allocation4], 1
    %19 = vsyncpa %s18, 0
    %20 = vsyncpa [#allocation6], 0
    %s21 = scalar_lea.sflag [#allocation6], 1
    %22 = vsyncpa %s21, 0
    loop: start=0, step=1, limit=6
    $region2: #{tpu_custom_call.1} parent=1 // loop_pre_header
      _
    $region3: #{tpu_custom_call.1} parent=1 // loop_header
      %s24 = sphi 0, %s28
      %p25 = scmp.ge.s32.totalorder %s24, 6
      %s34 = sphi 0, %s36
      %s37 = sphi 0, %s34
      %s38 = sphi 0, %s37
      %s54 = sphi 0, %s38
      %s58 = sphi 0, %s58
      %s60 = sphi 0, %s58
      %s61 = sphi 0, %s60
      %s75 = sphi 0, %s61
      %s79 = sphi 0, %s79
      %s81 = sphi 0, %s79
      %s82 = sphi 0, %s81
      %s96 = sphi 0, %s82
      %s100 = sphi 0, %s100
      %s102 = sphi 0, %s100
      %s103 = sphi 0, %s102
      %s117 = sphi 0, %s103
      %s121 = sphi 0, %s121
      %s123 = sphi 0, %s121
      %s124 = sphi 0, %s123
      %s138 = sphi 0, %s124
      %s142 = sphi 0, %s142
      %s144 = sphi 0, %s142
      %s145 = sphi 0, %s144
      %s159 = sphi 0, %s145
      %s163 = sphi 0, %s163
      %s165 = sphi 0, %s163
      %s166 = sphi 0, %s165
      %s180 = sphi 0, %s166
      %s184 = sphi 0, %s184
      %s186 = sphi 0, %s184
      %s187 = sphi 0, %s186
      %s201 = sphi 0, %s187
      %s205 = sphi 0, %s205
      %s207 = sphi 0, %s205
      %s208 = sphi 0, %s207
      %s222 = sphi 0, %s208
      %s226 = sphi 0, %s226
      %s228 = sphi 0, %s226
      %s229 = sphi 0, %s228
      %s243 = sphi 0, %s229
      %s249 = sphi 0, %s251
      %s252 = sphi 0, %s249
      %s253 = sphi 0, %s252
      %s269 = sphi 0, %s253
      %s275 = sphi 0, %s277
      %s278 = sphi 0, %s275
      %s279 = sphi 0, %s278
      %s295 = sphi 0, %s279
    $region4: #{tpu_custom_call.1} parent=1 // loop_header_branch
      %27 = sbr.rel (%p25) target = $region8
    $region5: #{tpu_custom_call.1} parent=1 // loop_body
      %s29 = ssub.s32 %s24, 1
      %s30 = ssub.s32 %s24, 2
      %s31 = sadd.s32 %s24, 1
      %s32 = ssub.s32 %s24, %s31
      %p33 = scmp.eq.s32.totalorder %s32, 0
      %s35 = sadd.s32 %s34, 1
      %s36 = scalar_select %p33, %s34, %s35
      %p39 = pneg %p33
      %p40 = scmp.eq.s32.totalorder %s24, 3
      %p41 = por %p39, %p40
      %p42 = scmp.ne.s32.totalorder %s34, %s37
      %p43 = scmp.eq.s32.totalorder %s24, 0
      %p44 = por %p42, %p43
      %p45 = scmp.ne.s32.totalorder %s34, %s37
      %p46 = scmp.eq.s32.totalorder %s29, 3
      %p47 = por %p45, %p46
      %p48 = scmp.ne.s32.totalorder %s37, %s38
      %p49 = scmp.eq.s32.totalorder %s29, 0
      %p50 = por %p48, %p49
      %p51 = scmp.ne.s32.totalorder %s37, %s38
      %p52 = scmp.eq.s32.totalorder %s30, 3
      %p53 = por %p51, %p52
      %p55 = scmp.ne.s32.totalorder %s38, %s54
      %p56 = scmp.eq.s32.totalorder %s30, 0
      %p57 = por %p55, %p56
      %s59 = sadd.s32 %s58, 1
      %p62 = scmp.eq.s32.totalorder %s24, 3
      %p63 = scmp.ne.s32.totalorder %s58, %s60
      %p64 = scmp.eq.s32.totalorder %s24, 0
      %p65 = por %p63, %p64
      %p66 = scmp.ne.s32.totalorder %s58, %s60
      %p67 = scmp.eq.s32.totalorder %s29, 3
      %p68 = por %p66, %p67
      %p69 = scmp.ne.s32.totalorder %s60, %s61
      %p70 = scmp.eq.s32.totalorder %s29, 0
      %p71 = por %p69, %p70
      %p72 = scmp.ne.s32.totalorder %s60, %s61
      %p73 = scmp.eq.s32.totalorder %s30, 3
      %p74 = por %p72, %p73
      %p76 = scmp.ne.s32.totalorder %s61, %s75
      %p77 = scmp.eq.s32.totalorder %s30, 0
      %p78 = por %p76, %p77
      %s80 = sadd.s32 %s79, 1
      %p83 = scmp.eq.s32.totalorder %s24, 3
      %p84 = scmp.ne.s32.totalorder %s79, %s81
      %p85 = scmp.eq.s32.totalorder %s24, 0
      %p86 = por %p84, %p85
      %p87 = scmp.ne.s32.totalorder %s79, %s81
      %p88 = scmp.eq.s32.totalorder %s29, 3
      %p89 = por %p87, %p88
      %p90 = scmp.ne.s32.totalorder %s81, %s82
      %p91 = scmp.eq.s32.totalorder %s29, 0
      %p92 = por %p90, %p91
      %p93 = scmp.ne.s32.totalorder %s81, %s82
      %p94 = scmp.eq.s32.totalorder %s30, 3
      %p95 = por %p93, %p94
      %p97 = scmp.ne.s32.totalorder %s82, %s96
      %p98 = scmp.eq.s32.totalorder %s30, 0
      %p99 = por %p97, %p98
      %s101 = sadd.s32 %s100, 1
      %p104 = scmp.eq.s32.totalorder %s24, 3
      %p105 = scmp.ne.s32.totalorder %s100, %s102
      %p106 = scmp.eq.s32.totalorder %s24, 0
      %p107 = por %p105, %p106
      %p108 = scmp.ne.s32.totalorder %s100, %s102
      %p109 = scmp.eq.s32.totalorder %s29, 3
      %p110 = por %p108, %p109
      %p111 = scmp.ne.s32.totalorder %s102, %s103
      %p112 = scmp.eq.s32.totalorder %s29, 0
      %p113 = por %p111, %p112
      %p114 = scmp.ne.s32.totalorder %s102, %s103
      %p115 = scmp.eq.s32.totalorder %s30, 3
      %p116 = por %p114, %p115
      %p118 = scmp.ne.s32.totalorder %s103, %s117
      %p119 = scmp.eq.s32.totalorder %s30, 0
      %p120 = por %p118, %p119
      %s122 = sadd.s32 %s121, 1
      %p125 = scmp.eq.s32.totalorder %s24, 3
      %p126 = scmp.ne.s32.totalorder %s121, %s123
      %p127 = scmp.eq.s32.totalorder %s24, 0
      %p128 = por %p126, %p127
      %p129 = scmp.ne.s32.totalorder %s121, %s123
      %p130 = scmp.eq.s32.totalorder %s29, 3
      %p131 = por %p129, %p130
      %p132 = scmp.ne.s32.totalorder %s123, %s124
      %p133 = scmp.eq.s32.totalorder %s29, 0
      %p134 = por %p132, %p133
      %p135 = scmp.ne.s32.totalorder %s123, %s124
      %p136 = scmp.eq.s32.totalorder %s30, 3
      %p137 = por %p135, %p136
      %p139 = scmp.ne.s32.totalorder %s124, %s138
      %p140 = scmp.eq.s32.totalorder %s30, 0
      %p141 = por %p139, %p140
      %s143 = sadd.s32 %s142, 1
      %p146 = scmp.eq.s32.totalorder %s24, 3
      %p147 = scmp.ne.s32.totalorder %s142, %s144
      %p148 = scmp.eq.s32.totalorder %s24, 0
      %p149 = por %p147, %p148
      %p150 = scmp.ne.s32.totalorder %s142, %s144
      %p151 = scmp.eq.s32.totalorder %s29, 3
      %p152 = por %p150, %p151
      %p153 = scmp.ne.s32.totalorder %s144, %s145
      %p154 = scmp.eq.s32.totalorder %s29, 0
      %p155 = por %p153, %p154
      %p156 = scmp.ne.s32.totalorder %s144, %s145
      %p157 = scmp.eq.s32.totalorder %s30, 3
      %p158 = por %p156, %p157
      %p160 = scmp.ne.s32.totalorder %s145, %s159
      %p161 = scmp.eq.s32.totalorder %s30, 0
      %p162 = por %p160, %p161
      %s164 = sadd.s32 %s163, 1
      %p167 = scmp.eq.s32.totalorder %s24, 3
      %p168 = scmp.ne.s32.totalorder %s163, %s165
      %p169 = scmp.eq.s32.totalorder %s24, 0
      %p170 = por %p168, %p169
      %p171 = scmp.ne.s32.totalorder %s163, %s165
      %p172 = scmp.eq.s32.totalorder %s29, 3
      %p173 = por %p171, %p172
      %p174 = scmp.ne.s32.totalorder %s165, %s166
      %p175 = scmp.eq.s32.totalorder %s29, 0
      %p176 = por %p174, %p175
      %p177 = scmp.ne.s32.totalorder %s165, %s166
      %p178 = scmp.eq.s32.totalorder %s30, 3
      %p179 = por %p177, %p178
      %p181 = scmp.ne.s32.totalorder %s166, %s180
      %p182 = scmp.eq.s32.totalorder %s30, 0
      %p183 = por %p181, %p182
      %s185 = sadd.s32 %s184, 1
      %p188 = scmp.eq.s32.totalorder %s24, 3
      %p189 = scmp.ne.s32.totalorder %s184, %s186
      %p190 = scmp.eq.s32.totalorder %s24, 0
      %p191 = por %p189, %p190
      %p192 = scmp.ne.s32.totalorder %s184, %s186
      %p193 = scmp.eq.s32.totalorder %s29, 3
      %p194 = por %p192, %p193
      %p195 = scmp.ne.s32.totalorder %s186, %s187
      %p196 = scmp.eq.s32.totalorder %s29, 0
      %p197 = por %p195, %p196
      %p198 = scmp.ne.s32.totalorder %s186, %s187
      %p199 = scmp.eq.s32.totalorder %s30, 3
      %p200 = por %p198, %p199
      %p202 = scmp.ne.s32.totalorder %s187, %s201
      %p203 = scmp.eq.s32.totalorder %s30, 0
      %p204 = por %p202, %p203
      %s206 = sadd.s32 %s205, 1
      %p209 = scmp.eq.s32.totalorder %s24, 3
      %p210 = scmp.ne.s32.totalorder %s205, %s207
      %p211 = scmp.eq.s32.totalorder %s24, 0
      %p212 = por %p210, %p211
      %p213 = scmp.ne.s32.totalorder %s205, %s207
      %p214 = scmp.eq.s32.totalorder %s29, 3
      %p215 = por %p213, %p214
      %p216 = scmp.ne.s32.totalorder %s207, %s208
      %p217 = scmp.eq.s32.totalorder %s29, 0
      %p218 = por %p216, %p217
      %p219 = scmp.ne.s32.totalorder %s207, %s208
      %p220 = scmp.eq.s32.totalorder %s30, 3
      %p221 = por %p219, %p220
      %p223 = scmp.ne.s32.totalorder %s208, %s222
      %p224 = scmp.eq.s32.totalorder %s30, 0
      %p225 = por %p223, %p224
      %s227 = sadd.s32 %s226, 1
      %p230 = scmp.eq.s32.totalorder %s24, 3
      %p231 = scmp.ne.s32.totalorder %s226, %s228
      %p232 = scmp.eq.s32.totalorder %s24, 0
      %p233 = por %p231, %p232
      %p234 = scmp.ne.s32.totalorder %s226, %s228
      %p235 = scmp.eq.s32.totalorder %s29, 3
      %p236 = por %p234, %p235
      %p237 = scmp.ne.s32.totalorder %s228, %s229
      %p238 = scmp.eq.s32.totalorder %s29, 0
      %p239 = por %p237, %p238
      %p240 = scmp.ne.s32.totalorder %s228, %s229
      %p241 = scmp.eq.s32.totalorder %s30, 3
      %p242 = por %p240, %p241
      %p244 = scmp.ne.s32.totalorder %s229, %s243
      %p245 = scmp.eq.s32.totalorder %s30, 0
      %p246 = por %p244, %p245
      %s247 = ssub.s32 %s24, %s31
      %p248 = scmp.eq.s32.totalorder %s247, 0
      %s250 = sadd.s32 %s249, 1
      %s251 = scalar_select %p248, %s249, %s250
      %p254 = pneg %p248
      %p255 = scmp.eq.s32.totalorder %s24, 3
      %p256 = por %p254, %p255
      %p257 = scmp.ne.s32.totalorder %s249, %s252
      %p258 = scmp.eq.s32.totalorder %s24, 0
      %p259 = por %p257, %p258
      %p260 = scmp.ne.s32.totalorder %s249, %s252
      %p261 = scmp.eq.s32.totalorder %s29, 3
      %p262 = por %p260, %p261
      %p263 = scmp.ne.s32.totalorder %s252, %s253
      %p264 = scmp.eq.s32.totalorder %s29, 0
      %p265 = por %p263, %p264
      %p266 = scmp.ne.s32.totalorder %s252, %s253
      %p267 = scmp.eq.s32.totalorder %s30, 3
      %p268 = por %p266, %p267
      %p270 = scmp.ne.s32.totalorder %s253, %s269
      %p271 = scmp.eq.s32.totalorder %s30, 0
      %p272 = por %p270, %p271
      %s273 = ssub.s32 %s24, %s31
      %p274 = scmp.eq.s32.totalorder %s273, 0
      %s276 = sadd.s32 %s275, 1
      %s277 = scalar_select %p274, %s275, %s276
      %p280 = pneg %p274
      %p281 = scmp.eq.s32.totalorder %s24, 3
      %p282 = por %p280, %p281
      %p283 = scmp.ne.s32.totalorder %s275, %s278
      %p284 = scmp.eq.s32.totalorder %s24, 0
      %p285 = por %p283, %p284
      %p286 = scmp.ne.s32.totalorder %s275, %s278
      %p287 = scmp.eq.s32.totalorder %s29, 3
      %p288 = por %p286, %p287
      %p289 = scmp.ne.s32.totalorder %s278, %s279
      %p290 = scmp.eq.s32.totalorder %s29, 0
      %p291 = por %p289, %p290
      %p292 = scmp.ne.s32.totalorder %s278, %s279
      %p293 = scmp.eq.s32.totalorder %s30, 3
      %p294 = por %p292, %p293
      %p296 = scmp.ne.s32.totalorder %s279, %s295
      %p297 = scmp.eq.s32.totalorder %s30, 0
      %p298 = por %p296, %p297
      %p299 = scmp.le.s32.totalorder 1, %s24
      %p300 = scmp.lt.s32.totalorder %s24, 5
      %p301 = pnand %p299, %p300
      %p302 = pneg %p301
      // Predicated region
      $region9: #{tpu_custom_call.1} parent=5 // pred_check
        _
      $region10: #{tpu_custom_call.1} parent=5 // pred_check_branch
        %304 = sbr.rel (%p301) target = $region12
      $region11: #{tpu_custom_call.1} parent=5 // pred_region
        %s305 = ssub.s32 %s24, 1
        // Predicated region
        $region13: #{tpu_custom_call.1} parent=11 // pred_check
          %p306 = pneg %p71
        $region14: #{tpu_custom_call.1} parent=11 // pred_check_branch
          %308 = sbr.rel (%p306) target = $region16
        $region15: #{tpu_custom_call.1} parent=11 // pred_region
          _
        $region16: #{tpu_custom_call.1} parent=11 // pred_fallthru
          _
        // Predicated region
        $region17: #{tpu_custom_call.1} parent=11 // pred_check
          %p309 = pneg %p92
        $region18: #{tpu_custom_call.1} parent=11 // pred_check_branch
          %311 = sbr.rel (%p309) target = $region20
        $region19: #{tpu_custom_call.1} parent=11 // pred_region
          _
        $region20: #{tpu_custom_call.1} parent=11 // pred_fallthru
          _
        // Predicated region
        $region21: #{tpu_custom_call.1} parent=11 // pred_check
          %p312 = pneg %p113
        $region22: #{tpu_custom_call.1} parent=11 // pred_check_branch
          %314 = sbr.rel (%p312) target = $region24
        $region23: #{tpu_custom_call.1} parent=11 // pred_region
          _
        $region24: #{tpu_custom_call.1} parent=11 // pred_fallthru
          _
        // Predicated region
        $region25: #{tpu_custom_call.1} parent=11 // pred_check
          %p315 = pneg %p134
        $region26: #{tpu_custom_call.1} parent=11 // pred_check_branch
          %317 = sbr.rel (%p315) target = $region28
        $region27: #{tpu_custom_call.1} parent=11 // pred_region
          _
        $region28: #{tpu_custom_call.1} parent=11 // pred_fallthru
          _
        // Predicated region
        $region29: #{tpu_custom_call.1} parent=11 // pred_check
          %p318 = pneg %p155
        $region30: #{tpu_custom_call.1} parent=11 // pred_check_branch
          %320 = sbr.rel (%p318) target = $region32
        $region31: #{tpu_custom_call.1} parent=11 // pred_region
          _
        $region32: #{tpu_custom_call.1} parent=11 // pred_fallthru
          _
        // Predicated region
        $region33: #{tpu_custom_call.1} parent=11 // pred_check
          %p321 = pneg %p176
        $region34: #{tpu_custom_call.1} parent=11 // pred_check_branch
          %323 = sbr.rel (%p321) target = $region36
        $region35: #{tpu_custom_call.1} parent=11 // pred_region
          _
        $region36: #{tpu_custom_call.1} parent=11 // pred_fallthru
          _
        // Predicated region
        $region37: #{tpu_custom_call.1} parent=11 // pred_check
          %p324 = pneg %p197
        $region38: #{tpu_custom_call.1} parent=11 // pred_check_branch
          %326 = sbr.rel (%p324) target = $region40
        $region39: #{tpu_custom_call.1} parent=11 // pred_region
          _
        $region40: #{tpu_custom_call.1} parent=11 // pred_fallthru
          _
        // Predicated region
        $region41: #{tpu_custom_call.1} parent=11 // pred_check
          %p327 = pneg %p218
        $region42: #{tpu_custom_call.1} parent=11 // pred_check_branch
          %329 = sbr.rel (%p327) target = $region44
        $region43: #{tpu_custom_call.1} parent=11 // pred_region
          _
        $region44: #{tpu_custom_call.1} parent=11 // pred_fallthru
          _
        // Predicated region
        $region45: #{tpu_custom_call.1} parent=11 // pred_check
          %p330 = pneg %p239
        $region46: #{tpu_custom_call.1} parent=11 // pred_check_branch
          %332 = sbr.rel (%p330) target = $region48
        $region47: #{tpu_custom_call.1} parent=11 // pred_region
          _
        $region48: #{tpu_custom_call.1} parent=11 // pred_fallthru
          _
      $region12: #{tpu_custom_call.1} parent=5 // pred_fallthru
        _
      %p333 = scmp.lt.s32.totalorder %s24, 4
      // Predicated region
      $region49: #{tpu_custom_call.1} parent=5 // pred_check
        %p334 = pneg %p333
      $region50: #{tpu_custom_call.1} parent=5 // pred_check_branch
        %336 = sbr.rel (%p334) target = $region52
      $region51: #{tpu_custom_call.1} parent=5 // pred_region
        // Predicated region
        $region53: #{tpu_custom_call.1} parent=51 // pred_check
          %p337 = pneg %p44
        $region54: #{tpu_custom_call.1} parent=51 // pred_check_branch
          %339 = sbr.rel (%p337) target = $region56
        $region55: #{tpu_custom_call.1} parent=51 // pred_region
          %s340 = smul.u32 8, %s24
          %p341 = scmp.lt.s32.totalorder %s340, 31
          %s342 = scalar_select %p341, %s340, 31
          %s343 = smul.addr %s342, 8
          %s344 = scalar_lea.vmem %s0, %s343
          %s345 = smul.u32 8, %s24
        $region56: #{tpu_custom_call.1} parent=51 // pred_fallthru
          _
      $region52: #{tpu_custom_call.1} parent=5 // pred_fallthru
        _
      %p346 = scmp.le.s32.totalorder 1, %s24
      %p347 = scmp.lt.s32.totalorder %s24, 5
      %p348 = pnand %p346, %p347
      %p349 = pneg %p348
      // Predicated region
      $region57: #{tpu_custom_call.1} parent=5 // pred_check
        _
      $region58: #{tpu_custom_call.1} parent=5 // pred_check_branch
        %351 = sbr.rel (%p348) target = $region60
      $region59: #{tpu_custom_call.1} parent=5 // pred_region
        %s352 = ssub.s32 %s24, 1
        %s353 = smul.u32 8, %s29
        %p354 = scmp.lt.s32.totalorder %s353, 31
        %s355 = scalar_select %p354, %s353, 31
        %s356 = smul.addr %s355, 8
        %s357 = scalar_lea.vmem %s0, %s356
        %p358 = pneg %p50
        %p359 = pneg %p47
        %p360 = pneg %p71
        %p361 = pneg %p68
        %p362 = pneg %p92
        %p363 = pneg %p89
        %p364 = pneg %p113
        %p365 = pneg %p110
        %p366 = pneg %p134
        %p367 = pneg %p131
        %p368 = pneg %p155
        %p369 = pneg %p152
        %p370 = pneg %p176
        %p371 = pneg %p173
        %p372 = pneg %p197
        %p373 = pneg %p194
        %p374 = pneg %p218
        %p375 = pneg %p215
        %p376 = pneg %p239
        %p377 = pneg %p236
        %p378 = pneg %p265
        %p379 = pneg %p262
        %s380 = sand.u32 %s252, 1
        %s381 = scalar_lea.sflag [#allocation4], %s380
        %s382 = sand.u32 %s252, 1
        %s383 = smul.addr %s382, 64
        %s384 = scalar_lea.vmem [#allocation3], %s383
        %p385 = pneg %p291
        %p386 = pneg %p288
        %s387 = sand.u32 %s278, 1
        %s388 = scalar_lea.sflag [#allocation6], %s387
        %s389 = sand.u32 %s278, 1
        %s390 = smul.addr %s389, 128
        %s391 = scalar_lea.vmem [#allocation5], %s390
        %s392 = smul.u32 8, %s29
        %p393 = scmp.lt.s32.totalorder %s392, 31
        %s394 = scalar_select %p393, %s392, 31
        %s395 = smul.addr %s394, 8
        %s396 = scalar_lea.vmem %s0, %s395
        %s397 = smul.u32 8, %s29
        %s398 = smul.u32 8, %s29
        %s399 = smul.u32 8, %s29
        %v400 = vld [vmem:[%s396] sm:$0xff]
        %v401 = vld [vmem:[%s396 + $0x8] sm:$0xff]
        %v402 = vld [vmem:[%s396 + $0x10] sm:$0xff]
        %v403 = vld [vmem:[%s396 + $0x18] sm:$0xff]
        %v404 = vld [vmem:[%s396 + $0x20] sm:$0xff]
        %v405 = vld [vmem:[%s396 + $0x28] sm:$0xff]
        %v406 = vld [vmem:[%s396 + $0x30] sm:$0xff]
        %v407 = vld [vmem:[%s396 + $0x38] sm:$0xff]
        %v408 = vld [vmem:[%s1] sm:$0xff]
        %v409 = vld [vmem:[%s1 + $0x8] sm:$0xff]
        %v410 = vld [vmem:[%s1 + $0x10] sm:$0xff]
        %v411 = vld [vmem:[%s1 + $0x18] sm:$0xff]
        %v412 = vld [vmem:[%s1 + $0x20] sm:$0xff]
        %v413 = vld [vmem:[%s1 + $0x28] sm:$0xff]
        %v414 = vld [vmem:[%s1 + $0x30] sm:$0xff]
        %v415 = vld [vmem:[%s1 + $0x38] sm:$0xff]
        %v416 = vld [vmem:[%s2] sm:$0x3]
        %v418 = vlaneseq
        %v419 = vshrl.u32 %v418, 7
        %v420 = vsub.s32 0, %v419
        %v421 = vrot.slane %v416, %v420
        %v422 = vlaneseq
        %v423 = vshrl.u32 %v422, 7
        %v424 = vsub.s32 1, %v423
        %v425 = vrot.slane %v416, %v424
        %vm428 = vcmask 261120
        %v430 = vsel %vm428, %v400, 0
        %v433 = vsel %vm428, %v401, 0
        %v436 = vsel %vm428, %v402, 0
        %v439 = vsel %vm428, %v403, 0
        %v442 = vsel %vm428, %v404, 0
        %v445 = vsel %vm428, %v405, 0
        %v448 = vsel %vm428, %v406, 0
        %v451 = vsel %vm428, %v407, 0
        %453 = vmatprep.subr.mxu0 %v409
        %454 = vmatpush1.msra.mxu0 %v408
        %455 = vmatprep.subr.mxu0 %v411
        %456 = vmatpush1.msra.mxu0 %v410
        %457 = vmatprep.subr.mxu0 %v413
        %458 = vmatpush1.msra.mxu0 %v412
        %459 = vmatprep.subr.mxu0 %v415
        %460 = vmatpush1.msra.mxu0 %v414
        %461 = vmatprep.subr.mxu0 0.0
        %462 = vmatpush1.msra.mxu0 0.0
        %463 = vmatprep.subr.mxu0 0.0
        %464 = vmatpush1.msra.mxu0 0.0
        %465 = vmatprep.subr.mxu0 0.0
        %466 = vmatpush1.msra.mxu0 0.0
        %467 = vmatprep.subr.mxu0 0.0
        %468 = vmatpush1.msra.mxu0 0.0
        %469 = vmatprep.subr.mxu0 0.0
        %470 = vmatpush1.msra.mxu0 0.0
        %471 = vmatprep.subr.mxu0 0.0
        %472 = vmatpush1.msra.mxu0 0.0
        %473 = vmatprep.subr.mxu0 0.0
        %474 = vmatpush1.msra.mxu0 0.0
        %475 = vmatprep.subr.mxu0 0.0
        %476 = vmatpush1.msra.mxu0 0.0
        %477 = vmatprep.subr.mxu0 0.0
        %478 = vmatpush1.msra.mxu0 0.0
        %479 = vmatprep.subr.mxu0 0.0
        %480 = vmatpush1.msra.mxu0 0.0
        %481 = vmatprep.subr.mxu0 0.0
        %482 = vmatpush1.msra.mxu0 0.0
        %483 = vmatprep.subr.mxu0 0.0
        %484 = vmatpush1.msra.mxu0 0.0
        %485 = vmatprep.subr.mxu0 0.0
        %486 = vmatpush1.msra.mxu0 0.0
        %487 = vmatprep.subr.mxu0 0.0
        %488 = vmatpush1.msra.mxu0 0.0
        %489 = vmatprep.subr.mxu0 0.0
        %490 = vmatpush1.msra.mxu0 0.0
        %491 = vmatprep.subr.mxu0 0.0
        %492 = vmatpush1.msra.mxu0 0.0
        %493 = vmatprep.subr.mxu0 0.0
        %494 = vmatpush1.msra.mxu0 0.0
        %495 = vmatprep.subr.mxu0 0.0
        %496 = vmatpush1.msra.mxu0 0.0
        %497 = vmatprep.subr.mxu0 0.0
        %498 = vmatpush1.msra.mxu0 0.0
        %499 = vmatprep.subr.mxu0 0.0
        %500 = vmatpush1.msra.mxu0 0.0
        %501 = vmatprep.subr.mxu0 0.0
        %502 = vmatpush1.msra.mxu0 0.0
        %503 = vmatprep.subr.mxu0 0.0
        %504 = vmatpush1.msra.mxu0 0.0
        %505 = vmatprep.subr.mxu0 0.0
        %506 = vmatpush1.msra.mxu0 0.0
        %507 = vmatprep.subr.mxu0 0.0
        %508 = vmatpush1.msra.mxu0 0.0
        %509 = vmatprep.subr.mxu0 0.0
        %510 = vmatpush1.msra.mxu0 0.0
        %511 = vmatprep.subr.mxu0 0.0
        %512 = vmatpush1.msra.mxu0 0.0
        %513 = vmatprep.subr.mxu0 0.0
        %514 = vmatpush1.msra.mxu0 0.0
        %515 = vmatprep.subr.mxu0 0.0
        %516 = vmatpush1.msra.mxu0 0.0
        %517 = vmatprep.mubr.f32.mxu0 0.0
        %518 = vmatmul.mubr.f32.gmra.mrb[0].mxu0 %v430
        %v519 = vpop.f32.mrb[0].mxu0
        %v520 = vadd.f32 %v421, %v519
        %v521 = vpop.f32.mrb[0].mxu0
        %v522 = vadd.f32 %v425, %v521
        %523 = vmatprep.mubr.f32.mxu0 0.0
        %524 = vmatmul.mubr.f32.gmra.mrb[0].mxu0 %v433
        %v525 = vpop.f32.mrb[0].mxu0
        %v526 = vadd.f32 %v421, %v525
        %v527 = vpop.f32.mrb[0].mxu0
        %v528 = vadd.f32 %v425, %v527
        %529 = vmatprep.mubr.f32.mxu0 0.0
        %530 = vmatmul.mubr.f32.gmra.mrb[0].mxu0 %v436
        %v531 = vpop.f32.mrb[0].mxu0
        %v532 = vadd.f32 %v421, %v531
        %v533 = vpop.f32.mrb[0].mxu0
        %v534 = vadd.f32 %v425, %v533
        %535 = vmatprep.mubr.f32.mxu0 0.0
        %536 = vmatmul.mubr.f32.gmra.mrb[0].mxu0 %v439
        %v537 = vpop.f32.mrb[0].mxu0
        %v538 = vadd.f32 %v421, %v537
        %v539 = vpop.f32.mrb[0].mxu0
        %v540 = vadd.f32 %v425, %v539
        %541 = vmatprep.mubr.f32.mxu0 0.0
        %542 = vmatmul.mubr.f32.gmra.mrb[0].mxu0 %v442
        %v543 = vpop.f32.mrb[0].mxu0
        %v544 = vadd.f32 %v421, %v543
        %v545 = vpop.f32.mrb[0].mxu0
        %v546 = vadd.f32 %v425, %v545
        %547 = vmatprep.mubr.f32.mxu0 0.0
        %548 = vmatmul.mubr.f32.gmra.mrb[0].mxu0 %v445
        %v549 = vpop.f32.mrb[0].mxu0
        %v550 = vadd.f32 %v421, %v549
        %v551 = vpop.f32.mrb[0].mxu0
        %v552 = vadd.f32 %v425, %v551
        %553 = vmatprep.mubr.f32.mxu0 0.0
        %554 = vmatmul.mubr.f32.gmra.mrb[0].mxu0 %v448
        %v555 = vpop.f32.mrb[0].mxu0
        %v556 = vadd.f32 %v421, %v555
        %v557 = vpop.f32.mrb[0].mxu0
        %v558 = vadd.f32 %v425, %v557
        %559 = vmatprep.mubr.f32.mxu0 0.0
        %560 = vmatmul.mubr.f32.gmra.mrb[0].mxu0 %v451
        %v561 = vpop.f32.mrb[0].mxu0
        %v562 = vadd.f32 %v421, %v561
        %v563 = vpop.f32.mrb[0].mxu0
        %v564 = vadd.f32 %v425, %v563
        %565 = vdwg.mxu0
        %v566 = vmax.f32 %v520, 0.0
        %v567 = vmax.f32 %v522, 0.0
        %v568 = vmax.f32 %v526, 0.0
        %v569 = vmax.f32 %v528, 0.0
        %v570 = vmax.f32 %v532, 0.0
        %v571 = vmax.f32 %v534, 0.0
        %v572 = vmax.f32 %v538, 0.0
        %v573 = vmax.f32 %v540, 0.0
        %v574 = vmax.f32 %v544, 0.0
        %v575 = vmax.f32 %v546, 0.0
        %v576 = vmax.f32 %v550, 0.0
        %v577 = vmax.f32 %v552, 0.0
        %v578 = vmax.f32 %v556, 0.0
        %v579 = vmax.f32 %v558, 0.0
        %v580 = vmax.f32 %v562, 0.0
        %v581 = vmax.f32 %v564, 0.0
        %582 = vst [vmem:[#allocation2] sm:$0xff] %v566
        %583 = vst [vmem:[#allocation2 + $0x8] sm:$0xff] %v567
        %584 = vst [vmem:[#allocation2 + $0x10] sm:$0xff] %v568
        %585 = vst [vmem:[#allocation2 + $0x18] sm:$0xff] %v569
        %586 = vst [vmem:[#allocation2 + $0x20] sm:$0xff] %v570
        %587 = vst [vmem:[#allocation2 + $0x28] sm:$0xff] %v571
        %588 = vst [vmem:[#allocation2 + $0x30] sm:$0xff] %v572
        %589 = vst [vmem:[#allocation2 + $0x38] sm:$0xff] %v573
        %590 = vst [vmem:[#allocation2 + $0x40] sm:$0xff] %v574
        %591 = vst [vmem:[#allocation2 + $0x48] sm:$0xff] %v575
        %592 = vst [vmem:[#allocation2 + $0x50] sm:$0xff] %v576
        %593 = vst [vmem:[#allocation2 + $0x58] sm:$0xff] %v577
        %594 = vst [vmem:[#allocation2 + $0x60] sm:$0xff] %v578
        %595 = vst [vmem:[#allocation2 + $0x68] sm:$0xff] %v579
        %596 = vst [vmem:[#allocation2 + $0x70] sm:$0xff] %v580
        %597 = vst [vmem:[#allocation2 + $0x78] sm:$0xff] %v581
        %s598 = smul.u32 0, 2
        %s599 = smul.addr %s598, 8
        %s600 = scalar_lea.vmem [#allocation2], %s599
        %v601 = vld [vmem:[%s600] sm:$0xff]
        %v602 = vld [vmem:[%s600 + $0x8] sm:$0xff]
        %v603 = vld [vmem:[%s600 + $0x10] sm:$0xff]
        %v604 = vld [vmem:[%s600 + $0x18] sm:$0xff]
        %v605 = vld [vmem:[%s600 + $0x20] sm:$0xff]
        %v606 = vld [vmem:[%s600 + $0x28] sm:$0xff]
        %v607 = vld [vmem:[%s600 + $0x30] sm:$0xff]
        %v608 = vld [vmem:[%s600 + $0x38] sm:$0xff]
        %vm617 = vcmp.gt.s32.totalorder %v601, %v602
        %v618 = vsel %vm617, %v601, %v602
        %vm619 = vcmp.gt.s32.totalorder %v603, %v604
        %v620 = vsel %vm619, %v603, %v604
        %vm621 = vcmp.gt.s32.totalorder %v605, %v606
        %v622 = vsel %vm621, %v605, %v606
        %vm623 = vcmp.gt.s32.totalorder %v607, %v608
        %v624 = vsel %vm623, %v607, %v608
        %v625 = vand.u32 %v618, 65535
        %v626 = vshra.s32 %v618, 16
        %v627 = vcvt.s32.f32 %v625
        %v628 = vcvt.s32.f32 %v626
        %629 = vmax.xlane.f32.xlu0 %v628
        %v630 = vpop.xlane.xlu0 %629
        %vm631 = vcmp.eq.f32.partialorder %v628, %v630
        %v632 = vsel %vm631, %v627, -inf
        %633 = vmax.xlane.f32.xlu0 %v632
        %v634 = vpop.xlane.xlu0 %633
        %v635 = vcvt.f32.s32 %v634
        %v636 = vcvt.f32.s32 %v630
        %v637 = vshll.u32 %v636, 16
        %v638 = vadd.s32 %v637, %v635
        %v639 = vand.u32 %v620, 65535
        %v640 = vshra.s32 %v620, 16
        %v641 = vcvt.s32.f32 %v639
        %v642 = vcvt.s32.f32 %v640
        %643 = vmax.xlane.f32.xlu0 %v642
        %v644 = vpop.xlane.xlu0 %643
        %vm645 = vcmp.eq.f32.partialorder %v642, %v644
        %v646 = vsel %vm645, %v641, -inf
        %647 = vmax.xlane.f32.xlu0 %v646
        %v648 = vpop.xlane.xlu0 %647
        %v649 = vcvt.f32.s32 %v648
        %v650 = vcvt.f32.s32 %v644
        %v651 = vshll.u32 %v650, 16
        %v652 = vadd.s32 %v651, %v649
        %v653 = vand.u32 %v622, 65535
        %v654 = vshra.s32 %v622, 16
        %v655 = vcvt.s32.f32 %v653
        %v656 = vcvt.s32.f32 %v654
        %657 = vmax.xlane.f32.xlu0 %v656
        %v658 = vpop.xlane.xlu0 %657
        %vm659 = vcmp.eq.f32.partialorder %v656, %v658
        %v660 = vsel %vm659, %v655, -inf
        %661 = vmax.xlane.f32.xlu0 %v660
        %v662 = vpop.xlane.xlu0 %661
        %v663 = vcvt.f32.s32 %v662
        %v664 = vcvt.f32.s32 %v658
        %v665 = vshll.u32 %v664, 16
        %v666 = vadd.s32 %v665, %v663
        %v667 = vand.u32 %v624, 65535
        %v668 = vshra.s32 %v624, 16
        %v669 = vcvt.s32.f32 %v667
        %v670 = vcvt.s32.f32 %v668
        %671 = vmax.xlane.f32.xlu0 %v670
        %v672 = vpop.xlane.xlu0 %671
        %vm673 = vcmp.eq.f32.partialorder %v670, %v672
        %v674 = vsel %vm673, %v669, -inf
        %675 = vmax.xlane.f32.xlu0 %v674
        %v676 = vpop.xlane.xlu0 %675
        %v677 = vcvt.f32.s32 %v676
        %v678 = vcvt.f32.s32 %v672
        %v679 = vshll.u32 %v678, 16
        %v680 = vadd.s32 %v679, %v677
        %vm681 = vcmp.ge.s32.totalorder %v601, %v638
        %vm682 = vcmp.ge.s32.totalorder %v602, %v638
        %vm683 = vcmp.ge.s32.totalorder %v603, %v652
        %vm684 = vcmp.ge.s32.totalorder %v604, %v652
        %vm685 = vcmp.ge.s32.totalorder %v605, %v666
        %vm686 = vcmp.ge.s32.totalorder %v606, %v666
        %vm687 = vcmp.ge.s32.totalorder %v607, %v680
        %vm688 = vcmp.ge.s32.totalorder %v608, %v680
        %v689 = vsel %vm681, 4294967295, %v601
        %v690 = vsel %vm682, 4294967295, %v602
        %v691 = vsel %vm683, 4294967295, %v603
        %v692 = vsel %vm684, 4294967295, %v604
        %v693 = vsel %vm685, 4294967295, %v605
        %v694 = vsel %vm686, 4294967295, %v606
        %v695 = vsel %vm687, 4294967295, %v607
        %v696 = vsel %vm688, 4294967295, %v608
        %vm697 = vcmp.gt.s32.totalorder %v689, %v690
        %v698 = vsel %vm697, %v689, %v690
        %vm699 = vcmp.gt.s32.totalorder %v691, %v692
        %v700 = vsel %vm699, %v691, %v692
        %vm701 = vcmp.gt.s32.totalorder %v693, %v694
        %v702 = vsel %vm701, %v693, %v694
        %vm703 = vcmp.gt.s32.totalorder %v695, %v696
        %v704 = vsel %vm703, %v695, %v696
        %v705 = vand.u32 %v698, 65535
        %v706 = vshra.s32 %v698, 16
        %v707 = vcvt.s32.f32 %v705
        %v708 = vcvt.s32.f32 %v706
        %709 = vmax.xlane.f32.xlu0 %v708
        %v710 = vpop.xlane.xlu0 %709
        %vm711 = vcmp.eq.f32.partialorder %v708, %v710
        %v712 = vsel %vm711, %v707, -inf
        %713 = vmax.xlane.f32.xlu0 %v712
        %v714 = vpop.xlane.xlu0 %713
        %v715 = vcvt.f32.s32 %v714
        %v716 = vcvt.f32.s32 %v710
        %v717 = vshll.u32 %v716, 16
        %v718 = vadd.s32 %v717, %v715
        %v719 = vand.u32 %v700, 65535
        %v720 = vshra.s32 %v700, 16
        %v721 = vcvt.s32.f32 %v719
        %v722 = vcvt.s32.f32 %v720
        %723 = vmax.xlane.f32.xlu0 %v722
        %v724 = vpop.xlane.xlu0 %723
        %vm725 = vcmp.eq.f32.partialorder %v722, %v724
        %v726 = vsel %vm725, %v721, -inf
        %727 = vmax.xlane.f32.xlu0 %v726
        %v728 = vpop.xlane.xlu0 %727
        %v729 = vcvt.f32.s32 %v728
        %v730 = vcvt.f32.s32 %v724
        %v731 = vshll.u32 %v730, 16
        %v732 = vadd.s32 %v731, %v729
        %v733 = vand.u32 %v702, 65535
        %v734 = vshra.s32 %v702, 16
        %v735 = vcvt.s32.f32 %v733
        %v736 = vcvt.s32.f32 %v734
        %737 = vmax.xlane.f32.xlu0 %v736
        %v738 = vpop.xlane.xlu0 %737
        %vm739 = vcmp.eq.f32.partialorder %v736, %v738
        %v740 = vsel %vm739, %v735, -inf
        %741 = vmax.xlane.f32.xlu0 %v740
        %v742 = vpop.xlane.xlu0 %741
        %v743 = vcvt.f32.s32 %v742
        %v744 = vcvt.f32.s32 %v738
        %v745 = vshll.u32 %v744, 16
        %v746 = vadd.s32 %v745, %v743
        %v747 = vand.u32 %v704, 65535
        %v748 = vshra.s32 %v704, 16
        %v749 = vcvt.s32.f32 %v747
        %v750 = vcvt.s32.f32 %v748
        %751 = vmax.xlane.f32.xlu0 %v750
        %v752 = vpop.xlane.xlu0 %751
        %vm753 = vcmp.eq.f32.partialorder %v750, %v752
        %v754 = vsel %vm753, %v749, -inf
        %755 = vmax.xlane.f32.xlu0 %v754
        %v756 = vpop.xlane.xlu0 %755
        %v757 = vcvt.f32.s32 %v756
        %v758 = vcvt.f32.s32 %v752
        %v759 = vshll.u32 %v758, 16
        %v760 = vadd.s32 %v759, %v757
        %vm761 = vcmp.ge.s32.totalorder %v689, %v718
        %vm762 = vcmp.ge.s32.totalorder %v690, %v718
        %vm763 = vcmp.ge.s32.totalorder %v691, %v732
        %vm764 = vcmp.ge.s32.totalorder %v692, %v732
        %vm765 = vcmp.ge.s32.totalorder %v693, %v746
        %vm766 = vcmp.ge.s32.totalorder %v694, %v746
        %vm767 = vcmp.ge.s32.totalorder %v695, %v760
        %vm768 = vcmp.ge.s32.totalorder %v696, %v760
        %v769 = vsel %vm761, 4294967295, %v689
        %v770 = vsel %vm762, 4294967295, %v690
        %v771 = vsel %vm763, 4294967295, %v691
        %v772 = vsel %vm764, 4294967295, %v692
        %v773 = vsel %vm765, 4294967295, %v693
        %v774 = vsel %vm766, 4294967295, %v694
        %v775 = vsel %vm767, 4294967295, %v695
        %v776 = vsel %vm768, 4294967295, %v696
        %vm777 = vcmp.gt.s32.totalorder %v769, %v770
        %v778 = vsel %vm777, %v769, %v770
        %vm779 = vcmp.gt.s32.totalorder %v771, %v772
        %v780 = vsel %vm779, %v771, %v772
        %vm781 = vcmp.gt.s32.totalorder %v773, %v774
        %v782 = vsel %vm781, %v773, %v774
        %vm783 = vcmp.gt.s32.totalorder %v775, %v776
        %v784 = vsel %vm783, %v775, %v776
        %v785 = vand.u32 %v778, 65535
        %v786 = vshra.s32 %v778, 16
        %v787 = vcvt.s32.f32 %v785
        %v788 = vcvt.s32.f32 %v786
        %789 = vmax.xlane.f32.xlu0 %v788
        %v790 = vpop.xlane.xlu0 %789
        %vm791 = vcmp.eq.f32.partialorder %v788, %v790
        %v792 = vsel %vm791, %v787, -inf
        %793 = vmax.xlane.f32.xlu0 %v792
        %v794 = vpop.xlane.xlu0 %793
        %v795 = vcvt.f32.s32 %v794
        %v796 = vcvt.f32.s32 %v790
        %v797 = vshll.u32 %v796, 16
        %v798 = vadd.s32 %v797, %v795
        %v799 = vand.u32 %v780, 65535
        %v800 = vshra.s32 %v780, 16
        %v801 = vcvt.s32.f32 %v799
        %v802 = vcvt.s32.f32 %v800
        %803 = vmax.xlane.f32.xlu0 %v802
        %v804 = vpop.xlane.xlu0 %803
        %vm805 = vcmp.eq.f32.partialorder %v802, %v804
        %v806 = vsel %vm805, %v801, -inf
        %807 = vmax.xlane.f32.xlu0 %v806
        %v808 = vpop.xlane.xlu0 %807
        %v809 = vcvt.f32.s32 %v808
        %v810 = vcvt.f32.s32 %v804
        %v811 = vshll.u32 %v810, 16
        %v812 = vadd.s32 %v811, %v809
        %v813 = vand.u32 %v782, 65535
        %v814 = vshra.s32 %v782, 16
        %v815 = vcvt.s32.f32 %v813
        %v816 = vcvt.s32.f32 %v814
        %817 = vmax.xlane.f32.xlu0 %v816
        %v818 = vpop.xlane.xlu0 %817
        %vm819 = vcmp.eq.f32.partialorder %v816, %v818
        %v820 = vsel %vm819, %v815, -inf
        %821 = vmax.xlane.f32.xlu0 %v820
        %v822 = vpop.xlane.xlu0 %821
        %v823 = vcvt.f32.s32 %v822
        %v824 = vcvt.f32.s32 %v818
        %v825 = vshll.u32 %v824, 16
        %v826 = vadd.s32 %v825, %v823
        %v827 = vand.u32 %v784, 65535
        %v828 = vshra.s32 %v784, 16
        %v829 = vcvt.s32.f32 %v827
        %v830 = vcvt.s32.f32 %v828
        %831 = vmax.xlane.f32.xlu0 %v830
        %v832 = vpop.xlane.xlu0 %831
        %vm833 = vcmp.eq.f32.partialorder %v830, %v832
        %v834 = vsel %vm833, %v829, -inf
        %835 = vmax.xlane.f32.xlu0 %v834
        %v836 = vpop.xlane.xlu0 %835
        %v837 = vcvt.f32.s32 %v836
        %v838 = vcvt.f32.s32 %v832
        %v839 = vshll.u32 %v838, 16
        %v840 = vadd.s32 %v839, %v837
        %vm841 = vcmp.ge.s32.totalorder %v769, %v798
        %vm842 = vcmp.ge.s32.totalorder %v770, %v798
        %vm843 = vcmp.ge.s32.totalorder %v771, %v812
        %vm844 = vcmp.ge.s32.totalorder %v772, %v812
        %vm845 = vcmp.ge.s32.totalorder %v773, %v826
        %vm846 = vcmp.ge.s32.totalorder %v774, %v826
        %vm847 = vcmp.ge.s32.totalorder %v775, %v840
        %vm848 = vcmp.ge.s32.totalorder %v776, %v840
        %v849 = vsel %vm841, 4294967295, %v769
        %v850 = vsel %vm842, 4294967295, %v770
        %v851 = vsel %vm843, 4294967295, %v771
        %v852 = vsel %vm844, 4294967295, %v772
        %v853 = vsel %vm845, 4294967295, %v773
        %v854 = vsel %vm846, 4294967295, %v774
        %v855 = vsel %vm847, 4294967295, %v775
        %v856 = vsel %vm848, 4294967295, %v776
        %vm857 = vcmp.gt.s32.totalorder %v849, %v850
        %v858 = vsel %vm857, %v849, %v850
        %vm859 = vcmp.gt.s32.totalorder %v851, %v852
        %v860 = vsel %vm859, %v851, %v852
        %vm861 = vcmp.gt.s32.totalorder %v853, %v854
        %v862 = vsel %vm861, %v853, %v854
        %vm863 = vcmp.gt.s32.totalorder %v855, %v856
        %v864 = vsel %vm863, %v855, %v856
        %v865 = vand.u32 %v858, 65535
        %v866 = vshra.s32 %v858, 16
        %v867 = vcvt.s32.f32 %v865
        %v868 = vcvt.s32.f32 %v866
        %869 = vmax.xlane.f32.xlu0 %v868
        %v870 = vpop.xlane.xlu0 %869
        %vm871 = vcmp.eq.f32.partialorder %v868, %v870
        %v872 = vsel %vm871, %v867, -inf
        %873 = vmax.xlane.f32.xlu0 %v872
        %v874 = vpop.xlane.xlu0 %873
        %v875 = vcvt.f32.s32 %v874
        %v876 = vcvt.f32.s32 %v870
        %v877 = vshll.u32 %v876, 16
        %v878 = vadd.s32 %v877, %v875
        %v879 = vand.u32 %v860, 65535
        %v880 = vshra.s32 %v860, 16
        %v881 = vcvt.s32.f32 %v879
        %v882 = vcvt.s32.f32 %v880
        %883 = vmax.xlane.f32.xlu0 %v882
        %v884 = vpop.xlane.xlu0 %883
        %vm885 = vcmp.eq.f32.partialorder %v882, %v884
        %v886 = vsel %vm885, %v881, -inf
        %887 = vmax.xlane.f32.xlu0 %v886
        %v888 = vpop.xlane.xlu0 %887
        %v889 = vcvt.f32.s32 %v888
        %v890 = vcvt.f32.s32 %v884
        %v891 = vshll.u32 %v890, 16
        %v892 = vadd.s32 %v891, %v889
        %v893 = vand.u32 %v862, 65535
        %v894 = vshra.s32 %v862, 16
        %v895 = vcvt.s32.f32 %v893
        %v896 = vcvt.s32.f32 %v894
        %897 = vmax.xlane.f32.xlu0 %v896
        %v898 = vpop.xlane.xlu0 %897
        %vm899 = vcmp.eq.f32.partialorder %v896, %v898
        %v900 = vsel %vm899, %v895, -inf
        %901 = vmax.xlane.f32.xlu0 %v900
        %v902 = vpop.xlane.xlu0 %901
        %v903 = vcvt.f32.s32 %v902
        %v904 = vcvt.f32.s32 %v898
        %v905 = vshll.u32 %v904, 16
        %v906 = vadd.s32 %v905, %v903
        %v907 = vand.u32 %v864, 65535
        %v908 = vshra.s32 %v864, 16
        %v909 = vcvt.s32.f32 %v907
        %v910 = vcvt.s32.f32 %v908
        %911 = vmax.xlane.f32.xlu0 %v910
        %v912 = vpop.xlane.xlu0 %911
        %vm913 = vcmp.eq.f32.partialorder %v910, %v912
        %v914 = vsel %vm913, %v909, -inf
        %915 = vmax.xlane.f32.xlu0 %v914
        %v916 = vpop.xlane.xlu0 %915
        %v917 = vcvt.f32.s32 %v916
        %v918 = vcvt.f32.s32 %v912
        %v919 = vshll.u32 %v918, 16
        %v920 = vadd.s32 %v919, %v917
        %vm921 = vcmp.ge.s32.totalorder %v849, %v878
        %vm922 = vcmp.ge.s32.totalorder %v850, %v878
        %vm923 = vcmp.ge.s32.totalorder %v851, %v892
        %vm924 = vcmp.ge.s32.totalorder %v852, %v892
        %vm925 = vcmp.ge.s32.totalorder %v853, %v906
        %vm926 = vcmp.ge.s32.totalorder %v854, %v906
        %vm927 = vcmp.ge.s32.totalorder %v855, %v920
        %vm928 = vcmp.ge.s32.totalorder %v856, %v920
        %v929 = vsel %vm921, 4294967295, %v849
        %v930 = vsel %vm922, 4294967295, %v850
        %v931 = vsel %vm923, 4294967295, %v851
        %v932 = vsel %vm924, 4294967295, %v852
        %v933 = vsel %vm925, 4294967295, %v853
        %v934 = vsel %vm926, 4294967295, %v854
        %v935 = vsel %vm927, 4294967295, %v855
        %v936 = vsel %vm928, 4294967295, %v856
        %vm937 = vcmp.gt.s32.totalorder %v929, %v930
        %v938 = vsel %vm937, %v929, %v930
        %vm939 = vcmp.gt.s32.totalorder %v931, %v932
        %v940 = vsel %vm939, %v931, %v932
        %vm941 = vcmp.gt.s32.totalorder %v933, %v934
        %v942 = vsel %vm941, %v933, %v934
        %vm943 = vcmp.gt.s32.totalorder %v935, %v936
        %v944 = vsel %vm943, %v935, %v936
        %v945 = vand.u32 %v938, 65535
        %v946 = vshra.s32 %v938, 16
        %v947 = vcvt.s32.f32 %v945
        %v948 = vcvt.s32.f32 %v946
        %949 = vmax.xlane.f32.xlu0 %v948
        %v950 = vpop.xlane.xlu0 %949
        %vm951 = vcmp.eq.f32.partialorder %v948, %v950
        %v952 = vsel %vm951, %v947, -inf
        %953 = vmax.xlane.f32.xlu0 %v952
        %v954 = vpop.xlane.xlu0 %953
        %v955 = vcvt.f32.s32 %v954
        %v956 = vcvt.f32.s32 %v950
        %v957 = vshll.u32 %v956, 16
        %v958 = vadd.s32 %v957, %v955
        %v959 = vand.u32 %v940, 65535
        %v960 = vshra.s32 %v940, 16
        %v961 = vcvt.s32.f32 %v959
        %v962 = vcvt.s32.f32 %v960
        %963 = vmax.xlane.f32.xlu0 %v962
        %v964 = vpop.xlane.xlu0 %963
        %vm965 = vcmp.eq.f32.partialorder %v962, %v964
        %v966 = vsel %vm965, %v961, -inf
        %967 = vmax.xlane.f32.xlu0 %v966
        %v968 = vpop.xlane.xlu0 %967
        %v969 = vcvt.f32.s32 %v968
        %v970 = vcvt.f32.s32 %v964
        %v971 = vshll.u32 %v970, 16
        %v972 = vadd.s32 %v971, %v969
        %v973 = vand.u32 %v942, 65535
        %v974 = vshra.s32 %v942, 16
        %v975 = vcvt.s32.f32 %v973
        %v976 = vcvt.s32.f32 %v974
        %977 = vmax.xlane.f32.xlu0 %v976
        %v978 = vpop.xlane.xlu0 %977
        %vm979 = vcmp.eq.f32.partialorder %v976, %v978
        %v980 = vsel %vm979, %v975, -inf
        %981 = vmax.xlane.f32.xlu0 %v980
        %v982 = vpop.xlane.xlu0 %981
        %v983 = vcvt.f32.s32 %v982
        %v984 = vcvt.f32.s32 %v978
        %v985 = vshll.u32 %v984, 16
        %v986 = vadd.s32 %v985, %v983
        %v987 = vand.u32 %v944, 65535
        %v988 = vshra.s32 %v944, 16
        %v989 = vcvt.s32.f32 %v987
        %v990 = vcvt.s32.f32 %v988
        %991 = vmax.xlane.f32.xlu0 %v990
        %v992 = vpop.xlane.xlu0 %991
        %vm993 = vcmp.eq.f32.partialorder %v990, %v992
        %v994 = vsel %vm993, %v989, -inf
        %995 = vmax.xlane.f32.xlu0 %v994
        %v996 = vpop.xlane.xlu0 %995
        %v997 = vcvt.f32.s32 %v996
        %v998 = vcvt.f32.s32 %v992
        %v999 = vshll.u32 %v998, 16
        %v1000 = vadd.s32 %v999, %v997
        %vm1001 = vcmp.ge.s32.totalorder %v929, %v958
        %vm1002 = vcmp.ge.s32.totalorder %v930, %v958
        %vm1003 = vcmp.ge.s32.totalorder %v931, %v972
        %vm1004 = vcmp.ge.s32.totalorder %v932, %v972
        %vm1005 = vcmp.ge.s32.totalorder %v933, %v986
        %vm1006 = vcmp.ge.s32.totalorder %v934, %v986
        %vm1007 = vcmp.ge.s32.totalorder %v935, %v1000
        %vm1008 = vcmp.ge.s32.totalorder %v936, %v1000
        %v1009 = vsel %vm1001, 4294967295, %v929
        %v1010 = vsel %vm1002, 4294967295, %v930
        %v1011 = vsel %vm1003, 4294967295, %v931
        %v1012 = vsel %vm1004, 4294967295, %v932
        %v1013 = vsel %vm1005, 4294967295, %v933
        %v1014 = vsel %vm1006, 4294967295, %v934
        %v1015 = vsel %vm1007, 4294967295, %v935
        %v1016 = vsel %vm1008, 4294967295, %v936
        %vm1017 = vcmp.gt.s32.totalorder %v1009, %v1010
        %v1018 = vsel %vm1017, %v1009, %v1010
        %vm1019 = vcmp.gt.s32.totalorder %v1011, %v1012
        %v1020 = vsel %vm1019, %v1011, %v1012
        %vm1021 = vcmp.gt.s32.totalorder %v1013, %v1014
        %v1022 = vsel %vm1021, %v1013, %v1014
        %vm1023 = vcmp.gt.s32.totalorder %v1015, %v1016
        %v1024 = vsel %vm1023, %v1015, %v1016
        %v1025 = vand.u32 %v1018, 65535
        %v1026 = vshra.s32 %v1018, 16
        %v1027 = vcvt.s32.f32 %v1025
        %v1028 = vcvt.s32.f32 %v1026
        %1029 = vmax.xlane.f32.xlu0 %v1028
        %v1030 = vpop.xlane.xlu0 %1029
        %vm1031 = vcmp.eq.f32.partialorder %v1028, %v1030
        %v1032 = vsel %vm1031, %v1027, -inf
        %1033 = vmax.xlane.f32.xlu0 %v1032
        %v1034 = vpop.xlane.xlu0 %1033
        %v1035 = vcvt.f32.s32 %v1034
        %v1036 = vcvt.f32.s32 %v1030
        %v1037 = vshll.u32 %v1036, 16
        %v1038 = vadd.s32 %v1037, %v1035
        %v1039 = vand.u32 %v1020, 65535
        %v1040 = vshra.s32 %v1020, 16
        %v1041 = vcvt.s32.f32 %v1039
        %v1042 = vcvt.s32.f32 %v1040
        %1043 = vmax.xlane.f32.xlu0 %v1042
        %v1044 = vpop.xlane.xlu0 %1043
        %vm1045 = vcmp.eq.f32.partialorder %v1042, %v1044
        %v1046 = vsel %vm1045, %v1041, -inf
        %1047 = vmax.xlane.f32.xlu0 %v1046
        %v1048 = vpop.xlane.xlu0 %1047
        %v1049 = vcvt.f32.s32 %v1048
        %v1050 = vcvt.f32.s32 %v1044
        %v1051 = vshll.u32 %v1050, 16
        %v1052 = vadd.s32 %v1051, %v1049
        %v1053 = vand.u32 %v1022, 65535
        %v1054 = vshra.s32 %v1022, 16
        %v1055 = vcvt.s32.f32 %v1053
        %v1056 = vcvt.s32.f32 %v1054
        %1057 = vmax.xlane.f32.xlu0 %v1056
        %v1058 = vpop.xlane.xlu0 %1057
        %vm1059 = vcmp.eq.f32.partialorder %v1056, %v1058
        %v1060 = vsel %vm1059, %v1055, -inf
        %1061 = vmax.xlane.f32.xlu0 %v1060
        %v1062 = vpop.xlane.xlu0 %1061
        %v1063 = vcvt.f32.s32 %v1062
        %v1064 = vcvt.f32.s32 %v1058
        %v1065 = vshll.u32 %v1064, 16
        %v1066 = vadd.s32 %v1065, %v1063
        %v1067 = vand.u32 %v1024, 65535
        %v1068 = vshra.s32 %v1024, 16
        %v1069 = vcvt.s32.f32 %v1067
        %v1070 = vcvt.s32.f32 %v1068
        %1071 = vmax.xlane.f32.xlu0 %v1070
        %v1072 = vpop.xlane.xlu0 %1071
        %vm1073 = vcmp.eq.f32.partialorder %v1070, %v1072
        %v1074 = vsel %vm1073, %v1069, -inf
        %1075 = vmax.xlane.f32.xlu0 %v1074
        %v1076 = vpop.xlane.xlu0 %1075
        %v1077 = vcvt.f32.s32 %v1076
        %v1078 = vcvt.f32.s32 %v1072
        %v1079 = vshll.u32 %v1078, 16
        %v1080 = vadd.s32 %v1079, %v1077
        %vm1081 = vcmp.ge.s32.totalorder %v1009, %v1038
        %vm1082 = vcmp.ge.s32.totalorder %v1010, %v1038
        %vm1083 = vcmp.ge.s32.totalorder %v1011, %v1052
        %vm1084 = vcmp.ge.s32.totalorder %v1012, %v1052
        %vm1085 = vcmp.ge.s32.totalorder %v1013, %v1066
        %vm1086 = vcmp.ge.s32.totalorder %v1014, %v1066
        %vm1087 = vcmp.ge.s32.totalorder %v1015, %v1080
        %vm1088 = vcmp.ge.s32.totalorder %v1016, %v1080
        %v1089 = vsel %vm1081, 4294967295, %v1009
        %v1090 = vsel %vm1082, 4294967295, %v1010
        %v1091 = vsel %vm1083, 4294967295, %v1011
        %v1092 = vsel %vm1084, 4294967295, %v1012
        %v1093 = vsel %vm1085, 4294967295, %v1013
        %v1094 = vsel %vm1086, 4294967295, %v1014
        %v1095 = vsel %vm1087, 4294967295, %v1015
        %v1096 = vsel %vm1088, 4294967295, %v1016
        %vm1097 = vcmp.gt.s32.totalorder %v1089, %v1090
        %v1098 = vsel %vm1097, %v1089, %v1090
        %vm1099 = vcmp.gt.s32.totalorder %v1091, %v1092
        %v1100 = vsel %vm1099, %v1091, %v1092
        %vm1101 = vcmp.gt.s32.totalorder %v1093, %v1094
        %v1102 = vsel %vm1101, %v1093, %v1094
        %vm1103 = vcmp.gt.s32.totalorder %v1095, %v1096
        %v1104 = vsel %vm1103, %v1095, %v1096
        %v1105 = vand.u32 %v1098, 65535
        %v1106 = vshra.s32 %v1098, 16
        %v1107 = vcvt.s32.f32 %v1105
        %v1108 = vcvt.s32.f32 %v1106
        %1109 = vmax.xlane.f32.xlu0 %v1108
        %v1110 = vpop.xlane.xlu0 %1109
        %vm1111 = vcmp.eq.f32.partialorder %v1108, %v1110
        %v1112 = vsel %vm1111, %v1107, -inf
        %1113 = vmax.xlane.f32.xlu0 %v1112
        %v1114 = vpop.xlane.xlu0 %1113
        %v1115 = vcvt.f32.s32 %v1114
        %v1116 = vcvt.f32.s32 %v1110
        %v1117 = vshll.u32 %v1116, 16
        %v1118 = vadd.s32 %v1117, %v1115
        %v1119 = vand.u32 %v1100, 65535
        %v1120 = vshra.s32 %v1100, 16
        %v1121 = vcvt.s32.f32 %v1119
        %v1122 = vcvt.s32.f32 %v1120
        %1123 = vmax.xlane.f32.xlu0 %v1122
        %v1124 = vpop.xlane.xlu0 %1123
        %vm1125 = vcmp.eq.f32.partialorder %v1122, %v1124
        %v1126 = vsel %vm1125, %v1121, -inf
        %1127 = vmax.xlane.f32.xlu0 %v1126
        %v1128 = vpop.xlane.xlu0 %1127
        %v1129 = vcvt.f32.s32 %v1128
        %v1130 = vcvt.f32.s32 %v1124
        %v1131 = vshll.u32 %v1130, 16
        %v1132 = vadd.s32 %v1131, %v1129
        %v1133 = vand.u32 %v1102, 65535
        %v1134 = vshra.s32 %v1102, 16
        %v1135 = vcvt.s32.f32 %v1133
        %v1136 = vcvt.s32.f32 %v1134
        %1137 = vmax.xlane.f32.xlu0 %v1136
        %v1138 = vpop.xlane.xlu0 %1137
        %vm1139 = vcmp.eq.f32.partialorder %v1136, %v1138
        %v1140 = vsel %vm1139, %v1135, -inf
        %1141 = vmax.xlane.f32.xlu0 %v1140
        %v1142 = vpop.xlane.xlu0 %1141
        %v1143 = vcvt.f32.s32 %v1142
        %v1144 = vcvt.f32.s32 %v1138
        %v1145 = vshll.u32 %v1144, 16
        %v1146 = vadd.s32 %v1145, %v1143
        %v1147 = vand.u32 %v1104, 65535
        %v1148 = vshra.s32 %v1104, 16
        %v1149 = vcvt.s32.f32 %v1147
        %v1150 = vcvt.s32.f32 %v1148
        %1151 = vmax.xlane.f32.xlu0 %v1150
        %v1152 = vpop.xlane.xlu0 %1151
        %vm1153 = vcmp.eq.f32.partialorder %v1150, %v1152
        %v1154 = vsel %vm1153, %v1149, -inf
        %1155 = vmax.xlane.f32.xlu0 %v1154
        %v1156 = vpop.xlane.xlu0 %1155
        %v1157 = vcvt.f32.s32 %v1156
        %v1158 = vcvt.f32.s32 %v1152
        %v1159 = vshll.u32 %v1158, 16
        %v1160 = vadd.s32 %v1159, %v1157
        %vm1161 = vcmp.ge.s32.totalorder %v1089, %v1118
        %vm1162 = vcmp.ge.s32.totalorder %v1090, %v1118
        %vm1163 = vcmp.ge.s32.totalorder %v1091, %v1132
        %vm1164 = vcmp.ge.s32.totalorder %v1092, %v1132
        %vm1165 = vcmp.ge.s32.totalorder %v1093, %v1146
        %vm1166 = vcmp.ge.s32.totalorder %v1094, %v1146
        %vm1167 = vcmp.ge.s32.totalorder %v1095, %v1160
        %vm1168 = vcmp.ge.s32.totalorder %v1096, %v1160
        %v1169 = vsel %vm1161, 4294967295, %v1089
        %v1170 = vsel %vm1162, 4294967295, %v1090
        %v1171 = vsel %vm1163, 4294967295, %v1091
        %v1172 = vsel %vm1164, 4294967295, %v1092
        %v1173 = vsel %vm1165, 4294967295, %v1093
        %v1174 = vsel %vm1166, 4294967295, %v1094
        %v1175 = vsel %vm1167, 4294967295, %v1095
        %v1176 = vsel %vm1168, 4294967295, %v1096
        %vm1177 = vcmp.gt.s32.totalorder %v1169, %v1170
        %v1178 = vsel %vm1177, %v1169, %v1170
        %vm1179 = vcmp.gt.s32.totalorder %v1171, %v1172
        %v1180 = vsel %vm1179, %v1171, %v1172
        %vm1181 = vcmp.gt.s32.totalorder %v1173, %v1174
        %v1182 = vsel %vm1181, %v1173, %v1174
        %vm1183 = vcmp.gt.s32.totalorder %v1175, %v1176
        %v1184 = vsel %vm1183, %v1175, %v1176
        %v1185 = vand.u32 %v1178, 65535
        %v1186 = vshra.s32 %v1178, 16
        %v1187 = vcvt.s32.f32 %v1185
        %v1188 = vcvt.s32.f32 %v1186
        %1189 = vmax.xlane.f32.xlu0 %v1188
        %v1190 = vpop.xlane.xlu0 %1189
        %vm1191 = vcmp.eq.f32.partialorder %v1188, %v1190
        %v1192 = vsel %vm1191, %v1187, -inf
        %1193 = vmax.xlane.f32.xlu0 %v1192
        %v1194 = vpop.xlane.xlu0 %1193
        %v1195 = vcvt.f32.s32 %v1194
        %v1196 = vcvt.f32.s32 %v1190
        %v1197 = vshll.u32 %v1196, 16
        %v1198 = vadd.s32 %v1197, %v1195
        %v1199 = vand.u32 %v1180, 65535
        %v1200 = vshra.s32 %v1180, 16
        %v1201 = vcvt.s32.f32 %v1199
        %v1202 = vcvt.s32.f32 %v1200
        %1203 = vmax.xlane.f32.xlu0 %v1202
        %v1204 = vpop.xlane.xlu0 %1203
        %vm1205 = vcmp.eq.f32.partialorder %v1202, %v1204
        %v1206 = vsel %vm1205, %v1201, -inf
        %1207 = vmax.xlane.f32.xlu0 %v1206
        %v1208 = vpop.xlane.xlu0 %1207
        %v1209 = vcvt.f32.s32 %v1208
        %v1210 = vcvt.f32.s32 %v1204
        %v1211 = vshll.u32 %v1210, 16
        %v1212 = vadd.s32 %v1211, %v1209
        %v1213 = vand.u32 %v1182, 65535
        %v1214 = vshra.s32 %v1182, 16
        %v1215 = vcvt.s32.f32 %v1213
        %v1216 = vcvt.s32.f32 %v1214
        %1217 = vmax.xlane.f32.xlu0 %v1216
        %v1218 = vpop.xlane.xlu0 %1217
        %vm1219 = vcmp.eq.f32.partialorder %v1216, %v1218
        %v1220 = vsel %vm1219, %v1215, -inf
        %1221 = vmax.xlane.f32.xlu0 %v1220
        %v1222 = vpop.xlane.xlu0 %1221
        %v1223 = vcvt.f32.s32 %v1222
        %v1224 = vcvt.f32.s32 %v1218
        %v1225 = vshll.u32 %v1224, 16
        %v1226 = vadd.s32 %v1225, %v1223
        %v1227 = vand.u32 %v1184, 65535
        %v1228 = vshra.s32 %v1184, 16
        %v1229 = vcvt.s32.f32 %v1227
        %v1230 = vcvt.s32.f32 %v1228
        %1231 = vmax.xlane.f32.xlu0 %v1230
        %v1232 = vpop.xlane.xlu0 %1231
        %vm1233 = vcmp.eq.f32.partialorder %v1230, %v1232
        %v1234 = vsel %vm1233, %v1229, -inf
        %1235 = vmax.xlane.f32.xlu0 %v1234
        %v1236 = vpop.xlane.xlu0 %1235
        %v1237 = vcvt.f32.s32 %v1236
        %v1238 = vcvt.f32.s32 %v1232
        %v1239 = vshll.u32 %v1238, 16
        %v1240 = vadd.s32 %v1239, %v1237
        %vm1241 = vcmp.ge.s32.totalorder %v1169, %v1198
        %vm1242 = vcmp.ge.s32.totalorder %v1170, %v1198
        %vm1243 = vcmp.ge.s32.totalorder %v1171, %v1212
        %vm1244 = vcmp.ge.s32.totalorder %v1172, %v1212
        %vm1245 = vcmp.ge.s32.totalorder %v1173, %v1226
        %vm1246 = vcmp.ge.s32.totalorder %v1174, %v1226
        %vm1247 = vcmp.ge.s32.totalorder %v1175, %v1240
        %vm1248 = vcmp.ge.s32.totalorder %v1176, %v1240
        %v1249 = vsel %vm1241, 4294967295, %v1169
        %v1250 = vsel %vm1242, 4294967295, %v1170
        %v1251 = vsel %vm1243, 4294967295, %v1171
        %v1252 = vsel %vm1244, 4294967295, %v1172
        %v1253 = vsel %vm1245, 4294967295, %v1173
        %v1254 = vsel %vm1246, 4294967295, %v1174
        %v1255 = vsel %vm1247, 4294967295, %v1175
        %v1256 = vsel %vm1248, 4294967295, %v1176
        %vm1257 = vcmp.gt.s32.totalorder %v1249, %v1250
        %v1258 = vsel %vm1257, %v1249, %v1250
        %vm1259 = vcmp.gt.s32.totalorder %v1251, %v1252
        %v1260 = vsel %vm1259, %v1251, %v1252
        %vm1261 = vcmp.gt.s32.totalorder %v1253, %v1254
        %v1262 = vsel %vm1261, %v1253, %v1254
        %vm1263 = vcmp.gt.s32.totalorder %v1255, %v1256
        %v1264 = vsel %vm1263, %v1255, %v1256
        %v1265 = vand.u32 %v1258, 65535
        %v1266 = vshra.s32 %v1258, 16
        %v1267 = vcvt.s32.f32 %v1265
        %v1268 = vcvt.s32.f32 %v1266
        %1269 = vmax.xlane.f32.xlu0 %v1268
        %v1270 = vpop.xlane.xlu0 %1269
        %vm1271 = vcmp.eq.f32.partialorder %v1268, %v1270
        %v1272 = vsel %vm1271, %v1267, -inf
        %1273 = vmax.xlane.f32.xlu0 %v1272
        %v1274 = vpop.xlane.xlu0 %1273
        %v1275 = vcvt.f32.s32 %v1274
        %v1276 = vcvt.f32.s32 %v1270
        %v1277 = vshll.u32 %v1276, 16
        %v1278 = vadd.s32 %v1277, %v1275
        %v1279 = vand.u32 %v1260, 65535
        %v1280 = vshra.s32 %v1260, 16
        %v1281 = vcvt.s32.f32 %v1279
        %v1282 = vcvt.s32.f32 %v1280
        %1283 = vmax.xlane.f32.xlu0 %v1282
        %v1284 = vpop.xlane.xlu0 %1283
        %vm1285 = vcmp.eq.f32.partialorder %v1282, %v1284
        %v1286 = vsel %vm1285, %v1281, -inf
        %1287 = vmax.xlane.f32.xlu0 %v1286
        %v1288 = vpop.xlane.xlu0 %1287
        %v1289 = vcvt.f32.s32 %v1288
        %v1290 = vcvt.f32.s32 %v1284
        %v1291 = vshll.u32 %v1290, 16
        %v1292 = vadd.s32 %v1291, %v1289
        %v1293 = vand.u32 %v1262, 65535
        %v1294 = vshra.s32 %v1262, 16
        %v1295 = vcvt.s32.f32 %v1293
        %v1296 = vcvt.s32.f32 %v1294
        %1297 = vmax.xlane.f32.xlu0 %v1296
        %v1298 = vpop.xlane.xlu0 %1297
        %vm1299 = vcmp.eq.f32.partialorder %v1296, %v1298
        %v1300 = vsel %vm1299, %v1295, -inf
        %1301 = vmax.xlane.f32.xlu0 %v1300
        %v1302 = vpop.xlane.xlu0 %1301
        %v1303 = vcvt.f32.s32 %v1302
        %v1304 = vcvt.f32.s32 %v1298
        %v1305 = vshll.u32 %v1304, 16
        %v1306 = vadd.s32 %v1305, %v1303
        %v1307 = vand.u32 %v1264, 65535
        %v1308 = vshra.s32 %v1264, 16
        %v1309 = vcvt.s32.f32 %v1307
        %v1310 = vcvt.s32.f32 %v1308
        %1311 = vmax.xlane.f32.xlu0 %v1310
        %v1312 = vpop.xlane.xlu0 %1311
        %vm1313 = vcmp.eq.f32.partialorder %v1310, %v1312
        %v1314 = vsel %vm1313, %v1309, -inf
        %1315 = vmax.xlane.f32.xlu0 %v1314
        %v1316 = vpop.xlane.xlu0 %1315
        %v1317 = vcvt.f32.s32 %v1316
        %v1318 = vcvt.f32.s32 %v1312
        %v1319 = vshll.u32 %v1318, 16
        %v1320 = vadd.s32 %v1319, %v1317
        %vm1321 = vcmp.ge.s32.totalorder %v1249, %v1278
        %vm1322 = vcmp.ge.s32.totalorder %v1250, %v1278
        %vm1323 = vcmp.ge.s32.totalorder %v1251, %v1292
        %vm1324 = vcmp.ge.s32.totalorder %v1252, %v1292
        %vm1325 = vcmp.ge.s32.totalorder %v1253, %v1306
        %vm1326 = vcmp.ge.s32.totalorder %v1254, %v1306
        %vm1327 = vcmp.ge.s32.totalorder %v1255, %v1320
        %vm1328 = vcmp.ge.s32.totalorder %v1256, %v1320
        %v1329 = vsel %vm1321, 4294967295, %v1249
        %v1330 = vsel %vm1322, 4294967295, %v1250
        %v1331 = vsel %vm1323, 4294967295, %v1251
        %v1332 = vsel %vm1324, 4294967295, %v1252
        %v1333 = vsel %vm1325, 4294967295, %v1253
        %v1334 = vsel %vm1326, 4294967295, %v1254
        %v1335 = vsel %vm1327, 4294967295, %v1255
        %v1336 = vsel %vm1328, 4294967295, %v1256
        %vm1337 = vcmp.gt.s32.totalorder %v1329, %v1330
        %v1338 = vsel %vm1337, %v1329, %v1330
        %vm1339 = vcmp.gt.s32.totalorder %v1331, %v1332
        %v1340 = vsel %vm1339, %v1331, %v1332
        %vm1341 = vcmp.gt.s32.totalorder %v1333, %v1334
        %v1342 = vsel %vm1341, %v1333, %v1334
        %vm1343 = vcmp.gt.s32.totalorder %v1335, %v1336
        %v1344 = vsel %vm1343, %v1335, %v1336
        %v1345 = vand.u32 %v1338, 65535
        %v1346 = vshra.s32 %v1338, 16
        %v1347 = vcvt.s32.f32 %v1345
        %v1348 = vcvt.s32.f32 %v1346
        %1349 = vmax.xlane.f32.xlu0 %v1348
        %v1350 = vpop.xlane.xlu0 %1349
        %vm1351 = vcmp.eq.f32.partialorder %v1348, %v1350
        %v1352 = vsel %vm1351, %v1347, -inf
        %1353 = vmax.xlane.f32.xlu0 %v1352
        %v1354 = vpop.xlane.xlu0 %1353
        %v1355 = vcvt.f32.s32 %v1354
        %v1356 = vcvt.f32.s32 %v1350
        %v1357 = vshll.u32 %v1356, 16
        %v1358 = vadd.s32 %v1357, %v1355
        %v1359 = vand.u32 %v1340, 65535
        %v1360 = vshra.s32 %v1340, 16
        %v1361 = vcvt.s32.f32 %v1359
        %v1362 = vcvt.s32.f32 %v1360
        %1363 = vmax.xlane.f32.xlu0 %v1362
        %v1364 = vpop.xlane.xlu0 %1363
        %vm1365 = vcmp.eq.f32.partialorder %v1362, %v1364
        %v1366 = vsel %vm1365, %v1361, -inf
        %1367 = vmax.xlane.f32.xlu0 %v1366
        %v1368 = vpop.xlane.xlu0 %1367
        %v1369 = vcvt.f32.s32 %v1368
        %v1370 = vcvt.f32.s32 %v1364
        %v1371 = vshll.u32 %v1370, 16
        %v1372 = vadd.s32 %v1371, %v1369
        %v1373 = vand.u32 %v1342, 65535
        %v1374 = vshra.s32 %v1342, 16
        %v1375 = vcvt.s32.f32 %v1373
        %v1376 = vcvt.s32.f32 %v1374
        %1377 = vmax.xlane.f32.xlu0 %v1376
        %v1378 = vpop.xlane.xlu0 %1377
        %vm1379 = vcmp.eq.f32.partialorder %v1376, %v1378
        %v1380 = vsel %vm1379, %v1375, -inf
        %1381 = vmax.xlane.f32.xlu0 %v1380
        %v1382 = vpop.xlane.xlu0 %1381
        %v1383 = vcvt.f32.s32 %v1382
        %v1384 = vcvt.f32.s32 %v1378
        %v1385 = vshll.u32 %v1384, 16
        %v1386 = vadd.s32 %v1385, %v1383
        %v1387 = vand.u32 %v1344, 65535
        %v1388 = vshra.s32 %v1344, 16
        %v1389 = vcvt.s32.f32 %v1387
        %v1390 = vcvt.s32.f32 %v1388
        %1391 = vmax.xlane.f32.xlu0 %v1390
        %v1392 = vpop.xlane.xlu0 %1391
        %vm1393 = vcmp.eq.f32.partialorder %v1390, %v1392
        %v1394 = vsel %vm1393, %v1389, -inf
        %1395 = vmax.xlane.f32.xlu0 %v1394
        %v1396 = vpop.xlane.xlu0 %1395
        %v1397 = vcvt.f32.s32 %v1396
        %v1398 = vcvt.f32.s32 %v1392
        %v1399 = vshll.u32 %v1398, 16
        %v1400 = vadd.s32 %v1399, %v1397
        %vm1401 = vcmp.ge.s32.totalorder %v1329, %v1358
        %vm1402 = vcmp.ge.s32.totalorder %v1330, %v1358
        %vm1403 = vcmp.ge.s32.totalorder %v1331, %v1372
        %vm1404 = vcmp.ge.s32.totalorder %v1332, %v1372
        %vm1405 = vcmp.ge.s32.totalorder %v1333, %v1386
        %vm1406 = vcmp.ge.s32.totalorder %v1334, %v1386
        %vm1407 = vcmp.ge.s32.totalorder %v1335, %v1400
        %vm1408 = vcmp.ge.s32.totalorder %v1336, %v1400
        %v1409 = vsel %vm1401, 4294967295, %v1329
        %v1410 = vsel %vm1402, 4294967295, %v1330
        %v1411 = vsel %vm1403, 4294967295, %v1331
        %v1412 = vsel %vm1404, 4294967295, %v1332
        %v1413 = vsel %vm1405, 4294967295, %v1333
        %v1414 = vsel %vm1406, 4294967295, %v1334
        %v1415 = vsel %vm1407, 4294967295, %v1335
        %v1416 = vsel %vm1408, 4294967295, %v1336
        %vm1417 = vcmp.gt.s32.totalorder %v1409, %v1410
        %v1418 = vsel %vm1417, %v1409, %v1410
        %vm1419 = vcmp.gt.s32.totalorder %v1411, %v1412
        %v1420 = vsel %vm1419, %v1411, %v1412
        %vm1421 = vcmp.gt.s32.totalorder %v1413, %v1414
        %v1422 = vsel %vm1421, %v1413, %v1414
        %vm1423 = vcmp.gt.s32.totalorder %v1415, %v1416
        %v1424 = vsel %vm1423, %v1415, %v1416
        %v1425 = vand.u32 %v1418, 65535
        %v1426 = vshra.s32 %v1418, 16
        %v1427 = vcvt.s32.f32 %v1425
        %v1428 = vcvt.s32.f32 %v1426
        %1429 = vmax.xlane.f32.xlu0 %v1428
        %v1430 = vpop.xlane.xlu0 %1429
        %vm1431 = vcmp.eq.f32.partialorder %v1428, %v1430
        %v1432 = vsel %vm1431, %v1427, -inf
        %1433 = vmax.xlane.f32.xlu0 %v1432
        %v1434 = vpop.xlane.xlu0 %1433
        %v1435 = vcvt.f32.s32 %v1434
        %v1436 = vcvt.f32.s32 %v1430
        %v1437 = vshll.u32 %v1436, 16
        %v1438 = vadd.s32 %v1437, %v1435
        %v1439 = vand.u32 %v1420, 65535
        %v1440 = vshra.s32 %v1420, 16
        %v1441 = vcvt.s32.f32 %v1439
        %v1442 = vcvt.s32.f32 %v1440
        %1443 = vmax.xlane.f32.xlu0 %v1442
        %v1444 = vpop.xlane.xlu0 %1443
        %vm1445 = vcmp.eq.f32.partialorder %v1442, %v1444
        %v1446 = vsel %vm1445, %v1441, -inf
        %1447 = vmax.xlane.f32.xlu0 %v1446
        %v1448 = vpop.xlane.xlu0 %1447
        %v1449 = vcvt.f32.s32 %v1448
        %v1450 = vcvt.f32.s32 %v1444
        %v1451 = vshll.u32 %v1450, 16
        %v1452 = vadd.s32 %v1451, %v1449
        %v1453 = vand.u32 %v1422, 65535
        %v1454 = vshra.s32 %v1422, 16
        %v1455 = vcvt.s32.f32 %v1453
        %v1456 = vcvt.s32.f32 %v1454
        %1457 = vmax.xlane.f32.xlu0 %v1456
        %v1458 = vpop.xlane.xlu0 %1457
        %vm1459 = vcmp.eq.f32.partialorder %v1456, %v1458
        %v1460 = vsel %vm1459, %v1455, -inf
        %1461 = vmax.xlane.f32.xlu0 %v1460
        %v1462 = vpop.xlane.xlu0 %1461
        %v1463 = vcvt.f32.s32 %v1462
        %v1464 = vcvt.f32.s32 %v1458
        %v1465 = vshll.u32 %v1464, 16
        %v1466 = vadd.s32 %v1465, %v1463
        %v1467 = vand.u32 %v1424, 65535
        %v1468 = vshra.s32 %v1424, 16
        %v1469 = vcvt.s32.f32 %v1467
        %v1470 = vcvt.s32.f32 %v1468
        %1471 = vmax.xlane.f32.xlu0 %v1470
        %v1472 = vpop.xlane.xlu0 %1471
        %vm1473 = vcmp.eq.f32.partialorder %v1470, %v1472
        %v1474 = vsel %vm1473, %v1469, -inf
        %1475 = vmax.xlane.f32.xlu0 %v1474
        %v1476 = vpop.xlane.xlu0 %1475
        %v1477 = vcvt.f32.s32 %v1476
        %v1478 = vcvt.f32.s32 %v1472
        %v1479 = vshll.u32 %v1478, 16
        %v1480 = vadd.s32 %v1479, %v1477
        %vm1481 = vcmp.ge.s32.totalorder %v1409, %v1438
        %vm1482 = vcmp.ge.s32.totalorder %v1410, %v1438
        %vm1483 = vcmp.ge.s32.totalorder %v1411, %v1452
        %vm1484 = vcmp.ge.s32.totalorder %v1412, %v1452
        %vm1485 = vcmp.ge.s32.totalorder %v1413, %v1466
        %vm1486 = vcmp.ge.s32.totalorder %v1414, %v1466
        %vm1487 = vcmp.ge.s32.totalorder %v1415, %v1480
        %vm1488 = vcmp.ge.s32.totalorder %v1416, %v1480
        %v1489 = vsel %vm1481, 4294967295, %v1409
        %v1490 = vsel %vm1482, 4294967295, %v1410
        %v1491 = vsel %vm1483, 4294967295, %v1411
        %v1492 = vsel %vm1484, 4294967295, %v1412
        %v1493 = vsel %vm1485, 4294967295, %v1413
        %v1494 = vsel %vm1486, 4294967295, %v1414
        %v1495 = vsel %vm1487, 4294967295, %v1415
        %v1496 = vsel %vm1488, 4294967295, %v1416
        %vm1497 = vcmp.gt.s32.totalorder %v1489, %v1490
        %v1498 = vsel %vm1497, %v1489, %v1490
        %vm1499 = vcmp.gt.s32.totalorder %v1491, %v1492
        %v1500 = vsel %vm1499, %v1491, %v1492
        %vm1501 = vcmp.gt.s32.totalorder %v1493, %v1494
        %v1502 = vsel %vm1501, %v1493, %v1494
        %vm1503 = vcmp.gt.s32.totalorder %v1495, %v1496
        %v1504 = vsel %vm1503, %v1495, %v1496
        %v1505 = vand.u32 %v1498, 65535
        %v1506 = vshra.s32 %v1498, 16
        %v1507 = vcvt.s32.f32 %v1505
        %v1508 = vcvt.s32.f32 %v1506
        %1509 = vmax.xlane.f32.xlu0 %v1508
        %v1510 = vpop.xlane.xlu0 %1509
        %vm1511 = vcmp.eq.f32.partialorder %v1508, %v1510
        %v1512 = vsel %vm1511, %v1507, -inf
        %1513 = vmax.xlane.f32.xlu0 %v1512
        %v1514 = vpop.xlane.xlu0 %1513
        %v1515 = vcvt.f32.s32 %v1514
        %v1516 = vcvt.f32.s32 %v1510
        %v1517 = vshll.u32 %v1516, 16
        %v1518 = vadd.s32 %v1517, %v1515
        %v1519 = vand.u32 %v1500, 65535
        %v1520 = vshra.s32 %v1500, 16
        %v1521 = vcvt.s32.f32 %v1519
        %v1522 = vcvt.s32.f32 %v1520
        %1523 = vmax.xlane.f32.xlu0 %v1522
        %v1524 = vpop.xlane.xlu0 %1523
        %vm1525 = vcmp.eq.f32.partialorder %v1522, %v1524
        %v1526 = vsel %vm1525, %v1521, -inf
        %1527 = vmax.xlane.f32.xlu0 %v1526
        %v1528 = vpop.xlane.xlu0 %1527
        %v1529 = vcvt.f32.s32 %v1528
        %v1530 = vcvt.f32.s32 %v1524
        %v1531 = vshll.u32 %v1530, 16
        %v1532 = vadd.s32 %v1531, %v1529
        %v1533 = vand.u32 %v1502, 65535
        %v1534 = vshra.s32 %v1502, 16
        %v1535 = vcvt.s32.f32 %v1533
        %v1536 = vcvt.s32.f32 %v1534
        %1537 = vmax.xlane.f32.xlu0 %v1536
        %v1538 = vpop.xlane.xlu0 %1537
        %vm1539 = vcmp.eq.f32.partialorder %v1536, %v1538
        %v1540 = vsel %vm1539, %v1535, -inf
        %1541 = vmax.xlane.f32.xlu0 %v1540
        %v1542 = vpop.xlane.xlu0 %1541
        %v1543 = vcvt.f32.s32 %v1542
        %v1544 = vcvt.f32.s32 %v1538
        %v1545 = vshll.u32 %v1544, 16
        %v1546 = vadd.s32 %v1545, %v1543
        %v1547 = vand.u32 %v1504, 65535
        %v1548 = vshra.s32 %v1504, 16
        %v1549 = vcvt.s32.f32 %v1547
        %v1550 = vcvt.s32.f32 %v1548
        %1551 = vmax.xlane.f32.xlu0 %v1550
        %v1552 = vpop.xlane.xlu0 %1551
        %vm1553 = vcmp.eq.f32.partialorder %v1550, %v1552
        %v1554 = vsel %vm1553, %v1549, -inf
        %1555 = vmax.xlane.f32.xlu0 %v1554
        %v1556 = vpop.xlane.xlu0 %1555
        %v1557 = vcvt.f32.s32 %v1556
        %v1558 = vcvt.f32.s32 %v1552
        %v1559 = vshll.u32 %v1558, 16
        %v1560 = vadd.s32 %v1559, %v1557
        %vm1561 = vcmp.ge.s32.totalorder %v1489, %v1518
        %vm1562 = vcmp.ge.s32.totalorder %v1490, %v1518
        %vm1563 = vcmp.ge.s32.totalorder %v1491, %v1532
        %vm1564 = vcmp.ge.s32.totalorder %v1492, %v1532
        %vm1565 = vcmp.ge.s32.totalorder %v1493, %v1546
        %vm1566 = vcmp.ge.s32.totalorder %v1494, %v1546
        %vm1567 = vcmp.ge.s32.totalorder %v1495, %v1560
        %vm1568 = vcmp.ge.s32.totalorder %v1496, %v1560
        %v1569 = vsel %vm1561, 4294967295, %v1489
        %v1570 = vsel %vm1562, 4294967295, %v1490
        %v1571 = vsel %vm1563, 4294967295, %v1491
        %v1572 = vsel %vm1564, 4294967295, %v1492
        %v1573 = vsel %vm1565, 4294967295, %v1493
        %v1574 = vsel %vm1566, 4294967295, %v1494
        %v1575 = vsel %vm1567, 4294967295, %v1495
        %v1576 = vsel %vm1568, 4294967295, %v1496
        %vm1577 = vcmp.gt.s32.totalorder %v1569, %v1570
        %v1578 = vsel %vm1577, %v1569, %v1570
        %vm1579 = vcmp.gt.s32.totalorder %v1571, %v1572
        %v1580 = vsel %vm1579, %v1571, %v1572
        %vm1581 = vcmp.gt.s32.totalorder %v1573, %v1574
        %v1582 = vsel %vm1581, %v1573, %v1574
        %vm1583 = vcmp.gt.s32.totalorder %v1575, %v1576
        %v1584 = vsel %vm1583, %v1575, %v1576
        %v1585 = vand.u32 %v1578, 65535
        %v1586 = vshra.s32 %v1578, 16
        %v1587 = vcvt.s32.f32 %v1585
        %v1588 = vcvt.s32.f32 %v1586
        %1589 = vmax.xlane.f32.xlu0 %v1588
        %v1590 = vpop.xlane.xlu0 %1589
        %vm1591 = vcmp.eq.f32.partialorder %v1588, %v1590
        %v1592 = vsel %vm1591, %v1587, -inf
        %1593 = vmax.xlane.f32.xlu0 %v1592
        %v1594 = vpop.xlane.xlu0 %1593
        %v1595 = vcvt.f32.s32 %v1594
        %v1596 = vcvt.f32.s32 %v1590
        %v1597 = vshll.u32 %v1596, 16
        %v1598 = vadd.s32 %v1597, %v1595
        %v1599 = vand.u32 %v1580, 65535
        %v1600 = vshra.s32 %v1580, 16
        %v1601 = vcvt.s32.f32 %v1599
        %v1602 = vcvt.s32.f32 %v1600
        %1603 = vmax.xlane.f32.xlu0 %v1602
        %v1604 = vpop.xlane.xlu0 %1603
        %vm1605 = vcmp.eq.f32.partialorder %v1602, %v1604
        %v1606 = vsel %vm1605, %v1601, -inf
        %1607 = vmax.xlane.f32.xlu0 %v1606
        %v1608 = vpop.xlane.xlu0 %1607
        %v1609 = vcvt.f32.s32 %v1608
        %v1610 = vcvt.f32.s32 %v1604
        %v1611 = vshll.u32 %v1610, 16
        %v1612 = vadd.s32 %v1611, %v1609
        %v1613 = vand.u32 %v1582, 65535
        %v1614 = vshra.s32 %v1582, 16
        %v1615 = vcvt.s32.f32 %v1613
        %v1616 = vcvt.s32.f32 %v1614
        %1617 = vmax.xlane.f32.xlu0 %v1616
        %v1618 = vpop.xlane.xlu0 %1617
        %vm1619 = vcmp.eq.f32.partialorder %v1616, %v1618
        %v1620 = vsel %vm1619, %v1615, -inf
        %1621 = vmax.xlane.f32.xlu0 %v1620
        %v1622 = vpop.xlane.xlu0 %1621
        %v1623 = vcvt.f32.s32 %v1622
        %v1624 = vcvt.f32.s32 %v1618
        %v1625 = vshll.u32 %v1624, 16
        %v1626 = vadd.s32 %v1625, %v1623
        %v1627 = vand.u32 %v1584, 65535
        %v1628 = vshra.s32 %v1584, 16
        %v1629 = vcvt.s32.f32 %v1627
        %v1630 = vcvt.s32.f32 %v1628
        %1631 = vmax.xlane.f32.xlu0 %v1630
        %v1632 = vpop.xlane.xlu0 %1631
        %vm1633 = vcmp.eq.f32.partialorder %v1630, %v1632
        %v1634 = vsel %vm1633, %v1629, -inf
        %1635 = vmax.xlane.f32.xlu0 %v1634
        %v1636 = vpop.xlane.xlu0 %1635
        %v1637 = vcvt.f32.s32 %v1636
        %v1638 = vcvt.f32.s32 %v1632
        %v1639 = vshll.u32 %v1638, 16
        %v1640 = vadd.s32 %v1639, %v1637
        %vm1641 = vcmp.ge.s32.totalorder %v1569, %v1598
        %vm1642 = vcmp.ge.s32.totalorder %v1570, %v1598
        %vm1643 = vcmp.ge.s32.totalorder %v1571, %v1612
        %vm1644 = vcmp.ge.s32.totalorder %v1572, %v1612
        %vm1645 = vcmp.ge.s32.totalorder %v1573, %v1626
        %vm1646 = vcmp.ge.s32.totalorder %v1574, %v1626
        %vm1647 = vcmp.ge.s32.totalorder %v1575, %v1640
        %vm1648 = vcmp.ge.s32.totalorder %v1576, %v1640
        %v1649 = vsel %vm1641, 4294967295, %v1569
        %v1650 = vsel %vm1642, 4294967295, %v1570
        %v1651 = vsel %vm1643, 4294967295, %v1571
        %v1652 = vsel %vm1644, 4294967295, %v1572
        %v1653 = vsel %vm1645, 4294967295, %v1573
        %v1654 = vsel %vm1646, 4294967295, %v1574
        %v1655 = vsel %vm1647, 4294967295, %v1575
        %v1656 = vsel %vm1648, 4294967295, %v1576
        %vm1657 = vcmp.gt.s32.totalorder %v1649, %v1650
        %v1658 = vsel %vm1657, %v1649, %v1650
        %vm1659 = vcmp.gt.s32.totalorder %v1651, %v1652
        %v1660 = vsel %vm1659, %v1651, %v1652
        %vm1661 = vcmp.gt.s32.totalorder %v1653, %v1654
        %v1662 = vsel %vm1661, %v1653, %v1654
        %vm1663 = vcmp.gt.s32.totalorder %v1655, %v1656
        %v1664 = vsel %vm1663, %v1655, %v1656
        %v1665 = vand.u32 %v1658, 65535
        %v1666 = vshra.s32 %v1658, 16
        %v1667 = vcvt.s32.f32 %v1665
        %v1668 = vcvt.s32.f32 %v1666
        %1669 = vmax.xlane.f32.xlu0 %v1668
        %v1670 = vpop.xlane.xlu0 %1669
        %vm1671 = vcmp.eq.f32.partialorder %v1668, %v1670
        %v1672 = vsel %vm1671, %v1667, -inf
        %1673 = vmax.xlane.f32.xlu0 %v1672
        %v1674 = vpop.xlane.xlu0 %1673
        %v1675 = vcvt.f32.s32 %v1674
        %v1676 = vcvt.f32.s32 %v1670
        %v1677 = vshll.u32 %v1676, 16
        %v1678 = vadd.s32 %v1677, %v1675
        %v1679 = vand.u32 %v1660, 65535
        %v1680 = vshra.s32 %v1660, 16
        %v1681 = vcvt.s32.f32 %v1679
        %v1682 = vcvt.s32.f32 %v1680
        %1683 = vmax.xlane.f32.xlu0 %v1682
        %v1684 = vpop.xlane.xlu0 %1683
        %vm1685 = vcmp.eq.f32.partialorder %v1682, %v1684
        %v1686 = vsel %vm1685, %v1681, -inf
        %1687 = vmax.xlane.f32.xlu0 %v1686
        %v1688 = vpop.xlane.xlu0 %1687
        %v1689 = vcvt.f32.s32 %v1688
        %v1690 = vcvt.f32.s32 %v1684
        %v1691 = vshll.u32 %v1690, 16
        %v1692 = vadd.s32 %v1691, %v1689
        %v1693 = vand.u32 %v1662, 65535
        %v1694 = vshra.s32 %v1662, 16
        %v1695 = vcvt.s32.f32 %v1693
        %v1696 = vcvt.s32.f32 %v1694
        %1697 = vmax.xlane.f32.xlu0 %v1696
        %v1698 = vpop.xlane.xlu0 %1697
        %vm1699 = vcmp.eq.f32.partialorder %v1696, %v1698
        %v1700 = vsel %vm1699, %v1695, -inf
        %1701 = vmax.xlane.f32.xlu0 %v1700
        %v1702 = vpop.xlane.xlu0 %1701
        %v1703 = vcvt.f32.s32 %v1702
        %v1704 = vcvt.f32.s32 %v1698
        %v1705 = vshll.u32 %v1704, 16
        %v1706 = vadd.s32 %v1705, %v1703
        %v1707 = vand.u32 %v1664, 65535
        %v1708 = vshra.s32 %v1664, 16
        %v1709 = vcvt.s32.f32 %v1707
        %v1710 = vcvt.s32.f32 %v1708
        %1711 = vmax.xlane.f32.xlu0 %v1710
        %v1712 = vpop.xlane.xlu0 %1711
        %vm1713 = vcmp.eq.f32.partialorder %v1710, %v1712
        %v1714 = vsel %vm1713, %v1709, -inf
        %1715 = vmax.xlane.f32.xlu0 %v1714
        %v1716 = vpop.xlane.xlu0 %1715
        %v1717 = vcvt.f32.s32 %v1716
        %v1718 = vcvt.f32.s32 %v1712
        %v1719 = vshll.u32 %v1718, 16
        %v1720 = vadd.s32 %v1719, %v1717
        %vm1721 = vcmp.ge.s32.totalorder %v1649, %v1678
        %vm1722 = vcmp.ge.s32.totalorder %v1650, %v1678
        %vm1723 = vcmp.ge.s32.totalorder %v1651, %v1692
        %vm1724 = vcmp.ge.s32.totalorder %v1652, %v1692
        %vm1725 = vcmp.ge.s32.totalorder %v1653, %v1706
        %vm1726 = vcmp.ge.s32.totalorder %v1654, %v1706
        %vm1727 = vcmp.ge.s32.totalorder %v1655, %v1720
        %vm1728 = vcmp.ge.s32.totalorder %v1656, %v1720
        %v1729 = vsel %vm1721, 4294967295, %v1649
        %v1730 = vsel %vm1722, 4294967295, %v1650
        %v1731 = vsel %vm1723, 4294967295, %v1651
        %v1732 = vsel %vm1724, 4294967295, %v1652
        %v1733 = vsel %vm1725, 4294967295, %v1653
        %v1734 = vsel %vm1726, 4294967295, %v1654
        %v1735 = vsel %vm1727, 4294967295, %v1655
        %v1736 = vsel %vm1728, 4294967295, %v1656
        %vm1737 = vcmp.gt.s32.totalorder %v1729, %v1730
        %v1738 = vsel %vm1737, %v1729, %v1730
        %vm1739 = vcmp.gt.s32.totalorder %v1731, %v1732
        %v1740 = vsel %vm1739, %v1731, %v1732
        %vm1741 = vcmp.gt.s32.totalorder %v1733, %v1734
        %v1742 = vsel %vm1741, %v1733, %v1734
        %vm1743 = vcmp.gt.s32.totalorder %v1735, %v1736
        %v1744 = vsel %vm1743, %v1735, %v1736
        %v1745 = vand.u32 %v1738, 65535
        %v1746 = vshra.s32 %v1738, 16
        %v1747 = vcvt.s32.f32 %v1745
        %v1748 = vcvt.s32.f32 %v1746
        %1749 = vmax.xlane.f32.xlu0 %v1748
        %v1750 = vpop.xlane.xlu0 %1749
        %vm1751 = vcmp.eq.f32.partialorder %v1748, %v1750
        %v1752 = vsel %vm1751, %v1747, -inf
        %1753 = vmax.xlane.f32.xlu0 %v1752
        %v1754 = vpop.xlane.xlu0 %1753
        %v1755 = vcvt.f32.s32 %v1754
        %v1756 = vcvt.f32.s32 %v1750
        %v1757 = vshll.u32 %v1756, 16
        %v1758 = vadd.s32 %v1757, %v1755
        %v1759 = vand.u32 %v1740, 65535
        %v1760 = vshra.s32 %v1740, 16
        %v1761 = vcvt.s32.f32 %v1759
        %v1762 = vcvt.s32.f32 %v1760
        %1763 = vmax.xlane.f32.xlu0 %v1762
        %v1764 = vpop.xlane.xlu0 %1763
        %vm1765 = vcmp.eq.f32.partialorder %v1762, %v1764
        %v1766 = vsel %vm1765, %v1761, -inf
        %1767 = vmax.xlane.f32.xlu0 %v1766
        %v1768 = vpop.xlane.xlu0 %1767
        %v1769 = vcvt.f32.s32 %v1768
        %v1770 = vcvt.f32.s32 %v1764
        %v1771 = vshll.u32 %v1770, 16
        %v1772 = vadd.s32 %v1771, %v1769
        %v1773 = vand.u32 %v1742, 65535
        %v1774 = vshra.s32 %v1742, 16
        %v1775 = vcvt.s32.f32 %v1773
        %v1776 = vcvt.s32.f32 %v1774
        %1777 = vmax.xlane.f32.xlu0 %v1776
        %v1778 = vpop.xlane.xlu0 %1777
        %vm1779 = vcmp.eq.f32.partialorder %v1776, %v1778
        %v1780 = vsel %vm1779, %v1775, -inf
        %1781 = vmax.xlane.f32.xlu0 %v1780
        %v1782 = vpop.xlane.xlu0 %1781
        %v1783 = vcvt.f32.s32 %v1782
        %v1784 = vcvt.f32.s32 %v1778
        %v1785 = vshll.u32 %v1784, 16
        %v1786 = vadd.s32 %v1785, %v1783
        %v1787 = vand.u32 %v1744, 65535
        %v1788 = vshra.s32 %v1744, 16
        %v1789 = vcvt.s32.f32 %v1787
        %v1790 = vcvt.s32.f32 %v1788
        %1791 = vmax.xlane.f32.xlu0 %v1790
        %v1792 = vpop.xlane.xlu0 %1791
        %vm1793 = vcmp.eq.f32.partialorder %v1790, %v1792
        %v1794 = vsel %vm1793, %v1789, -inf
        %1795 = vmax.xlane.f32.xlu0 %v1794
        %v1796 = vpop.xlane.xlu0 %1795
        %v1797 = vcvt.f32.s32 %v1796
        %v1798 = vcvt.f32.s32 %v1792
        %v1799 = vshll.u32 %v1798, 16
        %v1800 = vadd.s32 %v1799, %v1797
        %vm1801 = vcmp.ge.s32.totalorder %v1729, %v1758
        %vm1802 = vcmp.ge.s32.totalorder %v1730, %v1758
        %vm1803 = vcmp.ge.s32.totalorder %v1731, %v1772
        %vm1804 = vcmp.ge.s32.totalorder %v1732, %v1772
        %vm1805 = vcmp.ge.s32.totalorder %v1733, %v1786
        %vm1806 = vcmp.ge.s32.totalorder %v1734, %v1786
        %vm1807 = vcmp.ge.s32.totalorder %v1735, %v1800
        %vm1808 = vcmp.ge.s32.totalorder %v1736, %v1800
        %v1809 = vsel %vm1801, 4294967295, %v1729
        %v1810 = vsel %vm1802, 4294967295, %v1730
        %v1811 = vsel %vm1803, 4294967295, %v1731
        %v1812 = vsel %vm1804, 4294967295, %v1732
        %v1813 = vsel %vm1805, 4294967295, %v1733
        %v1814 = vsel %vm1806, 4294967295, %v1734
        %v1815 = vsel %vm1807, 4294967295, %v1735
        %v1816 = vsel %vm1808, 4294967295, %v1736
        %vm1817 = vcmp.gt.s32.totalorder %v1809, %v1810
        %v1818 = vsel %vm1817, %v1809, %v1810
        %vm1819 = vcmp.gt.s32.totalorder %v1811, %v1812
        %v1820 = vsel %vm1819, %v1811, %v1812
        %vm1821 = vcmp.gt.s32.totalorder %v1813, %v1814
        %v1822 = vsel %vm1821, %v1813, %v1814
        %vm1823 = vcmp.gt.s32.totalorder %v1815, %v1816
        %v1824 = vsel %vm1823, %v1815, %v1816
        %v1825 = vand.u32 %v1818, 65535
        %v1826 = vshra.s32 %v1818, 16
        %v1827 = vcvt.s32.f32 %v1825
        %v1828 = vcvt.s32.f32 %v1826
        %1829 = vmax.xlane.f32.xlu0 %v1828
        %v1830 = vpop.xlane.xlu0 %1829
        %vm1831 = vcmp.eq.f32.partialorder %v1828, %v1830
        %v1832 = vsel %vm1831, %v1827, -inf
        %1833 = vmax.xlane.f32.xlu0 %v1832
        %v1834 = vpop.xlane.xlu0 %1833
        %v1835 = vcvt.f32.s32 %v1834
        %v1836 = vcvt.f32.s32 %v1830
        %v1837 = vshll.u32 %v1836, 16
        %v1838 = vadd.s32 %v1837, %v1835
        %v1839 = vand.u32 %v1820, 65535
        %v1840 = vshra.s32 %v1820, 16
        %v1841 = vcvt.s32.f32 %v1839
        %v1842 = vcvt.s32.f32 %v1840
        %1843 = vmax.xlane.f32.xlu0 %v1842
        %v1844 = vpop.xlane.xlu0 %1843
        %vm1845 = vcmp.eq.f32.partialorder %v1842, %v1844
        %v1846 = vsel %vm1845, %v1841, -inf
        %1847 = vmax.xlane.f32.xlu0 %v1846
        %v1848 = vpop.xlane.xlu0 %1847
        %v1849 = vcvt.f32.s32 %v1848
        %v1850 = vcvt.f32.s32 %v1844
        %v1851 = vshll.u32 %v1850, 16
        %v1852 = vadd.s32 %v1851, %v1849
        %v1853 = vand.u32 %v1822, 65535
        %v1854 = vshra.s32 %v1822, 16
        %v1855 = vcvt.s32.f32 %v1853
        %v1856 = vcvt.s32.f32 %v1854
        %1857 = vmax.xlane.f32.xlu0 %v1856
        %v1858 = vpop.xlane.xlu0 %1857
        %vm1859 = vcmp.eq.f32.partialorder %v1856, %v1858
        %v1860 = vsel %vm1859, %v1855, -inf
        %1861 = vmax.xlane.f32.xlu0 %v1860
        %v1862 = vpop.xlane.xlu0 %1861
        %v1863 = vcvt.f32.s32 %v1862
        %v1864 = vcvt.f32.s32 %v1858
        %v1865 = vshll.u32 %v1864, 16
        %v1866 = vadd.s32 %v1865, %v1863
        %v1867 = vand.u32 %v1824, 65535
        %v1868 = vshra.s32 %v1824, 16
        %v1869 = vcvt.s32.f32 %v1867
        %v1870 = vcvt.s32.f32 %v1868
        %1871 = vmax.xlane.f32.xlu0 %v1870
        %v1872 = vpop.xlane.xlu0 %1871
        %vm1873 = vcmp.eq.f32.partialorder %v1870, %v1872
        %v1874 = vsel %vm1873, %v1869, -inf
        %1875 = vmax.xlane.f32.xlu0 %v1874
        %v1876 = vpop.xlane.xlu0 %1875
        %v1877 = vcvt.f32.s32 %v1876
        %v1878 = vcvt.f32.s32 %v1872
        %v1879 = vshll.u32 %v1878, 16
        %v1880 = vadd.s32 %v1879, %v1877
        %vm1881 = vcmp.ge.s32.totalorder %v601, %v1838
        %vm1882 = vcmp.ge.s32.totalorder %v602, %v1838
        %vm1883 = vcmp.ge.s32.totalorder %v603, %v1852
        %vm1884 = vcmp.ge.s32.totalorder %v604, %v1852
        %vm1885 = vcmp.ge.s32.totalorder %v605, %v1866
        %vm1886 = vcmp.ge.s32.totalorder %v606, %v1866
        %vm1887 = vcmp.ge.s32.totalorder %v607, %v1880
        %vm1888 = vcmp.ge.s32.totalorder %v608, %v1880
        %v1889 = vsel %vm1881, %v601, 0.0
        %v1890 = vsel %vm1882, %v602, 0.0
        %v1891 = vsel %vm1883, %v603, 0.0
        %v1892 = vsel %vm1884, %v604, 0.0
        %v1893 = vsel %vm1885, %v605, 0.0
        %v1894 = vsel %vm1886, %v606, 0.0
        %v1895 = vsel %vm1887, %v607, 0.0
        %v1896 = vsel %vm1888, %v608, 0.0
        %1897 = vst [vmem:[%s600] sm:$0xff] %v1889
        %1898 = vst [vmem:[%s600 + $0x8] sm:$0xff] %v1890
        %1899 = vst [vmem:[%s600 + $0x10] sm:$0xff] %v1891
        %1900 = vst [vmem:[%s600 + $0x18] sm:$0xff] %v1892
        %1901 = vst [vmem:[%s600 + $0x20] sm:$0xff] %v1893
        %1902 = vst [vmem:[%s600 + $0x28] sm:$0xff] %v1894
        %1903 = vst [vmem:[%s600 + $0x30] sm:$0xff] %v1895
        %1904 = vst [vmem:[%s600 + $0x38] sm:$0xff] %v1896
        %s1905 = smul.addr %s598, 8
        %s1906 = scalar_lea.vmem %s391, %s1905 [#allocation5]
        %1907 = vst [vmem:[%s1906] sm:$0xff] %v1889
        %1908 = vst [vmem:[%s1906 + $0x8] sm:$0xff] %v1890
        %1909 = vst [vmem:[%s1906 + $0x10] sm:$0xff] %v1891
        %1910 = vst [vmem:[%s1906 + $0x18] sm:$0xff] %v1892
        %1911 = vst [vmem:[%s1906 + $0x20] sm:$0xff] %v1893
        %1912 = vst [vmem:[%s1906 + $0x28] sm:$0xff] %v1894
        %1913 = vst [vmem:[%s1906 + $0x30] sm:$0xff] %v1895
        %1914 = vst [vmem:[%s1906 + $0x38] sm:$0xff] %v1896
        %s1915 = smul.u32 4, 2
        %s1916 = smul.addr %s1915, 8
        %s1917 = scalar_lea.vmem [#allocation2], %s1916
        %v1918 = vld [vmem:[%s1917] sm:$0xff]
        %v1919 = vld [vmem:[%s1917 + $0x8] sm:$0xff]
        %v1920 = vld [vmem:[%s1917 + $0x10] sm:$0xff]
        %v1921 = vld [vmem:[%s1917 + $0x18] sm:$0xff]
        %v1922 = vld [vmem:[%s1917 + $0x20] sm:$0xff]
        %v1923 = vld [vmem:[%s1917 + $0x28] sm:$0xff]
        %v1924 = vld [vmem:[%s1917 + $0x30] sm:$0xff]
        %v1925 = vld [vmem:[%s1917 + $0x38] sm:$0xff]
        %vm1934 = vcmp.gt.s32.totalorder %v1918, %v1919
        %v1935 = vsel %vm1934, %v1918, %v1919
        %vm1936 = vcmp.gt.s32.totalorder %v1920, %v1921
        %v1937 = vsel %vm1936, %v1920, %v1921
        %vm1938 = vcmp.gt.s32.totalorder %v1922, %v1923
        %v1939 = vsel %vm1938, %v1922, %v1923
        %vm1940 = vcmp.gt.s32.totalorder %v1924, %v1925
        %v1941 = vsel %vm1940, %v1924, %v1925
        %v1942 = vand.u32 %v1935, 65535
        %v1943 = vshra.s32 %v1935, 16
        %v1944 = vcvt.s32.f32 %v1942
        %v1945 = vcvt.s32.f32 %v1943
        %1946 = vmax.xlane.f32.xlu0 %v1945
        %v1947 = vpop.xlane.xlu0 %1946
        %vm1948 = vcmp.eq.f32.partialorder %v1945, %v1947
        %v1949 = vsel %vm1948, %v1944, -inf
        %1950 = vmax.xlane.f32.xlu0 %v1949
        %v1951 = vpop.xlane.xlu0 %1950
        %v1952 = vcvt.f32.s32 %v1951
        %v1953 = vcvt.f32.s32 %v1947
        %v1954 = vshll.u32 %v1953, 16
        %v1955 = vadd.s32 %v1954, %v1952
        %v1956 = vand.u32 %v1937, 65535
        %v1957 = vshra.s32 %v1937, 16
        %v1958 = vcvt.s32.f32 %v1956
        %v1959 = vcvt.s32.f32 %v1957
        %1960 = vmax.xlane.f32.xlu0 %v1959
        %v1961 = vpop.xlane.xlu0 %1960
        %vm1962 = vcmp.eq.f32.partialorder %v1959, %v1961
        %v1963 = vsel %vm1962, %v1958, -inf
        %1964 = vmax.xlane.f32.xlu0 %v1963
        %v1965 = vpop.xlane.xlu0 %1964
        %v1966 = vcvt.f32.s32 %v1965
        %v1967 = vcvt.f32.s32 %v1961
        %v1968 = vshll.u32 %v1967, 16
        %v1969 = vadd.s32 %v1968, %v1966
        %v1970 = vand.u32 %v1939, 65535
        %v1971 = vshra.s32 %v1939, 16
        %v1972 = vcvt.s32.f32 %v1970
        %v1973 = vcvt.s32.f32 %v1971
        %1974 = vmax.xlane.f32.xlu0 %v1973
        %v1975 = vpop.xlane.xlu0 %1974
        %vm1976 = vcmp.eq.f32.partialorder %v1973, %v1975
        %v1977 = vsel %vm1976, %v1972, -inf
        %1978 = vmax.xlane.f32.xlu0 %v1977
        %v1979 = vpop.xlane.xlu0 %1978
        %v1980 = vcvt.f32.s32 %v1979
        %v1981 = vcvt.f32.s32 %v1975
        %v1982 = vshll.u32 %v1981, 16
        %v1983 = vadd.s32 %v1982, %v1980
        %v1984 = vand.u32 %v1941, 65535
        %v1985 = vshra.s32 %v1941, 16
        %v1986 = vcvt.s32.f32 %v1984
        %v1987 = vcvt.s32.f32 %v1985
        %1988 = vmax.xlane.f32.xlu0 %v1987
        %v1989 = vpop.xlane.xlu0 %1988
        %vm1990 = vcmp.eq.f32.partialorder %v1987, %v1989
        %v1991 = vsel %vm1990, %v1986, -inf
        %1992 = vmax.xlane.f32.xlu0 %v1991
        %v1993 = vpop.xlane.xlu0 %1992
        %v1994 = vcvt.f32.s32 %v1993
        %v1995 = vcvt.f32.s32 %v1989
        %v1996 = vshll.u32 %v1995, 16
        %v1997 = vadd.s32 %v1996, %v1994
        %vm1998 = vcmp.ge.s32.totalorder %v1918, %v1955
        %vm1999 = vcmp.ge.s32.totalorder %v1919, %v1955
        %vm2000 = vcmp.ge.s32.totalorder %v1920, %v1969
        %vm2001 = vcmp.ge.s32.totalorder %v1921, %v1969
        %vm2002 = vcmp.ge.s32.totalorder %v1922, %v1983
        %vm2003 = vcmp.ge.s32.totalorder %v1923, %v1983
        %vm2004 = vcmp.ge.s32.totalorder %v1924, %v1997
        %vm2005 = vcmp.ge.s32.totalorder %v1925, %v1997
        %v2006 = vsel %vm1998, 4294967295, %v1918
        %v2007 = vsel %vm1999, 4294967295, %v1919
        %v2008 = vsel %vm2000, 4294967295, %v1920
        %v2009 = vsel %vm2001, 4294967295, %v1921
        %v2010 = vsel %vm2002, 4294967295, %v1922
        %v2011 = vsel %vm2003, 4294967295, %v1923
        %v2012 = vsel %vm2004, 4294967295, %v1924
        %v2013 = vsel %vm2005, 4294967295, %v1925
        %vm2014 = vcmp.gt.s32.totalorder %v2006, %v2007
        %v2015 = vsel %vm2014, %v2006, %v2007
        %vm2016 = vcmp.gt.s32.totalorder %v2008, %v2009
        %v2017 = vsel %vm2016, %v2008, %v2009
        %vm2018 = vcmp.gt.s32.totalorder %v2010, %v2011
        %v2019 = vsel %vm2018, %v2010, %v2011
        %vm2020 = vcmp.gt.s32.totalorder %v2012, %v2013
        %v2021 = vsel %vm2020, %v2012, %v2013
        %v2022 = vand.u32 %v2015, 65535
        %v2023 = vshra.s32 %v2015, 16
        %v2024 = vcvt.s32.f32 %v2022
        %v2025 = vcvt.s32.f32 %v2023
        %2026 = vmax.xlane.f32.xlu0 %v2025
        %v2027 = vpop.xlane.xlu0 %2026
        %vm2028 = vcmp.eq.f32.partialorder %v2025, %v2027
        %v2029 = vsel %vm2028, %v2024, -inf
        %2030 = vmax.xlane.f32.xlu0 %v2029
        %v2031 = vpop.xlane.xlu0 %2030
        %v2032 = vcvt.f32.s32 %v2031
        %v2033 = vcvt.f32.s32 %v2027
        %v2034 = vshll.u32 %v2033, 16
        %v2035 = vadd.s32 %v2034, %v2032
        %v2036 = vand.u32 %v2017, 65535
        %v2037 = vshra.s32 %v2017, 16
        %v2038 = vcvt.s32.f32 %v2036
        %v2039 = vcvt.s32.f32 %v2037
        %2040 = vmax.xlane.f32.xlu0 %v2039
        %v2041 = vpop.xlane.xlu0 %2040
        %vm2042 = vcmp.eq.f32.partialorder %v2039, %v2041
        %v2043 = vsel %vm2042, %v2038, -inf
        %2044 = vmax.xlane.f32.xlu0 %v2043
        %v2045 = vpop.xlane.xlu0 %2044
        %v2046 = vcvt.f32.s32 %v2045
        %v2047 = vcvt.f32.s32 %v2041
        %v2048 = vshll.u32 %v2047, 16
        %v2049 = vadd.s32 %v2048, %v2046
        %v2050 = vand.u32 %v2019, 65535
        %v2051 = vshra.s32 %v2019, 16
        %v2052 = vcvt.s32.f32 %v2050
        %v2053 = vcvt.s32.f32 %v2051
        %2054 = vmax.xlane.f32.xlu0 %v2053
        %v2055 = vpop.xlane.xlu0 %2054
        %vm2056 = vcmp.eq.f32.partialorder %v2053, %v2055
        %v2057 = vsel %vm2056, %v2052, -inf
        %2058 = vmax.xlane.f32.xlu0 %v2057
        %v2059 = vpop.xlane.xlu0 %2058
        %v2060 = vcvt.f32.s32 %v2059
        %v2061 = vcvt.f32.s32 %v2055
        %v2062 = vshll.u32 %v2061, 16
        %v2063 = vadd.s32 %v2062, %v2060
        %v2064 = vand.u32 %v2021, 65535
        %v2065 = vshra.s32 %v2021, 16
        %v2066 = vcvt.s32.f32 %v2064
        %v2067 = vcvt.s32.f32 %v2065
        %2068 = vmax.xlane.f32.xlu0 %v2067
        %v2069 = vpop.xlane.xlu0 %2068
        %vm2070 = vcmp.eq.f32.partialorder %v2067, %v2069
        %v2071 = vsel %vm2070, %v2066, -inf
        %2072 = vmax.xlane.f32.xlu0 %v2071
        %v2073 = vpop.xlane.xlu0 %2072
        %v2074 = vcvt.f32.s32 %v2073
        %v2075 = vcvt.f32.s32 %v2069
        %v2076 = vshll.u32 %v2075, 16
        %v2077 = vadd.s32 %v2076, %v2074
        %vm2078 = vcmp.ge.s32.totalorder %v2006, %v2035
        %vm2079 = vcmp.ge.s32.totalorder %v2007, %v2035
        %vm2080 = vcmp.ge.s32.totalorder %v2008, %v2049
        %vm2081 = vcmp.ge.s32.totalorder %v2009, %v2049
        %vm2082 = vcmp.ge.s32.totalorder %v2010, %v2063
        %vm2083 = vcmp.ge.s32.totalorder %v2011, %v2063
        %vm2084 = vcmp.ge.s32.totalorder %v2012, %v2077
        %vm2085 = vcmp.ge.s32.totalorder %v2013, %v2077
        %v2086 = vsel %vm2078, 4294967295, %v2006
        %v2087 = vsel %vm2079, 4294967295, %v2007
        %v2088 = vsel %vm2080, 4294967295, %v2008
        %v2089 = vsel %vm2081, 4294967295, %v2009
        %v2090 = vsel %vm2082, 4294967295, %v2010
        %v2091 = vsel %vm2083, 4294967295, %v2011
        %v2092 = vsel %vm2084, 4294967295, %v2012
        %v2093 = vsel %vm2085, 4294967295, %v2013
        %vm2094 = vcmp.gt.s32.totalorder %v2086, %v2087
        %v2095 = vsel %vm2094, %v2086, %v2087
        %vm2096 = vcmp.gt.s32.totalorder %v2088, %v2089
        %v2097 = vsel %vm2096, %v2088, %v2089
        %vm2098 = vcmp.gt.s32.totalorder %v2090, %v2091
        %v2099 = vsel %vm2098, %v2090, %v2091
        %vm2100 = vcmp.gt.s32.totalorder %v2092, %v2093
        %v2101 = vsel %vm2100, %v2092, %v2093
        %v2102 = vand.u32 %v2095, 65535
        %v2103 = vshra.s32 %v2095, 16
        %v2104 = vcvt.s32.f32 %v2102
        %v2105 = vcvt.s32.f32 %v2103
        %2106 = vmax.xlane.f32.xlu0 %v2105
        %v2107 = vpop.xlane.xlu0 %2106
        %vm2108 = vcmp.eq.f32.partialorder %v2105, %v2107
        %v2109 = vsel %vm2108, %v2104, -inf
        %2110 = vmax.xlane.f32.xlu0 %v2109
        %v2111 = vpop.xlane.xlu0 %2110
        %v2112 = vcvt.f32.s32 %v2111
        %v2113 = vcvt.f32.s32 %v2107
        %v2114 = vshll.u32 %v2113, 16
        %v2115 = vadd.s32 %v2114, %v2112
        %v2116 = vand.u32 %v2097, 65535
        %v2117 = vshra.s32 %v2097, 16
        %v2118 = vcvt.s32.f32 %v2116
        %v2119 = vcvt.s32.f32 %v2117
        %2120 = vmax.xlane.f32.xlu0 %v2119
        %v2121 = vpop.xlane.xlu0 %2120
        %vm2122 = vcmp.eq.f32.partialorder %v2119, %v2121
        %v2123 = vsel %vm2122, %v2118, -inf
        %2124 = vmax.xlane.f32.xlu0 %v2123
        %v2125 = vpop.xlane.xlu0 %2124
        %v2126 = vcvt.f32.s32 %v2125
        %v2127 = vcvt.f32.s32 %v2121
        %v2128 = vshll.u32 %v2127, 16
        %v2129 = vadd.s32 %v2128, %v2126
        %v2130 = vand.u32 %v2099, 65535
        %v2131 = vshra.s32 %v2099, 16
        %v2132 = vcvt.s32.f32 %v2130
        %v2133 = vcvt.s32.f32 %v2131
        %2134 = vmax.xlane.f32.xlu0 %v2133
        %v2135 = vpop.xlane.xlu0 %2134
        %vm2136 = vcmp.eq.f32.partialorder %v2133, %v2135
        %v2137 = vsel %vm2136, %v2132, -inf
        %2138 = vmax.xlane.f32.xlu0 %v2137
        %v2139 = vpop.xlane.xlu0 %2138
        %v2140 = vcvt.f32.s32 %v2139
        %v2141 = vcvt.f32.s32 %v2135
        %v2142 = vshll.u32 %v2141, 16
        %v2143 = vadd.s32 %v2142, %v2140
        %v2144 = vand.u32 %v2101, 65535
        %v2145 = vshra.s32 %v2101, 16
        %v2146 = vcvt.s32.f32 %v2144
        %v2147 = vcvt.s32.f32 %v2145
        %2148 = vmax.xlane.f32.xlu0 %v2147
        %v2149 = vpop.xlane.xlu0 %2148
        %vm2150 = vcmp.eq.f32.partialorder %v2147, %v2149
        %v2151 = vsel %vm2150, %v2146, -inf
        %2152 = vmax.xlane.f32.xlu0 %v2151
        %v2153 = vpop.xlane.xlu0 %2152
        %v2154 = vcvt.f32.s32 %v2153
        %v2155 = vcvt.f32.s32 %v2149
        %v2156 = vshll.u32 %v2155, 16
        %v2157 = vadd.s32 %v2156, %v2154
        %vm2158 = vcmp.ge.s32.totalorder %v2086, %v2115
        %vm2159 = vcmp.ge.s32.totalorder %v2087, %v2115
        %vm2160 = vcmp.ge.s32.totalorder %v2088, %v2129
        %vm2161 = vcmp.ge.s32.totalorder %v2089, %v2129
        %vm2162 = vcmp.ge.s32.totalorder %v2090, %v2143
        %vm2163 = vcmp.ge.s32.totalorder %v2091, %v2143
        %vm2164 = vcmp.ge.s32.totalorder %v2092, %v2157
        %vm2165 = vcmp.ge.s32.totalorder %v2093, %v2157
        %v2166 = vsel %vm2158, 4294967295, %v2086
        %v2167 = vsel %vm2159, 4294967295, %v2087
        %v2168 = vsel %vm2160, 4294967295, %v2088
        %v2169 = vsel %vm2161, 4294967295, %v2089
        %v2170 = vsel %vm2162, 4294967295, %v2090
        %v2171 = vsel %vm2163, 4294967295, %v2091
        %v2172 = vsel %vm2164, 4294967295, %v2092
        %v2173 = vsel %vm2165, 4294967295, %v2093
        %vm2174 = vcmp.gt.s32.totalorder %v2166, %v2167
        %v2175 = vsel %vm2174, %v2166, %v2167
        %vm2176 = vcmp.gt.s32.totalorder %v2168, %v2169
        %v2177 = vsel %vm2176, %v2168, %v2169
        %vm2178 = vcmp.gt.s32.totalorder %v2170, %v2171
        %v2179 = vsel %vm2178, %v2170, %v2171
        %vm2180 = vcmp.gt.s32.totalorder %v2172, %v2173
        %v2181 = vsel %vm2180, %v2172, %v2173
        %v2182 = vand.u32 %v2175, 65535
        %v2183 = vshra.s32 %v2175, 16
        %v2184 = vcvt.s32.f32 %v2182
        %v2185 = vcvt.s32.f32 %v2183
        %2186 = vmax.xlane.f32.xlu0 %v2185
        %v2187 = vpop.xlane.xlu0 %2186
        %vm2188 = vcmp.eq.f32.partialorder %v2185, %v2187
        %v2189 = vsel %vm2188, %v2184, -inf
        %2190 = vmax.xlane.f32.xlu0 %v2189
        %v2191 = vpop.xlane.xlu0 %2190
        %v2192 = vcvt.f32.s32 %v2191
        %v2193 = vcvt.f32.s32 %v2187
        %v2194 = vshll.u32 %v2193, 16
        %v2195 = vadd.s32 %v2194, %v2192
        %v2196 = vand.u32 %v2177, 65535
        %v2197 = vshra.s32 %v2177, 16
        %v2198 = vcvt.s32.f32 %v2196
        %v2199 = vcvt.s32.f32 %v2197
        %2200 = vmax.xlane.f32.xlu0 %v2199
        %v2201 = vpop.xlane.xlu0 %2200
        %vm2202 = vcmp.eq.f32.partialorder %v2199, %v2201
        %v2203 = vsel %vm2202, %v2198, -inf
        %2204 = vmax.xlane.f32.xlu0 %v2203
        %v2205 = vpop.xlane.xlu0 %2204
        %v2206 = vcvt.f32.s32 %v2205
        %v2207 = vcvt.f32.s32 %v2201
        %v2208 = vshll.u32 %v2207, 16
        %v2209 = vadd.s32 %v2208, %v2206
        %v2210 = vand.u32 %v2179, 65535
        %v2211 = vshra.s32 %v2179, 16
        %v2212 = vcvt.s32.f32 %v2210
        %v2213 = vcvt.s32.f32 %v2211
        %2214 = vmax.xlane.f32.xlu0 %v2213
        %v2215 = vpop.xlane.xlu0 %2214
        %vm2216 = vcmp.eq.f32.partialorder %v2213, %v2215
        %v2217 = vsel %vm2216, %v2212, -inf
        %2218 = vmax.xlane.f32.xlu0 %v2217
        %v2219 = vpop.xlane.xlu0 %2218
        %v2220 = vcvt.f32.s32 %v2219
        %v2221 = vcvt.f32.s32 %v2215
        %v2222 = vshll.u32 %v2221, 16
        %v2223 = vadd.s32 %v2222, %v2220
        %v2224 = vand.u32 %v2181, 65535
        %v2225 = vshra.s32 %v2181, 16
        %v2226 = vcvt.s32.f32 %v2224
        %v2227 = vcvt.s32.f32 %v2225
        %2228 = vmax.xlane.f32.xlu0 %v2227
        %v2229 = vpop.xlane.xlu0 %2228
        %vm2230 = vcmp.eq.f32.partialorder %v2227, %v2229
        %v2231 = vsel %vm2230, %v2226, -inf
        %2232 = vmax.xlane.f32.xlu0 %v2231
        %v2233 = vpop.xlane.xlu0 %2232
        %v2234 = vcvt.f32.s32 %v2233
        %v2235 = vcvt.f32.s32 %v2229
        %v2236 = vshll.u32 %v2235, 16
        %v2237 = vadd.s32 %v2236, %v2234
        %vm2238 = vcmp.ge.s32.totalorder %v2166, %v2195
        %vm2239 = vcmp.ge.s32.totalorder %v2167, %v2195
        %vm2240 = vcmp.ge.s32.totalorder %v2168, %v2209
        %vm2241 = vcmp.ge.s32.totalorder %v2169, %v2209
        %vm2242 = vcmp.ge.s32.totalorder %v2170, %v2223
        %vm2243 = vcmp.ge.s32.totalorder %v2171, %v2223
        %vm2244 = vcmp.ge.s32.totalorder %v2172, %v2237
        %vm2245 = vcmp.ge.s32.totalorder %v2173, %v2237
        %v2246 = vsel %vm2238, 4294967295, %v2166
        %v2247 = vsel %vm2239, 4294967295, %v2167
        %v2248 = vsel %vm2240, 4294967295, %v2168
        %v2249 = vsel %vm2241, 4294967295, %v2169
        %v2250 = vsel %vm2242, 4294967295, %v2170
        %v2251 = vsel %vm2243, 4294967295, %v2171
        %v2252 = vsel %vm2244, 4294967295, %v2172
        %v2253 = vsel %vm2245, 4294967295, %v2173
        %vm2254 = vcmp.gt.s32.totalorder %v2246, %v2247
        %v2255 = vsel %vm2254, %v2246, %v2247
        %vm2256 = vcmp.gt.s32.totalorder %v2248, %v2249
        %v2257 = vsel %vm2256, %v2248, %v2249
        %vm2258 = vcmp.gt.s32.totalorder %v2250, %v2251
        %v2259 = vsel %vm2258, %v2250, %v2251
        %vm2260 = vcmp.gt.s32.totalorder %v2252, %v2253
        %v2261 = vsel %vm2260, %v2252, %v2253
        %v2262 = vand.u32 %v2255, 65535
        %v2263 = vshra.s32 %v2255, 16
        %v2264 = vcvt.s32.f32 %v2262
        %v2265 = vcvt.s32.f32 %v2263
        %2266 = vmax.xlane.f32.xlu0 %v2265
        %v2267 = vpop.xlane.xlu0 %2266
        %vm2268 = vcmp.eq.f32.partialorder %v2265, %v2267
        %v2269 = vsel %vm2268, %v2264, -inf
        %2270 = vmax.xlane.f32.xlu0 %v2269
        %v2271 = vpop.xlane.xlu0 %2270
        %v2272 = vcvt.f32.s32 %v2271
        %v2273 = vcvt.f32.s32 %v2267
        %v2274 = vshll.u32 %v2273, 16
        %v2275 = vadd.s32 %v2274, %v2272
        %v2276 = vand.u32 %v2257, 65535
        %v2277 = vshra.s32 %v2257, 16
        %v2278 = vcvt.s32.f32 %v2276
        %v2279 = vcvt.s32.f32 %v2277
        %2280 = vmax.xlane.f32.xlu0 %v2279
        %v2281 = vpop.xlane.xlu0 %2280
        %vm2282 = vcmp.eq.f32.partialorder %v2279, %v2281
        %v2283 = vsel %vm2282, %v2278, -inf
        %2284 = vmax.xlane.f32.xlu0 %v2283
        %v2285 = vpop.xlane.xlu0 %2284
        %v2286 = vcvt.f32.s32 %v2285
        %v2287 = vcvt.f32.s32 %v2281
        %v2288 = vshll.u32 %v2287, 16
        %v2289 = vadd.s32 %v2288, %v2286
        %v2290 = vand.u32 %v2259, 65535
        %v2291 = vshra.s32 %v2259, 16
        %v2292 = vcvt.s32.f32 %v2290
        %v2293 = vcvt.s32.f32 %v2291
        %2294 = vmax.xlane.f32.xlu0 %v2293
        %v2295 = vpop.xlane.xlu0 %2294
        %vm2296 = vcmp.eq.f32.partialorder %v2293, %v2295
        %v2297 = vsel %vm2296, %v2292, -inf
        %2298 = vmax.xlane.f32.xlu0 %v2297
        %v2299 = vpop.xlane.xlu0 %2298
        %v2300 = vcvt.f32.s32 %v2299
        %v2301 = vcvt.f32.s32 %v2295
        %v2302 = vshll.u32 %v2301, 16
        %v2303 = vadd.s32 %v2302, %v2300
        %v2304 = vand.u32 %v2261, 65535
        %v2305 = vshra.s32 %v2261, 16
        %v2306 = vcvt.s32.f32 %v2304
        %v2307 = vcvt.s32.f32 %v2305
        %2308 = vmax.xlane.f32.xlu0 %v2307
        %v2309 = vpop.xlane.xlu0 %2308
        %vm2310 = vcmp.eq.f32.partialorder %v2307, %v2309
        %v2311 = vsel %vm2310, %v2306, -inf
        %2312 = vmax.xlane.f32.xlu0 %v2311
        %v2313 = vpop.xlane.xlu0 %2312
        %v2314 = vcvt.f32.s32 %v2313
        %v2315 = vcvt.f32.s32 %v2309
        %v2316 = vshll.u32 %v2315, 16
        %v2317 = vadd.s32 %v2316, %v2314
        %vm2318 = vcmp.ge.s32.totalorder %v2246, %v2275
        %vm2319 = vcmp.ge.s32.totalorder %v2247, %v2275
        %vm2320 = vcmp.ge.s32.totalorder %v2248, %v2289
        %vm2321 = vcmp.ge.s32.totalorder %v2249, %v2289
        %vm2322 = vcmp.ge.s32.totalorder %v2250, %v2303
        %vm2323 = vcmp.ge.s32.totalorder %v2251, %v2303
        %vm2324 = vcmp.ge.s32.totalorder %v2252, %v2317
        %vm2325 = vcmp.ge.s32.totalorder %v2253, %v2317
        %v2326 = vsel %vm2318, 4294967295, %v2246
        %v2327 = vsel %vm2319, 4294967295, %v2247
        %v2328 = vsel %vm2320, 4294967295, %v2248
        %v2329 = vsel %vm2321, 4294967295, %v2249
        %v2330 = vsel %vm2322, 4294967295, %v2250
        %v2331 = vsel %vm2323, 4294967295, %v2251
        %v2332 = vsel %vm2324, 4294967295, %v2252
        %v2333 = vsel %vm2325, 4294967295, %v2253
        %vm2334 = vcmp.gt.s32.totalorder %v2326, %v2327
        %v2335 = vsel %vm2334, %v2326, %v2327
        %vm2336 = vcmp.gt.s32.totalorder %v2328, %v2329
        %v2337 = vsel %vm2336, %v2328, %v2329
        %vm2338 = vcmp.gt.s32.totalorder %v2330, %v2331
        %v2339 = vsel %vm2338, %v2330, %v2331
        %vm2340 = vcmp.gt.s32.totalorder %v2332, %v2333
        %v2341 = vsel %vm2340, %v2332, %v2333
        %v2342 = vand.u32 %v2335, 65535
        %v2343 = vshra.s32 %v2335, 16
        %v2344 = vcvt.s32.f32 %v2342
        %v2345 = vcvt.s32.f32 %v2343
        %2346 = vmax.xlane.f32.xlu0 %v2345
        %v2347 = vpop.xlane.xlu0 %2346
        %vm2348 = vcmp.eq.f32.partialorder %v2345, %v2347
        %v2349 = vsel %vm2348, %v2344, -inf
        %2350 = vmax.xlane.f32.xlu0 %v2349
        %v2351 = vpop.xlane.xlu0 %2350
        %v2352 = vcvt.f32.s32 %v2351
        %v2353 = vcvt.f32.s32 %v2347
        %v2354 = vshll.u32 %v2353, 16
        %v2355 = vadd.s32 %v2354, %v2352
        %v2356 = vand.u32 %v2337, 65535
        %v2357 = vshra.s32 %v2337, 16
        %v2358 = vcvt.s32.f32 %v2356
        %v2359 = vcvt.s32.f32 %v2357
        %2360 = vmax.xlane.f32.xlu0 %v2359
        %v2361 = vpop.xlane.xlu0 %2360
        %vm2362 = vcmp.eq.f32.partialorder %v2359, %v2361
        %v2363 = vsel %vm2362, %v2358, -inf
        %2364 = vmax.xlane.f32.xlu0 %v2363
        %v2365 = vpop.xlane.xlu0 %2364
        %v2366 = vcvt.f32.s32 %v2365
        %v2367 = vcvt.f32.s32 %v2361
        %v2368 = vshll.u32 %v2367, 16
        %v2369 = vadd.s32 %v2368, %v2366
        %v2370 = vand.u32 %v2339, 65535
        %v2371 = vshra.s32 %v2339, 16
        %v2372 = vcvt.s32.f32 %v2370
        %v2373 = vcvt.s32.f32 %v2371
        %2374 = vmax.xlane.f32.xlu0 %v2373
        %v2375 = vpop.xlane.xlu0 %2374
        %vm2376 = vcmp.eq.f32.partialorder %v2373, %v2375
        %v2377 = vsel %vm2376, %v2372, -inf
        %2378 = vmax.xlane.f32.xlu0 %v2377
        %v2379 = vpop.xlane.xlu0 %2378
        %v2380 = vcvt.f32.s32 %v2379
        %v2381 = vcvt.f32.s32 %v2375
        %v2382 = vshll.u32 %v2381, 16
        %v2383 = vadd.s32 %v2382, %v2380
        %v2384 = vand.u32 %v2341, 65535
        %v2385 = vshra.s32 %v2341, 16
        %v2386 = vcvt.s32.f32 %v2384
        %v2387 = vcvt.s32.f32 %v2385
        %2388 = vmax.xlane.f32.xlu0 %v2387
        %v2389 = vpop.xlane.xlu0 %2388
        %vm2390 = vcmp.eq.f32.partialorder %v2387, %v2389
        %v2391 = vsel %vm2390, %v2386, -inf
        %2392 = vmax.xlane.f32.xlu0 %v2391
        %v2393 = vpop.xlane.xlu0 %2392
        %v2394 = vcvt.f32.s32 %v2393
        %v2395 = vcvt.f32.s32 %v2389
        %v2396 = vshll.u32 %v2395, 16
        %v2397 = vadd.s32 %v2396, %v2394
        %vm2398 = vcmp.ge.s32.totalorder %v2326, %v2355
        %vm2399 = vcmp.ge.s32.totalorder %v2327, %v2355
        %vm2400 = vcmp.ge.s32.totalorder %v2328, %v2369
        %vm2401 = vcmp.ge.s32.totalorder %v2329, %v2369
        %vm2402 = vcmp.ge.s32.totalorder %v2330, %v2383
        %vm2403 = vcmp.ge.s32.totalorder %v2331, %v2383
        %vm2404 = vcmp.ge.s32.totalorder %v2332, %v2397
        %vm2405 = vcmp.ge.s32.totalorder %v2333, %v2397
        %v2406 = vsel %vm2398, 4294967295, %v2326
        %v2407 = vsel %vm2399, 4294967295, %v2327
        %v2408 = vsel %vm2400, 4294967295, %v2328
        %v2409 = vsel %vm2401, 4294967295, %v2329
        %v2410 = vsel %vm2402, 4294967295, %v2330
        %v2411 = vsel %vm2403, 4294967295, %v2331
        %v2412 = vsel %vm2404, 4294967295, %v2332
        %v2413 = vsel %vm2405, 4294967295, %v2333
        %vm2414 = vcmp.gt.s32.totalorder %v2406, %v2407
        %v2415 = vsel %vm2414, %v2406, %v2407
        %vm2416 = vcmp.gt.s32.totalorder %v2408, %v2409
        %v2417 = vsel %vm2416, %v2408, %v2409
        %vm2418 = vcmp.gt.s32.totalorder %v2410, %v2411
        %v2419 = vsel %vm2418, %v2410, %v2411
        %vm2420 = vcmp.gt.s32.totalorder %v2412, %v2413
        %v2421 = vsel %vm2420, %v2412, %v2413
        %v2422 = vand.u32 %v2415, 65535
        %v2423 = vshra.s32 %v2415, 16
        %v2424 = vcvt.s32.f32 %v2422
        %v2425 = vcvt.s32.f32 %v2423
        %2426 = vmax.xlane.f32.xlu0 %v2425
        %v2427 = vpop.xlane.xlu0 %2426
        %vm2428 = vcmp.eq.f32.partialorder %v2425, %v2427
        %v2429 = vsel %vm2428, %v2424, -inf
        %2430 = vmax.xlane.f32.xlu0 %v2429
        %v2431 = vpop.xlane.xlu0 %2430
        %v2432 = vcvt.f32.s32 %v2431
        %v2433 = vcvt.f32.s32 %v2427
        %v2434 = vshll.u32 %v2433, 16
        %v2435 = vadd.s32 %v2434, %v2432
        %v2436 = vand.u32 %v2417, 65535
        %v2437 = vshra.s32 %v2417, 16
        %v2438 = vcvt.s32.f32 %v2436
        %v2439 = vcvt.s32.f32 %v2437
        %2440 = vmax.xlane.f32.xlu0 %v2439
        %v2441 = vpop.xlane.xlu0 %2440
        %vm2442 = vcmp.eq.f32.partialorder %v2439, %v2441
        %v2443 = vsel %vm2442, %v2438, -inf
        %2444 = vmax.xlane.f32.xlu0 %v2443
        %v2445 = vpop.xlane.xlu0 %2444
        %v2446 = vcvt.f32.s32 %v2445
        %v2447 = vcvt.f32.s32 %v2441
        %v2448 = vshll.u32 %v2447, 16
        %v2449 = vadd.s32 %v2448, %v2446
        %v2450 = vand.u32 %v2419, 65535
        %v2451 = vshra.s32 %v2419, 16
        %v2452 = vcvt.s32.f32 %v2450
        %v2453 = vcvt.s32.f32 %v2451
        %2454 = vmax.xlane.f32.xlu0 %v2453
        %v2455 = vpop.xlane.xlu0 %2454
        %vm2456 = vcmp.eq.f32.partialorder %v2453, %v2455
        %v2457 = vsel %vm2456, %v2452, -inf
        %2458 = vmax.xlane.f32.xlu0 %v2457
        %v2459 = vpop.xlane.xlu0 %2458
        %v2460 = vcvt.f32.s32 %v2459
        %v2461 = vcvt.f32.s32 %v2455
        %v2462 = vshll.u32 %v2461, 16
        %v2463 = vadd.s32 %v2462, %v2460
        %v2464 = vand.u32 %v2421, 65535
        %v2465 = vshra.s32 %v2421, 16
        %v2466 = vcvt.s32.f32 %v2464
        %v2467 = vcvt.s32.f32 %v2465
        %2468 = vmax.xlane.f32.xlu0 %v2467
        %v2469 = vpop.xlane.xlu0 %2468
        %vm2470 = vcmp.eq.f32.partialorder %v2467, %v2469
        %v2471 = vsel %vm2470, %v2466, -inf
        %2472 = vmax.xlane.f32.xlu0 %v2471
        %v2473 = vpop.xlane.xlu0 %2472
        %v2474 = vcvt.f32.s32 %v2473
        %v2475 = vcvt.f32.s32 %v2469
        %v2476 = vshll.u32 %v2475, 16
        %v2477 = vadd.s32 %v2476, %v2474
        %vm2478 = vcmp.ge.s32.totalorder %v2406, %v2435
        %vm2479 = vcmp.ge.s32.totalorder %v2407, %v2435
        %vm2480 = vcmp.ge.s32.totalorder %v2408, %v2449
        %vm2481 = vcmp.ge.s32.totalorder %v2409, %v2449
        %vm2482 = vcmp.ge.s32.totalorder %v2410, %v2463
        %vm2483 = vcmp.ge.s32.totalorder %v2411, %v2463
        %vm2484 = vcmp.ge.s32.totalorder %v2412, %v2477
        %vm2485 = vcmp.ge.s32.totalorder %v2413, %v2477
        %v2486 = vsel %vm2478, 4294967295, %v2406
        %v2487 = vsel %vm2479, 4294967295, %v2407
        %v2488 = vsel %vm2480, 4294967295, %v2408
        %v2489 = vsel %vm2481, 4294967295, %v2409
        %v2490 = vsel %vm2482, 4294967295, %v2410
        %v2491 = vsel %vm2483, 4294967295, %v2411
        %v2492 = vsel %vm2484, 4294967295, %v2412
        %v2493 = vsel %vm2485, 4294967295, %v2413
        %vm2494 = vcmp.gt.s32.totalorder %v2486, %v2487
        %v2495 = vsel %vm2494, %v2486, %v2487
        %vm2496 = vcmp.gt.s32.totalorder %v2488, %v2489
        %v2497 = vsel %vm2496, %v2488, %v2489
        %vm2498 = vcmp.gt.s32.totalorder %v2490, %v2491
        %v2499 = vsel %vm2498, %v2490, %v2491
        %vm2500 = vcmp.gt.s32.totalorder %v2492, %v2493
        %v2501 = vsel %vm2500, %v2492, %v2493
        %v2502 = vand.u32 %v2495, 65535
        %v2503 = vshra.s32 %v2495, 16
        %v2504 = vcvt.s32.f32 %v2502
        %v2505 = vcvt.s32.f32 %v2503
        %2506 = vmax.xlane.f32.xlu0 %v2505
        %v2507 = vpop.xlane.xlu0 %2506
        %vm2508 = vcmp.eq.f32.partialorder %v2505, %v2507
        %v2509 = vsel %vm2508, %v2504, -inf
        %2510 = vmax.xlane.f32.xlu0 %v2509
        %v2511 = vpop.xlane.xlu0 %2510
        %v2512 = vcvt.f32.s32 %v2511
        %v2513 = vcvt.f32.s32 %v2507
        %v2514 = vshll.u32 %v2513, 16
        %v2515 = vadd.s32 %v2514, %v2512
        %v2516 = vand.u32 %v2497, 65535
        %v2517 = vshra.s32 %v2497, 16
        %v2518 = vcvt.s32.f32 %v2516
        %v2519 = vcvt.s32.f32 %v2517
        %2520 = vmax.xlane.f32.xlu0 %v2519
        %v2521 = vpop.xlane.xlu0 %2520
        %vm2522 = vcmp.eq.f32.partialorder %v2519, %v2521
        %v2523 = vsel %vm2522, %v2518, -inf
        %2524 = vmax.xlane.f32.xlu0 %v2523
        %v2525 = vpop.xlane.xlu0 %2524
        %v2526 = vcvt.f32.s32 %v2525
        %v2527 = vcvt.f32.s32 %v2521
        %v2528 = vshll.u32 %v2527, 16
        %v2529 = vadd.s32 %v2528, %v2526
        %v2530 = vand.u32 %v2499, 65535
        %v2531 = vshra.s32 %v2499, 16
        %v2532 = vcvt.s32.f32 %v2530
        %v2533 = vcvt.s32.f32 %v2531
        %2534 = vmax.xlane.f32.xlu0 %v2533
        %v2535 = vpop.xlane.xlu0 %2534
        %vm2536 = vcmp.eq.f32.partialorder %v2533, %v2535
        %v2537 = vsel %vm2536, %v2532, -inf
        %2538 = vmax.xlane.f32.xlu0 %v2537
        %v2539 = vpop.xlane.xlu0 %2538
        %v2540 = vcvt.f32.s32 %v2539
        %v2541 = vcvt.f32.s32 %v2535
        %v2542 = vshll.u32 %v2541, 16
        %v2543 = vadd.s32 %v2542, %v2540
        %v2544 = vand.u32 %v2501, 65535
        %v2545 = vshra.s32 %v2501, 16
        %v2546 = vcvt.s32.f32 %v2544
        %v2547 = vcvt.s32.f32 %v2545
        %2548 = vmax.xlane.f32.xlu0 %v2547
        %v2549 = vpop.xlane.xlu0 %2548
        %vm2550 = vcmp.eq.f32.partialorder %v2547, %v2549
        %v2551 = vsel %vm2550, %v2546, -inf
        %2552 = vmax.xlane.f32.xlu0 %v2551
        %v2553 = vpop.xlane.xlu0 %2552
        %v2554 = vcvt.f32.s32 %v2553
        %v2555 = vcvt.f32.s32 %v2549
        %v2556 = vshll.u32 %v2555, 16
        %v2557 = vadd.s32 %v2556, %v2554
        %vm2558 = vcmp.ge.s32.totalorder %v2486, %v2515
        %vm2559 = vcmp.ge.s32.totalorder %v2487, %v2515
        %vm2560 = vcmp.ge.s32.totalorder %v2488, %v2529
        %vm2561 = vcmp.ge.s32.totalorder %v2489, %v2529
        %vm2562 = vcmp.ge.s32.totalorder %v2490, %v2543
        %vm2563 = vcmp.ge.s32.totalorder %v2491, %v2543
        %vm2564 = vcmp.ge.s32.totalorder %v2492, %v2557
        %vm2565 = vcmp.ge.s32.totalorder %v2493, %v2557
        %v2566 = vsel %vm2558, 4294967295, %v2486
        %v2567 = vsel %vm2559, 4294967295, %v2487
        %v2568 = vsel %vm2560, 4294967295, %v2488
        %v2569 = vsel %vm2561, 4294967295, %v2489
        %v2570 = vsel %vm2562, 4294967295, %v2490
        %v2571 = vsel %vm2563, 4294967295, %v2491
        %v2572 = vsel %vm2564, 4294967295, %v2492
        %v2573 = vsel %vm2565, 4294967295, %v2493
        %vm2574 = vcmp.gt.s32.totalorder %v2566, %v2567
        %v2575 = vsel %vm2574, %v2566, %v2567
        %vm2576 = vcmp.gt.s32.totalorder %v2568, %v2569
        %v2577 = vsel %vm2576, %v2568, %v2569
        %vm2578 = vcmp.gt.s32.totalorder %v2570, %v2571
        %v2579 = vsel %vm2578, %v2570, %v2571
        %vm2580 = vcmp.gt.s32.totalorder %v2572, %v2573
        %v2581 = vsel %vm2580, %v2572, %v2573
        %v2582 = vand.u32 %v2575, 65535
        %v2583 = vshra.s32 %v2575, 16
        %v2584 = vcvt.s32.f32 %v2582
        %v2585 = vcvt.s32.f32 %v2583
        %2586 = vmax.xlane.f32.xlu0 %v2585
        %v2587 = vpop.xlane.xlu0 %2586
        %vm2588 = vcmp.eq.f32.partialorder %v2585, %v2587
        %v2589 = vsel %vm2588, %v2584, -inf
        %2590 = vmax.xlane.f32.xlu0 %v2589
        %v2591 = vpop.xlane.xlu0 %2590
        %v2592 = vcvt.f32.s32 %v2591
        %v2593 = vcvt.f32.s32 %v2587
        %v2594 = vshll.u32 %v2593, 16
        %v2595 = vadd.s32 %v2594, %v2592
        %v2596 = vand.u32 %v2577, 65535
        %v2597 = vshra.s32 %v2577, 16
        %v2598 = vcvt.s32.f32 %v2596
        %v2599 = vcvt.s32.f32 %v2597
        %2600 = vmax.xlane.f32.xlu0 %v2599
        %v2601 = vpop.xlane.xlu0 %2600
        %vm2602 = vcmp.eq.f32.partialorder %v2599, %v2601
        %v2603 = vsel %vm2602, %v2598, -inf
        %2604 = vmax.xlane.f32.xlu0 %v2603
        %v2605 = vpop.xlane.xlu0 %2604
        %v2606 = vcvt.f32.s32 %v2605
        %v2607 = vcvt.f32.s32 %v2601
        %v2608 = vshll.u32 %v2607, 16
        %v2609 = vadd.s32 %v2608, %v2606
        %v2610 = vand.u32 %v2579, 65535
        %v2611 = vshra.s32 %v2579, 16
        %v2612 = vcvt.s32.f32 %v2610
        %v2613 = vcvt.s32.f32 %v2611
        %2614 = vmax.xlane.f32.xlu0 %v2613
        %v2615 = vpop.xlane.xlu0 %2614
        %vm2616 = vcmp.eq.f32.partialorder %v2613, %v2615
        %v2617 = vsel %vm2616, %v2612, -inf
        %2618 = vmax.xlane.f32.xlu0 %v2617
        %v2619 = vpop.xlane.xlu0 %2618
        %v2620 = vcvt.f32.s32 %v2619
        %v2621 = vcvt.f32.s32 %v2615
        %v2622 = vshll.u32 %v2621, 16
        %v2623 = vadd.s32 %v2622, %v2620
        %v2624 = vand.u32 %v2581, 65535
        %v2625 = vshra.s32 %v2581, 16
        %v2626 = vcvt.s32.f32 %v2624
        %v2627 = vcvt.s32.f32 %v2625
        %2628 = vmax.xlane.f32.xlu0 %v2627
        %v2629 = vpop.xlane.xlu0 %2628
        %vm2630 = vcmp.eq.f32.partialorder %v2627, %v2629
        %v2631 = vsel %vm2630, %v2626, -inf
        %2632 = vmax.xlane.f32.xlu0 %v2631
        %v2633 = vpop.xlane.xlu0 %2632
        %v2634 = vcvt.f32.s32 %v2633
        %v2635 = vcvt.f32.s32 %v2629
        %v2636 = vshll.u32 %v2635, 16
        %v2637 = vadd.s32 %v2636, %v2634
        %vm2638 = vcmp.ge.s32.totalorder %v2566, %v2595
        %vm2639 = vcmp.ge.s32.totalorder %v2567, %v2595
        %vm2640 = vcmp.ge.s32.totalorder %v2568, %v2609
        %vm2641 = vcmp.ge.s32.totalorder %v2569, %v2609
        %vm2642 = vcmp.ge.s32.totalorder %v2570, %v2623
        %vm2643 = vcmp.ge.s32.totalorder %v2571, %v2623
        %vm2644 = vcmp.ge.s32.totalorder %v2572, %v2637
        %vm2645 = vcmp.ge.s32.totalorder %v2573, %v2637
        %v2646 = vsel %vm2638, 4294967295, %v2566
        %v2647 = vsel %vm2639, 4294967295, %v2567
        %v2648 = vsel %vm2640, 4294967295, %v2568
        %v2649 = vsel %vm2641, 4294967295, %v2569
        %v2650 = vsel %vm2642, 4294967295, %v2570
        %v2651 = vsel %vm2643, 4294967295, %v2571
        %v2652 = vsel %vm2644, 4294967295, %v2572
        %v2653 = vsel %vm2645, 4294967295, %v2573
        %vm2654 = vcmp.gt.s32.totalorder %v2646, %v2647
        %v2655 = vsel %vm2654, %v2646, %v2647
        %vm2656 = vcmp.gt.s32.totalorder %v2648, %v2649
        %v2657 = vsel %vm2656, %v2648, %v2649
        %vm2658 = vcmp.gt.s32.totalorder %v2650, %v2651
        %v2659 = vsel %vm2658, %v2650, %v2651
        %vm2660 = vcmp.gt.s32.totalorder %v2652, %v2653
        %v2661 = vsel %vm2660, %v2652, %v2653
        %v2662 = vand.u32 %v2655, 65535
        %v2663 = vshra.s32 %v2655, 16
        %v2664 = vcvt.s32.f32 %v2662
        %v2665 = vcvt.s32.f32 %v2663
        %2666 = vmax.xlane.f32.xlu0 %v2665
        %v2667 = vpop.xlane.xlu0 %2666
        %vm2668 = vcmp.eq.f32.partialorder %v2665, %v2667
        %v2669 = vsel %vm2668, %v2664, -inf
        %2670 = vmax.xlane.f32.xlu0 %v2669
        %v2671 = vpop.xlane.xlu0 %2670
        %v2672 = vcvt.f32.s32 %v2671
        %v2673 = vcvt.f32.s32 %v2667
        %v2674 = vshll.u32 %v2673, 16
        %v2675 = vadd.s32 %v2674, %v2672
        %v2676 = vand.u32 %v2657, 65535
        %v2677 = vshra.s32 %v2657, 16
        %v2678 = vcvt.s32.f32 %v2676
        %v2679 = vcvt.s32.f32 %v2677
        %2680 = vmax.xlane.f32.xlu0 %v2679
        %v2681 = vpop.xlane.xlu0 %2680
        %vm2682 = vcmp.eq.f32.partialorder %v2679, %v2681
        %v2683 = vsel %vm2682, %v2678, -inf
        %2684 = vmax.xlane.f32.xlu0 %v2683
        %v2685 = vpop.xlane.xlu0 %2684
        %v2686 = vcvt.f32.s32 %v2685
        %v2687 = vcvt.f32.s32 %v2681
        %v2688 = vshll.u32 %v2687, 16
        %v2689 = vadd.s32 %v2688, %v2686
        %v2690 = vand.u32 %v2659, 65535
        %v2691 = vshra.s32 %v2659, 16
        %v2692 = vcvt.s32.f32 %v2690
        %v2693 = vcvt.s32.f32 %v2691
        %2694 = vmax.xlane.f32.xlu0 %v2693
        %v2695 = vpop.xlane.xlu0 %2694
        %vm2696 = vcmp.eq.f32.partialorder %v2693, %v2695
        %v2697 = vsel %vm2696, %v2692, -inf
        %2698 = vmax.xlane.f32.xlu0 %v2697
        %v2699 = vpop.xlane.xlu0 %2698
        %v2700 = vcvt.f32.s32 %v2699
        %v2701 = vcvt.f32.s32 %v2695
        %v2702 = vshll.u32 %v2701, 16
        %v2703 = vadd.s32 %v2702, %v2700
        %v2704 = vand.u32 %v2661, 65535
        %v2705 = vshra.s32 %v2661, 16
        %v2706 = vcvt.s32.f32 %v2704
        %v2707 = vcvt.s32.f32 %v2705
        %2708 = vmax.xlane.f32.xlu0 %v2707
        %v2709 = vpop.xlane.xlu0 %2708
        %vm2710 = vcmp.eq.f32.partialorder %v2707, %v2709
        %v2711 = vsel %vm2710, %v2706, -inf
        %2712 = vmax.xlane.f32.xlu0 %v2711
        %v2713 = vpop.xlane.xlu0 %2712
        %v2714 = vcvt.f32.s32 %v2713
        %v2715 = vcvt.f32.s32 %v2709
        %v2716 = vshll.u32 %v2715, 16
        %v2717 = vadd.s32 %v2716, %v2714
        %vm2718 = vcmp.ge.s32.totalorder %v2646, %v2675
        %vm2719 = vcmp.ge.s32.totalorder %v2647, %v2675
        %vm2720 = vcmp.ge.s32.totalorder %v2648, %v2689
        %vm2721 = vcmp.ge.s32.totalorder %v2649, %v2689
        %vm2722 = vcmp.ge.s32.totalorder %v2650, %v2703
        %vm2723 = vcmp.ge.s32.totalorder %v2651, %v2703
        %vm2724 = vcmp.ge.s32.totalorder %v2652, %v2717
        %vm2725 = vcmp.ge.s32.totalorder %v2653, %v2717
        %v2726 = vsel %vm2718, 4294967295, %v2646
        %v2727 = vsel %vm2719, 4294967295, %v2647
        %v2728 = vsel %vm2720, 4294967295, %v2648
        %v2729 = vsel %vm2721, 4294967295, %v2649
        %v2730 = vsel %vm2722, 4294967295, %v2650
        %v2731 = vsel %vm2723, 4294967295, %v2651
        %v2732 = vsel %vm2724, 4294967295, %v2652
        %v2733 = vsel %vm2725, 4294967295, %v2653
        %vm2734 = vcmp.gt.s32.totalorder %v2726, %v2727
        %v2735 = vsel %vm2734, %v2726, %v2727
        %vm2736 = vcmp.gt.s32.totalorder %v2728, %v2729
        %v2737 = vsel %vm2736, %v2728, %v2729
        %vm2738 = vcmp.gt.s32.totalorder %v2730, %v2731
        %v2739 = vsel %vm2738, %v2730, %v2731
        %vm2740 = vcmp.gt.s32.totalorder %v2732, %v2733
        %v2741 = vsel %vm2740, %v2732, %v2733
        %v2742 = vand.u32 %v2735, 65535
        %v2743 = vshra.s32 %v2735, 16
        %v2744 = vcvt.s32.f32 %v2742
        %v2745 = vcvt.s32.f32 %v2743
        %2746 = vmax.xlane.f32.xlu0 %v2745
        %v2747 = vpop.xlane.xlu0 %2746
        %vm2748 = vcmp.eq.f32.partialorder %v2745, %v2747
        %v2749 = vsel %vm2748, %v2744, -inf
        %2750 = vmax.xlane.f32.xlu0 %v2749
        %v2751 = vpop.xlane.xlu0 %2750
        %v2752 = vcvt.f32.s32 %v2751
        %v2753 = vcvt.f32.s32 %v2747
        %v2754 = vshll.u32 %v2753, 16
        %v2755 = vadd.s32 %v2754, %v2752
        %v2756 = vand.u32 %v2737, 65535
        %v2757 = vshra.s32 %v2737, 16
        %v2758 = vcvt.s32.f32 %v2756
        %v2759 = vcvt.s32.f32 %v2757
        %2760 = vmax.xlane.f32.xlu0 %v2759
        %v2761 = vpop.xlane.xlu0 %2760
        %vm2762 = vcmp.eq.f32.partialorder %v2759, %v2761
        %v2763 = vsel %vm2762, %v2758, -inf
        %2764 = vmax.xlane.f32.xlu0 %v2763
        %v2765 = vpop.xlane.xlu0 %2764
        %v2766 = vcvt.f32.s32 %v2765
        %v2767 = vcvt.f32.s32 %v2761
        %v2768 = vshll.u32 %v2767, 16
        %v2769 = vadd.s32 %v2768, %v2766
        %v2770 = vand.u32 %v2739, 65535
        %v2771 = vshra.s32 %v2739, 16
        %v2772 = vcvt.s32.f32 %v2770
        %v2773 = vcvt.s32.f32 %v2771
        %2774 = vmax.xlane.f32.xlu0 %v2773
        %v2775 = vpop.xlane.xlu0 %2774
        %vm2776 = vcmp.eq.f32.partialorder %v2773, %v2775
        %v2777 = vsel %vm2776, %v2772, -inf
        %2778 = vmax.xlane.f32.xlu0 %v2777
        %v2779 = vpop.xlane.xlu0 %2778
        %v2780 = vcvt.f32.s32 %v2779
        %v2781 = vcvt.f32.s32 %v2775
        %v2782 = vshll.u32 %v2781, 16
        %v2783 = vadd.s32 %v2782, %v2780
        %v2784 = vand.u32 %v2741, 65535
        %v2785 = vshra.s32 %v2741, 16
        %v2786 = vcvt.s32.f32 %v2784
        %v2787 = vcvt.s32.f32 %v2785
        %2788 = vmax.xlane.f32.xlu0 %v2787
        %v2789 = vpop.xlane.xlu0 %2788
        %vm2790 = vcmp.eq.f32.partialorder %v2787, %v2789
        %v2791 = vsel %vm2790, %v2786, -inf
        %2792 = vmax.xlane.f32.xlu0 %v2791
        %v2793 = vpop.xlane.xlu0 %2792
        %v2794 = vcvt.f32.s32 %v2793
        %v2795 = vcvt.f32.s32 %v2789
        %v2796 = vshll.u32 %v2795, 16
        %v2797 = vadd.s32 %v2796, %v2794
        %vm2798 = vcmp.ge.s32.totalorder %v2726, %v2755
        %vm2799 = vcmp.ge.s32.totalorder %v2727, %v2755
        %vm2800 = vcmp.ge.s32.totalorder %v2728, %v2769
        %vm2801 = vcmp.ge.s32.totalorder %v2729, %v2769
        %vm2802 = vcmp.ge.s32.totalorder %v2730, %v2783
        %vm2803 = vcmp.ge.s32.totalorder %v2731, %v2783
        %vm2804 = vcmp.ge.s32.totalorder %v2732, %v2797
        %vm2805 = vcmp.ge.s32.totalorder %v2733, %v2797
        %v2806 = vsel %vm2798, 4294967295, %v2726
        %v2807 = vsel %vm2799, 4294967295, %v2727
        %v2808 = vsel %vm2800, 4294967295, %v2728
        %v2809 = vsel %vm2801, 4294967295, %v2729
        %v2810 = vsel %vm2802, 4294967295, %v2730
        %v2811 = vsel %vm2803, 4294967295, %v2731
        %v2812 = vsel %vm2804, 4294967295, %v2732
        %v2813 = vsel %vm2805, 4294967295, %v2733
        %vm2814 = vcmp.gt.s32.totalorder %v2806, %v2807
        %v2815 = vsel %vm2814, %v2806, %v2807
        %vm2816 = vcmp.gt.s32.totalorder %v2808, %v2809
        %v2817 = vsel %vm2816, %v2808, %v2809
        %vm2818 = vcmp.gt.s32.totalorder %v2810, %v2811
        %v2819 = vsel %vm2818, %v2810, %v2811
        %vm2820 = vcmp.gt.s32.totalorder %v2812, %v2813
        %v2821 = vsel %vm2820, %v2812, %v2813
        %v2822 = vand.u32 %v2815, 65535
        %v2823 = vshra.s32 %v2815, 16
        %v2824 = vcvt.s32.f32 %v2822
        %v2825 = vcvt.s32.f32 %v2823
        %2826 = vmax.xlane.f32.xlu0 %v2825
        %v2827 = vpop.xlane.xlu0 %2826
        %vm2828 = vcmp.eq.f32.partialorder %v2825, %v2827
        %v2829 = vsel %vm2828, %v2824, -inf
        %2830 = vmax.xlane.f32.xlu0 %v2829
        %v2831 = vpop.xlane.xlu0 %2830
        %v2832 = vcvt.f32.s32 %v2831
        %v2833 = vcvt.f32.s32 %v2827
        %v2834 = vshll.u32 %v2833, 16
        %v2835 = vadd.s32 %v2834, %v2832
        %v2836 = vand.u32 %v2817, 65535
        %v2837 = vshra.s32 %v2817, 16
        %v2838 = vcvt.s32.f32 %v2836
        %v2839 = vcvt.s32.f32 %v2837
        %2840 = vmax.xlane.f32.xlu0 %v2839
        %v2841 = vpop.xlane.xlu0 %2840
        %vm2842 = vcmp.eq.f32.partialorder %v2839, %v2841
        %v2843 = vsel %vm2842, %v2838, -inf
        %2844 = vmax.xlane.f32.xlu0 %v2843
        %v2845 = vpop.xlane.xlu0 %2844
        %v2846 = vcvt.f32.s32 %v2845
        %v2847 = vcvt.f32.s32 %v2841
        %v2848 = vshll.u32 %v2847, 16
        %v2849 = vadd.s32 %v2848, %v2846
        %v2850 = vand.u32 %v2819, 65535
        %v2851 = vshra.s32 %v2819, 16
        %v2852 = vcvt.s32.f32 %v2850
        %v2853 = vcvt.s32.f32 %v2851
        %2854 = vmax.xlane.f32.xlu0 %v2853
        %v2855 = vpop.xlane.xlu0 %2854
        %vm2856 = vcmp.eq.f32.partialorder %v2853, %v2855
        %v2857 = vsel %vm2856, %v2852, -inf
        %2858 = vmax.xlane.f32.xlu0 %v2857
        %v2859 = vpop.xlane.xlu0 %2858
        %v2860 = vcvt.f32.s32 %v2859
        %v2861 = vcvt.f32.s32 %v2855
        %v2862 = vshll.u32 %v2861, 16
        %v2863 = vadd.s32 %v2862, %v2860
        %v2864 = vand.u32 %v2821, 65535
        %v2865 = vshra.s32 %v2821, 16
        %v2866 = vcvt.s32.f32 %v2864
        %v2867 = vcvt.s32.f32 %v2865
        %2868 = vmax.xlane.f32.xlu0 %v2867
        %v2869 = vpop.xlane.xlu0 %2868
        %vm2870 = vcmp.eq.f32.partialorder %v2867, %v2869
        %v2871 = vsel %vm2870, %v2866, -inf
        %2872 = vmax.xlane.f32.xlu0 %v2871
        %v2873 = vpop.xlane.xlu0 %2872
        %v2874 = vcvt.f32.s32 %v2873
        %v2875 = vcvt.f32.s32 %v2869
        %v2876 = vshll.u32 %v2875, 16
        %v2877 = vadd.s32 %v2876, %v2874
        %vm2878 = vcmp.ge.s32.totalorder %v2806, %v2835
        %vm2879 = vcmp.ge.s32.totalorder %v2807, %v2835
        %vm2880 = vcmp.ge.s32.totalorder %v2808, %v2849
        %vm2881 = vcmp.ge.s32.totalorder %v2809, %v2849
        %vm2882 = vcmp.ge.s32.totalorder %v2810, %v2863
        %vm2883 = vcmp.ge.s32.totalorder %v2811, %v2863
        %vm2884 = vcmp.ge.s32.totalorder %v2812, %v2877
        %vm2885 = vcmp.ge.s32.totalorder %v2813, %v2877
        %v2886 = vsel %vm2878, 4294967295, %v2806
        %v2887 = vsel %vm2879, 4294967295, %v2807
        %v2888 = vsel %vm2880, 4294967295, %v2808
        %v2889 = vsel %vm2881, 4294967295, %v2809
        %v2890 = vsel %vm2882, 4294967295, %v2810
        %v2891 = vsel %vm2883, 4294967295, %v2811
        %v2892 = vsel %vm2884, 4294967295, %v2812
        %v2893 = vsel %vm2885, 4294967295, %v2813
        %vm2894 = vcmp.gt.s32.totalorder %v2886, %v2887
        %v2895 = vsel %vm2894, %v2886, %v2887
        %vm2896 = vcmp.gt.s32.totalorder %v2888, %v2889
        %v2897 = vsel %vm2896, %v2888, %v2889
        %vm2898 = vcmp.gt.s32.totalorder %v2890, %v2891
        %v2899 = vsel %vm2898, %v2890, %v2891
        %vm2900 = vcmp.gt.s32.totalorder %v2892, %v2893
        %v2901 = vsel %vm2900, %v2892, %v2893
        %v2902 = vand.u32 %v2895, 65535
        %v2903 = vshra.s32 %v2895, 16
        %v2904 = vcvt.s32.f32 %v2902
        %v2905 = vcvt.s32.f32 %v2903
        %2906 = vmax.xlane.f32.xlu0 %v2905
        %v2907 = vpop.xlane.xlu0 %2906
        %vm2908 = vcmp.eq.f32.partialorder %v2905, %v2907
        %v2909 = vsel %vm2908, %v2904, -inf
        %2910 = vmax.xlane.f32.xlu0 %v2909
        %v2911 = vpop.xlane.xlu0 %2910
        %v2912 = vcvt.f32.s32 %v2911
        %v2913 = vcvt.f32.s32 %v2907
        %v2914 = vshll.u32 %v2913, 16
        %v2915 = vadd.s32 %v2914, %v2912
        %v2916 = vand.u32 %v2897, 65535
        %v2917 = vshra.s32 %v2897, 16
        %v2918 = vcvt.s32.f32 %v2916
        %v2919 = vcvt.s32.f32 %v2917
        %2920 = vmax.xlane.f32.xlu0 %v2919
        %v2921 = vpop.xlane.xlu0 %2920
        %vm2922 = vcmp.eq.f32.partialorder %v2919, %v2921
        %v2923 = vsel %vm2922, %v2918, -inf
        %2924 = vmax.xlane.f32.xlu0 %v2923
        %v2925 = vpop.xlane.xlu0 %2924
        %v2926 = vcvt.f32.s32 %v2925
        %v2927 = vcvt.f32.s32 %v2921
        %v2928 = vshll.u32 %v2927, 16
        %v2929 = vadd.s32 %v2928, %v2926
        %v2930 = vand.u32 %v2899, 65535
        %v2931 = vshra.s32 %v2899, 16
        %v2932 = vcvt.s32.f32 %v2930
        %v2933 = vcvt.s32.f32 %v2931
        %2934 = vmax.xlane.f32.xlu0 %v2933
        %v2935 = vpop.xlane.xlu0 %2934
        %vm2936 = vcmp.eq.f32.partialorder %v2933, %v2935
        %v2937 = vsel %vm2936, %v2932, -inf
        %2938 = vmax.xlane.f32.xlu0 %v2937
        %v2939 = vpop.xlane.xlu0 %2938
        %v2940 = vcvt.f32.s32 %v2939
        %v2941 = vcvt.f32.s32 %v2935
        %v2942 = vshll.u32 %v2941, 16
        %v2943 = vadd.s32 %v2942, %v2940
        %v2944 = vand.u32 %v2901, 65535
        %v2945 = vshra.s32 %v2901, 16
        %v2946 = vcvt.s32.f32 %v2944
        %v2947 = vcvt.s32.f32 %v2945
        %2948 = vmax.xlane.f32.xlu0 %v2947
        %v2949 = vpop.xlane.xlu0 %2948
        %vm2950 = vcmp.eq.f32.partialorder %v2947, %v2949
        %v2951 = vsel %vm2950, %v2946, -inf
        %2952 = vmax.xlane.f32.xlu0 %v2951
        %v2953 = vpop.xlane.xlu0 %2952
        %v2954 = vcvt.f32.s32 %v2953
        %v2955 = vcvt.f32.s32 %v2949
        %v2956 = vshll.u32 %v2955, 16
        %v2957 = vadd.s32 %v2956, %v2954
        %vm2958 = vcmp.ge.s32.totalorder %v2886, %v2915
        %vm2959 = vcmp.ge.s32.totalorder %v2887, %v2915
        %vm2960 = vcmp.ge.s32.totalorder %v2888, %v2929
        %vm2961 = vcmp.ge.s32.totalorder %v2889, %v2929
        %vm2962 = vcmp.ge.s32.totalorder %v2890, %v2943
        %vm2963 = vcmp.ge.s32.totalorder %v2891, %v2943
        %vm2964 = vcmp.ge.s32.totalorder %v2892, %v2957
        %vm2965 = vcmp.ge.s32.totalorder %v2893, %v2957
        %v2966 = vsel %vm2958, 4294967295, %v2886
        %v2967 = vsel %vm2959, 4294967295, %v2887
        %v2968 = vsel %vm2960, 4294967295, %v2888
        %v2969 = vsel %vm2961, 4294967295, %v2889
        %v2970 = vsel %vm2962, 4294967295, %v2890
        %v2971 = vsel %vm2963, 4294967295, %v2891
        %v2972 = vsel %vm2964, 4294967295, %v2892
        %v2973 = vsel %vm2965, 4294967295, %v2893
        %vm2974 = vcmp.gt.s32.totalorder %v2966, %v2967
        %v2975 = vsel %vm2974, %v2966, %v2967
        %vm2976 = vcmp.gt.s32.totalorder %v2968, %v2969
        %v2977 = vsel %vm2976, %v2968, %v2969
        %vm2978 = vcmp.gt.s32.totalorder %v2970, %v2971
        %v2979 = vsel %vm2978, %v2970, %v2971
        %vm2980 = vcmp.gt.s32.totalorder %v2972, %v2973
        %v2981 = vsel %vm2980, %v2972, %v2973
        %v2982 = vand.u32 %v2975, 65535
        %v2983 = vshra.s32 %v2975, 16
        %v2984 = vcvt.s32.f32 %v2982
        %v2985 = vcvt.s32.f32 %v2983
        %2986 = vmax.xlane.f32.xlu0 %v2985
        %v2987 = vpop.xlane.xlu0 %2986
        %vm2988 = vcmp.eq.f32.partialorder %v2985, %v2987
        %v2989 = vsel %vm2988, %v2984, -inf
        %2990 = vmax.xlane.f32.xlu0 %v2989
        %v2991 = vpop.xlane.xlu0 %2990
        %v2992 = vcvt.f32.s32 %v2991
        %v2993 = vcvt.f32.s32 %v2987
        %v2994 = vshll.u32 %v2993, 16
        %v2995 = vadd.s32 %v2994, %v2992
        %v2996 = vand.u32 %v2977, 65535
        %v2997 = vshra.s32 %v2977, 16
        %v2998 = vcvt.s32.f32 %v2996
        %v2999 = vcvt.s32.f32 %v2997
        %3000 = vmax.xlane.f32.xlu0 %v2999
        %v3001 = vpop.xlane.xlu0 %3000
        %vm3002 = vcmp.eq.f32.partialorder %v2999, %v3001
        %v3003 = vsel %vm3002, %v2998, -inf
        %3004 = vmax.xlane.f32.xlu0 %v3003
        %v3005 = vpop.xlane.xlu0 %3004
        %v3006 = vcvt.f32.s32 %v3005
        %v3007 = vcvt.f32.s32 %v3001
        %v3008 = vshll.u32 %v3007, 16
        %v3009 = vadd.s32 %v3008, %v3006
        %v3010 = vand.u32 %v2979, 65535
        %v3011 = vshra.s32 %v2979, 16
        %v3012 = vcvt.s32.f32 %v3010
        %v3013 = vcvt.s32.f32 %v3011
        %3014 = vmax.xlane.f32.xlu0 %v3013
        %v3015 = vpop.xlane.xlu0 %3014
        %vm3016 = vcmp.eq.f32.partialorder %v3013, %v3015
        %v3017 = vsel %vm3016, %v3012, -inf
        %3018 = vmax.xlane.f32.xlu0 %v3017
        %v3019 = vpop.xlane.xlu0 %3018
        %v3020 = vcvt.f32.s32 %v3019
        %v3021 = vcvt.f32.s32 %v3015
        %v3022 = vshll.u32 %v3021, 16
        %v3023 = vadd.s32 %v3022, %v3020
        %v3024 = vand.u32 %v2981, 65535
        %v3025 = vshra.s32 %v2981, 16
        %v3026 = vcvt.s32.f32 %v3024
        %v3027 = vcvt.s32.f32 %v3025
        %3028 = vmax.xlane.f32.xlu0 %v3027
        %v3029 = vpop.xlane.xlu0 %3028
        %vm3030 = vcmp.eq.f32.partialorder %v3027, %v3029
        %v3031 = vsel %vm3030, %v3026, -inf
        %3032 = vmax.xlane.f32.xlu0 %v3031
        %v3033 = vpop.xlane.xlu0 %3032
        %v3034 = vcvt.f32.s32 %v3033
        %v3035 = vcvt.f32.s32 %v3029
        %v3036 = vshll.u32 %v3035, 16
        %v3037 = vadd.s32 %v3036, %v3034
        %vm3038 = vcmp.ge.s32.totalorder %v2966, %v2995
        %vm3039 = vcmp.ge.s32.totalorder %v2967, %v2995
        %vm3040 = vcmp.ge.s32.totalorder %v2968, %v3009
        %vm3041 = vcmp.ge.s32.totalorder %v2969, %v3009
        %vm3042 = vcmp.ge.s32.totalorder %v2970, %v3023
        %vm3043 = vcmp.ge.s32.totalorder %v2971, %v3023
        %vm3044 = vcmp.ge.s32.totalorder %v2972, %v3037
        %vm3045 = vcmp.ge.s32.totalorder %v2973, %v3037
        %v3046 = vsel %vm3038, 4294967295, %v2966
        %v3047 = vsel %vm3039, 4294967295, %v2967
        %v3048 = vsel %vm3040, 4294967295, %v2968
        %v3049 = vsel %vm3041, 4294967295, %v2969
        %v3050 = vsel %vm3042, 4294967295, %v2970
        %v3051 = vsel %vm3043, 4294967295, %v2971
        %v3052 = vsel %vm3044, 4294967295, %v2972
        %v3053 = vsel %vm3045, 4294967295, %v2973
        %vm3054 = vcmp.gt.s32.totalorder %v3046, %v3047
        %v3055 = vsel %vm3054, %v3046, %v3047
        %vm3056 = vcmp.gt.s32.totalorder %v3048, %v3049
        %v3057 = vsel %vm3056, %v3048, %v3049
        %vm3058 = vcmp.gt.s32.totalorder %v3050, %v3051
        %v3059 = vsel %vm3058, %v3050, %v3051
        %vm3060 = vcmp.gt.s32.totalorder %v3052, %v3053
        %v3061 = vsel %vm3060, %v3052, %v3053
        %v3062 = vand.u32 %v3055, 65535
        %v3063 = vshra.s32 %v3055, 16
        %v3064 = vcvt.s32.f32 %v3062
        %v3065 = vcvt.s32.f32 %v3063
        %3066 = vmax.xlane.f32.xlu0 %v3065
        %v3067 = vpop.xlane.xlu0 %3066
        %vm3068 = vcmp.eq.f32.partialorder %v3065, %v3067
        %v3069 = vsel %vm3068, %v3064, -inf
        %3070 = vmax.xlane.f32.xlu0 %v3069
        %v3071 = vpop.xlane.xlu0 %3070
        %v3072 = vcvt.f32.s32 %v3071
        %v3073 = vcvt.f32.s32 %v3067
        %v3074 = vshll.u32 %v3073, 16
        %v3075 = vadd.s32 %v3074, %v3072
        %v3076 = vand.u32 %v3057, 65535
        %v3077 = vshra.s32 %v3057, 16
        %v3078 = vcvt.s32.f32 %v3076
        %v3079 = vcvt.s32.f32 %v3077
        %3080 = vmax.xlane.f32.xlu0 %v3079
        %v3081 = vpop.xlane.xlu0 %3080
        %vm3082 = vcmp.eq.f32.partialorder %v3079, %v3081
        %v3083 = vsel %vm3082, %v3078, -inf
        %3084 = vmax.xlane.f32.xlu0 %v3083
        %v3085 = vpop.xlane.xlu0 %3084
        %v3086 = vcvt.f32.s32 %v3085
        %v3087 = vcvt.f32.s32 %v3081
        %v3088 = vshll.u32 %v3087, 16
        %v3089 = vadd.s32 %v3088, %v3086
        %v3090 = vand.u32 %v3059, 65535
        %v3091 = vshra.s32 %v3059, 16
        %v3092 = vcvt.s32.f32 %v3090
        %v3093 = vcvt.s32.f32 %v3091
        %3094 = vmax.xlane.f32.xlu0 %v3093
        %v3095 = vpop.xlane.xlu0 %3094
        %vm3096 = vcmp.eq.f32.partialorder %v3093, %v3095
        %v3097 = vsel %vm3096, %v3092, -inf
        %3098 = vmax.xlane.f32.xlu0 %v3097
        %v3099 = vpop.xlane.xlu0 %3098
        %v3100 = vcvt.f32.s32 %v3099
        %v3101 = vcvt.f32.s32 %v3095
        %v3102 = vshll.u32 %v3101, 16
        %v3103 = vadd.s32 %v3102, %v3100
        %v3104 = vand.u32 %v3061, 65535
        %v3105 = vshra.s32 %v3061, 16
        %v3106 = vcvt.s32.f32 %v3104
        %v3107 = vcvt.s32.f32 %v3105
        %3108 = vmax.xlane.f32.xlu0 %v3107
        %v3109 = vpop.xlane.xlu0 %3108
        %vm3110 = vcmp.eq.f32.partialorder %v3107, %v3109
        %v3111 = vsel %vm3110, %v3106, -inf
        %3112 = vmax.xlane.f32.xlu0 %v3111
        %v3113 = vpop.xlane.xlu0 %3112
        %v3114 = vcvt.f32.s32 %v3113
        %v3115 = vcvt.f32.s32 %v3109
        %v3116 = vshll.u32 %v3115, 16
        %v3117 = vadd.s32 %v3116, %v3114
        %vm3118 = vcmp.ge.s32.totalorder %v3046, %v3075
        %vm3119 = vcmp.ge.s32.totalorder %v3047, %v3075
        %vm3120 = vcmp.ge.s32.totalorder %v3048, %v3089
        %vm3121 = vcmp.ge.s32.totalorder %v3049, %v3089
        %vm3122 = vcmp.ge.s32.totalorder %v3050, %v3103
        %vm3123 = vcmp.ge.s32.totalorder %v3051, %v3103
        %vm3124 = vcmp.ge.s32.totalorder %v3052, %v3117
        %vm3125 = vcmp.ge.s32.totalorder %v3053, %v3117
        %v3126 = vsel %vm3118, 4294967295, %v3046
        %v3127 = vsel %vm3119, 4294967295, %v3047
        %v3128 = vsel %vm3120, 4294967295, %v3048
        %v3129 = vsel %vm3121, 4294967295, %v3049
        %v3130 = vsel %vm3122, 4294967295, %v3050
        %v3131 = vsel %vm3123, 4294967295, %v3051
        %v3132 = vsel %vm3124, 4294967295, %v3052
        %v3133 = vsel %vm3125, 4294967295, %v3053
        %vm3134 = vcmp.gt.s32.totalorder %v3126, %v3127
        %v3135 = vsel %vm3134, %v3126, %v3127
        %vm3136 = vcmp.gt.s32.totalorder %v3128, %v3129
        %v3137 = vsel %vm3136, %v3128, %v3129
        %vm3138 = vcmp.gt.s32.totalorder %v3130, %v3131
        %v3139 = vsel %vm3138, %v3130, %v3131
        %vm3140 = vcmp.gt.s32.totalorder %v3132, %v3133
        %v3141 = vsel %vm3140, %v3132, %v3133
        %v3142 = vand.u32 %v3135, 65535
        %v3143 = vshra.s32 %v3135, 16
        %v3144 = vcvt.s32.f32 %v3142
        %v3145 = vcvt.s32.f32 %v3143
        %3146 = vmax.xlane.f32.xlu0 %v3145
        %v3147 = vpop.xlane.xlu0 %3146
        %vm3148 = vcmp.eq.f32.partialorder %v3145, %v3147
        %v3149 = vsel %vm3148, %v3144, -inf
        %3150 = vmax.xlane.f32.xlu0 %v3149
        %v3151 = vpop.xlane.xlu0 %3150
        %v3152 = vcvt.f32.s32 %v3151
        %v3153 = vcvt.f32.s32 %v3147
        %v3154 = vshll.u32 %v3153, 16
        %v3155 = vadd.s32 %v3154, %v3152
        %v3156 = vand.u32 %v3137, 65535
        %v3157 = vshra.s32 %v3137, 16
        %v3158 = vcvt.s32.f32 %v3156
        %v3159 = vcvt.s32.f32 %v3157
        %3160 = vmax.xlane.f32.xlu0 %v3159
        %v3161 = vpop.xlane.xlu0 %3160
        %vm3162 = vcmp.eq.f32.partialorder %v3159, %v3161
        %v3163 = vsel %vm3162, %v3158, -inf
        %3164 = vmax.xlane.f32.xlu0 %v3163
        %v3165 = vpop.xlane.xlu0 %3164
        %v3166 = vcvt.f32.s32 %v3165
        %v3167 = vcvt.f32.s32 %v3161
        %v3168 = vshll.u32 %v3167, 16
        %v3169 = vadd.s32 %v3168, %v3166
        %v3170 = vand.u32 %v3139, 65535
        %v3171 = vshra.s32 %v3139, 16
        %v3172 = vcvt.s32.f32 %v3170
        %v3173 = vcvt.s32.f32 %v3171
        %3174 = vmax.xlane.f32.xlu0 %v3173
        %v3175 = vpop.xlane.xlu0 %3174
        %vm3176 = vcmp.eq.f32.partialorder %v3173, %v3175
        %v3177 = vsel %vm3176, %v3172, -inf
        %3178 = vmax.xlane.f32.xlu0 %v3177
        %v3179 = vpop.xlane.xlu0 %3178
        %v3180 = vcvt.f32.s32 %v3179
        %v3181 = vcvt.f32.s32 %v3175
        %v3182 = vshll.u32 %v3181, 16
        %v3183 = vadd.s32 %v3182, %v3180
        %v3184 = vand.u32 %v3141, 65535
        %v3185 = vshra.s32 %v3141, 16
        %v3186 = vcvt.s32.f32 %v3184
        %v3187 = vcvt.s32.f32 %v3185
        %3188 = vmax.xlane.f32.xlu0 %v3187
        %v3189 = vpop.xlane.xlu0 %3188
        %vm3190 = vcmp.eq.f32.partialorder %v3187, %v3189
        %v3191 = vsel %vm3190, %v3186, -inf
        %3192 = vmax.xlane.f32.xlu0 %v3191
        %v3193 = vpop.xlane.xlu0 %3192
        %v3194 = vcvt.f32.s32 %v3193
        %v3195 = vcvt.f32.s32 %v3189
        %v3196 = vshll.u32 %v3195, 16
        %v3197 = vadd.s32 %v3196, %v3194
        %vm3198 = vcmp.ge.s32.totalorder %v1918, %v3155
        %vm3199 = vcmp.ge.s32.totalorder %v1919, %v3155
        %vm3200 = vcmp.ge.s32.totalorder %v1920, %v3169
        %vm3201 = vcmp.ge.s32.totalorder %v1921, %v3169
        %vm3202 = vcmp.ge.s32.totalorder %v1922, %v3183
        %vm3203 = vcmp.ge.s32.totalorder %v1923, %v3183
        %vm3204 = vcmp.ge.s32.totalorder %v1924, %v3197
        %vm3205 = vcmp.ge.s32.totalorder %v1925, %v3197
        %v3206 = vsel %vm3198, %v1918, 0.0
        %v3207 = vsel %vm3199, %v1919, 0.0
        %v3208 = vsel %vm3200, %v1920, 0.0
        %v3209 = vsel %vm3201, %v1921, 0.0
        %v3210 = vsel %vm3202, %v1922, 0.0
        %v3211 = vsel %vm3203, %v1923, 0.0
        %v3212 = vsel %vm3204, %v1924, 0.0
        %v3213 = vsel %vm3205, %v1925, 0.0
        %3214 = vst [vmem:[%s1917] sm:$0xff] %v3206
        %3215 = vst [vmem:[%s1917 + $0x8] sm:$0xff] %v3207
        %3216 = vst [vmem:[%s1917 + $0x10] sm:$0xff] %v3208
        %3217 = vst [vmem:[%s1917 + $0x18] sm:$0xff] %v3209
        %3218 = vst [vmem:[%s1917 + $0x20] sm:$0xff] %v3210
        %3219 = vst [vmem:[%s1917 + $0x28] sm:$0xff] %v3211
        %3220 = vst [vmem:[%s1917 + $0x30] sm:$0xff] %v3212
        %3221 = vst [vmem:[%s1917 + $0x38] sm:$0xff] %v3213
        %s3222 = smul.addr %s1915, 8
        %s3223 = scalar_lea.vmem %s391, %s3222 [#allocation5]
        %3224 = vst [vmem:[%s3223] sm:$0xff] %v3206
        %3225 = vst [vmem:[%s3223 + $0x8] sm:$0xff] %v3207
        %3226 = vst [vmem:[%s3223 + $0x10] sm:$0xff] %v3208
        %3227 = vst [vmem:[%s3223 + $0x18] sm:$0xff] %v3209
        %3228 = vst [vmem:[%s3223 + $0x20] sm:$0xff] %v3210
        %3229 = vst [vmem:[%s3223 + $0x28] sm:$0xff] %v3211
        %3230 = vst [vmem:[%s3223 + $0x30] sm:$0xff] %v3212
        %3231 = vst [vmem:[%s3223 + $0x38] sm:$0xff] %v3213
        %v3232 = vld [vmem:[#allocation2] sm:$0xff]
        %v3233 = vld [vmem:[#allocation2 + $0x8] sm:$0xff]
        %v3234 = vld [vmem:[#allocation2 + $0x10] sm:$0xff]
        %v3235 = vld [vmem:[#allocation2 + $0x18] sm:$0xff]
        %v3236 = vld [vmem:[#allocation2 + $0x20] sm:$0xff]
        %v3237 = vld [vmem:[#allocation2 + $0x28] sm:$0xff]
        %v3238 = vld [vmem:[#allocation2 + $0x30] sm:$0xff]
        %v3239 = vld [vmem:[#allocation2 + $0x38] sm:$0xff]
        %v3240 = vld [vmem:[#allocation2 + $0x40] sm:$0xff]
        %v3241 = vld [vmem:[#allocation2 + $0x48] sm:$0xff]
        %v3242 = vld [vmem:[#allocation2 + $0x50] sm:$0xff]
        %v3243 = vld [vmem:[#allocation2 + $0x58] sm:$0xff]
        %v3244 = vld [vmem:[#allocation2 + $0x60] sm:$0xff]
        %v3245 = vld [vmem:[#allocation2 + $0x68] sm:$0xff]
        %v3246 = vld [vmem:[#allocation2 + $0x70] sm:$0xff]
        %v3247 = vld [vmem:[#allocation2 + $0x78] sm:$0xff]
        %v3248 = vld [vmem:[%s3] sm:$0xff]
        %v3249 = vld [vmem:[%s3 + $0x8] sm:$0xff]
        %v3250 = vld [vmem:[%s3 + $0x10] sm:$0xff]
        %v3251 = vld [vmem:[%s3 + $0x18] sm:$0xff]
        %v3252 = vld [vmem:[%s3 + $0x20] sm:$0xff]
        %v3253 = vld [vmem:[%s3 + $0x28] sm:$0xff]
        %v3254 = vld [vmem:[%s3 + $0x30] sm:$0xff]
        %v3255 = vld [vmem:[%s3 + $0x38] sm:$0xff]
        %v3256 = vld [vmem:[%s3 + $0x40] sm:$0xff]
        %v3257 = vld [vmem:[%s3 + $0x48] sm:$0xff]
        %v3258 = vld [vmem:[%s3 + $0x50] sm:$0xff]
        %v3259 = vld [vmem:[%s3 + $0x58] sm:$0xff]
        %v3260 = vld [vmem:[%s3 + $0x60] sm:$0xff]
        %v3261 = vld [vmem:[%s3 + $0x68] sm:$0xff]
        %v3262 = vld [vmem:[%s3 + $0x70] sm:$0xff]
        %v3263 = vld [vmem:[%s3 + $0x78] sm:$0xff]
        %v3264 = vld [vmem:[%s3 + $0x80] sm:$0xff]
        %v3265 = vld [vmem:[%s3 + $0x88] sm:$0xff]
        %v3266 = vld [vmem:[%s3 + $0x90] sm:$0xff]
        %v3267 = vld [vmem:[%s3 + $0x98] sm:$0xff]
        %v3268 = vld [vmem:[%s3 + $0xa0] sm:$0xff]
        %v3269 = vld [vmem:[%s3 + $0xa8] sm:$0xff]
        %v3270 = vld [vmem:[%s3 + $0xb0] sm:$0xff]
        %v3271 = vld [vmem:[%s3 + $0xb8] sm:$0xff]
        %v3272 = vld [vmem:[%s3 + $0xc0] sm:$0xff]
        %v3273 = vld [vmem:[%s3 + $0xc8] sm:$0xff]
        %v3274 = vld [vmem:[%s3 + $0xd0] sm:$0xff]
        %v3275 = vld [vmem:[%s3 + $0xd8] sm:$0xff]
        %v3276 = vld [vmem:[%s3 + $0xe0] sm:$0xff]
        %v3277 = vld [vmem:[%s3 + $0xe8] sm:$0xff]
        %v3278 = vld [vmem:[%s3 + $0xf0] sm:$0xff]
        %v3279 = vld [vmem:[%s3 + $0xf8] sm:$0xff]
        %v3280 = vld [vmem:[%s4] sm:$0xff]
        %v3281 = vld [vmem:[%s4 + $0x8] sm:$0xff]
        %v3282 = vld [vmem:[%s4 + $0x10] sm:$0xff]
        %v3283 = vld [vmem:[%s4 + $0x18] sm:$0xff]
        %v3284 = vld [vmem:[%s4 + $0x20] sm:$0xff]
        %v3285 = vld [vmem:[%s4 + $0x28] sm:$0xff]
        %v3286 = vld [vmem:[%s4 + $0x30] sm:$0xff]
        %v3287 = vld [vmem:[%s4 + $0x38] sm:$0xff]
        %v3288 = vld [vmem:[%s4 + $0x40] sm:$0xff]
        %v3289 = vld [vmem:[%s4 + $0x48] sm:$0xff]
        %v3290 = vld [vmem:[%s4 + $0x50] sm:$0xff]
        %v3291 = vld [vmem:[%s4 + $0x58] sm:$0xff]
        %v3292 = vld [vmem:[%s4 + $0x60] sm:$0xff]
        %v3293 = vld [vmem:[%s4 + $0x68] sm:$0xff]
        %v3294 = vld [vmem:[%s4 + $0x70] sm:$0xff]
        %v3295 = vld [vmem:[%s4 + $0x78] sm:$0xff]
        %v3296 = vld [vmem:[%s4 + $0x80] sm:$0xff]
        %v3297 = vld [vmem:[%s4 + $0x88] sm:$0xff]
        %v3298 = vld [vmem:[%s4 + $0x90] sm:$0xff]
        %v3299 = vld [vmem:[%s4 + $0x98] sm:$0xff]
        %v3300 = vld [vmem:[%s4 + $0xa0] sm:$0xff]
        %v3301 = vld [vmem:[%s4 + $0xa8] sm:$0xff]
        %v3302 = vld [vmem:[%s4 + $0xb0] sm:$0xff]
        %v3303 = vld [vmem:[%s4 + $0xb8] sm:$0xff]
        %v3304 = vld [vmem:[%s4 + $0xc0] sm:$0xff]
        %v3305 = vld [vmem:[%s4 + $0xc8] sm:$0xff]
        %v3306 = vld [vmem:[%s4 + $0xd0] sm:$0xff]
        %v3307 = vld [vmem:[%s4 + $0xd8] sm:$0xff]
        %v3308 = vld [vmem:[%s4 + $0xe0] sm:$0xff]
        %v3309 = vld [vmem:[%s4 + $0xe8] sm:$0xff]
        %v3310 = vld [vmem:[%s4 + $0xf0] sm:$0xff]
        %v3311 = vld [vmem:[%s4 + $0xf8] sm:$0xff]
        %3312 = vmatprep.subr.mxu0 0.0
        %3313 = vmatpush1.msra.mxu0 %v3280
        %3314 = vmatprep.subr.mxu0 0.0
        %3315 = vmatpush1.msra.mxu0 %v3281
        %3316 = vmatprep.subr.mxu0 0.0
        %3317 = vmatpush1.msra.mxu0 %v3282
        %3318 = vmatprep.subr.mxu0 0.0
        %3319 = vmatpush1.msra.mxu0 %v3283
        %3320 = vmatprep.subr.mxu0 0.0
        %3321 = vmatpush1.msra.mxu0 %v3284
        %3322 = vmatprep.subr.mxu0 0.0
        %3323 = vmatpush1.msra.mxu0 %v3285
        %3324 = vmatprep.subr.mxu0 0.0
        %3325 = vmatpush1.msra.mxu0 %v3286
        %3326 = vmatprep.subr.mxu0 0.0
        %3327 = vmatpush1.msra.mxu0 %v3287
        %3328 = vmatprep.subr.mxu0 0.0
        %3329 = vmatpush1.msra.mxu0 %v3288
        %3330 = vmatprep.subr.mxu0 0.0
        %3331 = vmatpush1.msra.mxu0 %v3289
        %3332 = vmatprep.subr.mxu0 0.0
        %3333 = vmatpush1.msra.mxu0 %v3290
        %3334 = vmatprep.subr.mxu0 0.0
        %3335 = vmatpush1.msra.mxu0 %v3291
        %3336 = vmatprep.subr.mxu0 0.0
        %3337 = vmatpush1.msra.mxu0 %v3292
        %3338 = vmatprep.subr.mxu0 0.0
        %3339 = vmatpush1.msra.mxu0 %v3293
        %3340 = vmatprep.subr.mxu0 0.0
        %3341 = vmatpush1.msra.mxu0 %v3294
        %3342 = vmatprep.subr.mxu0 0.0
        %3343 = vmatpush1.msra.mxu0 %v3295
        %3344 = vmatprep.subr.mxu0 0.0
        %3345 = vmatpush1.msra.mxu0 %v3296
        %3346 = vmatprep.subr.mxu0 0.0
        %3347 = vmatpush1.msra.mxu0 %v3297
        %3348 = vmatprep.subr.mxu0 0.0
        %3349 = vmatpush1.msra.mxu0 %v3298
        %3350 = vmatprep.subr.mxu0 0.0
        %3351 = vmatpush1.msra.mxu0 %v3299
        %3352 = vmatprep.subr.mxu0 0.0
        %3353 = vmatpush1.msra.mxu0 %v3300
        %3354 = vmatprep.subr.mxu0 0.0
        %3355 = vmatpush1.msra.mxu0 %v3301
        %3356 = vmatprep.subr.mxu0 0.0
        %3357 = vmatpush1.msra.mxu0 %v3302
        %3358 = vmatprep.subr.mxu0 0.0
        %3359 = vmatpush1.msra.mxu0 %v3303
        %3360 = vmatprep.subr.mxu0 0.0
        %3361 = vmatpush1.msra.mxu0 %v3304
        %3362 = vmatprep.subr.mxu0 0.0
        %3363 = vmatpush1.msra.mxu0 %v3305
        %3364 = vmatprep.subr.mxu0 0.0
        %3365 = vmatpush1.msra.mxu0 %v3306
        %3366 = vmatprep.subr.mxu0 0.0
        %3367 = vmatpush1.msra.mxu0 %v3307
        %3368 = vmatprep.subr.mxu0 0.0
        %3369 = vmatpush1.msra.mxu0 %v3308
        %3370 = vmatprep.subr.mxu0 0.0
        %3371 = vmatpush1.msra.mxu0 %v3309
        %3372 = vmatprep.subr.mxu0 0.0
        %3373 = vmatpush1.msra.mxu0 %v3310
        %3374 = vmatprep.subr.mxu0 0.0
        %3375 = vmatpush1.msra.mxu0 %v3311
        %3376 = vmatprep.mubr.f32.mxu0 %v3233
        %3377 = vmatmul.mubr.f32.gmra.mrb[0].mxu0 %v3232
        %v3378 = vpop.f32.mrb[0].mxu0
        %v3379 = vadd.f32 0.0, %v3378
        %v3380 = vpop.f32.mrb[0].mxu0
        %3381 = vmatprep.mubr.f32.mxu0 %v3235
        %3382 = vmatmul.mubr.f32.gmra.mrb[0].mxu0 %v3234
        %v3383 = vpop.f32.mrb[0].mxu0
        %v3384 = vadd.f32 0.0, %v3383
        %v3385 = vpop.f32.mrb[0].mxu0
        %3386 = vmatprep.mubr.f32.mxu0 %v3237
        %3387 = vmatmul.mubr.f32.gmra.mrb[0].mxu0 %v3236
        %v3388 = vpop.f32.mrb[0].mxu0
        %v3389 = vadd.f32 0.0, %v3388
        %v3390 = vpop.f32.mrb[0].mxu0
        %3391 = vmatprep.mubr.f32.mxu0 %v3239
        %3392 = vmatmul.mubr.f32.gmra.mrb[0].mxu0 %v3238
        %v3393 = vpop.f32.mrb[0].mxu0
        %v3394 = vadd.f32 0.0, %v3393
        %v3395 = vpop.f32.mrb[0].mxu0
        %3396 = vmatprep.mubr.f32.mxu0 %v3241
        %3397 = vmatmul.mubr.f32.gmra.mrb[0].mxu0 %v3240
        %v3398 = vpop.f32.mrb[0].mxu0
        %v3399 = vadd.f32 0.0, %v3398
        %v3400 = vpop.f32.mrb[0].mxu0
        %3401 = vmatprep.mubr.f32.mxu0 %v3243
        %3402 = vmatmul.mubr.f32.gmra.mrb[0].mxu0 %v3242
        %v3403 = vpop.f32.mrb[0].mxu0
        %v3404 = vadd.f32 0.0, %v3403
        %v3405 = vpop.f32.mrb[0].mxu0
        %3406 = vmatprep.mubr.f32.mxu0 %v3245
        %3407 = vmatmul.mubr.f32.gmra.mrb[0].mxu0 %v3244
        %v3408 = vpop.f32.mrb[0].mxu0
        %v3409 = vadd.f32 0.0, %v3408
        %v3410 = vpop.f32.mrb[0].mxu0
        %3411 = vmatprep.mubr.f32.mxu0 %v3247
        %3412 = vmatmul.mubr.f32.gmra.mrb[0].mxu0 %v3246
        %v3413 = vpop.f32.mrb[0].mxu0
        %v3414 = vadd.f32 0.0, %v3413
        %v3415 = vpop.f32.mrb[0].mxu0
        %3416 = vdwg.mxu0
        %v3417 = vmul.f32 %v3232, %v3232
        %v3418 = vmul.f32 %v3233, %v3233
        %v3419 = vmul.f32 %v3234, %v3234
        %v3420 = vmul.f32 %v3235, %v3235
        %v3421 = vmul.f32 %v3236, %v3236
        %v3422 = vmul.f32 %v3237, %v3237
        %v3423 = vmul.f32 %v3238, %v3238
        %v3424 = vmul.f32 %v3239, %v3239
        %v3425 = vmul.f32 %v3240, %v3240
        %v3426 = vmul.f32 %v3241, %v3241
        %v3427 = vmul.f32 %v3242, %v3242
        %v3428 = vmul.f32 %v3243, %v3243
        %v3429 = vmul.f32 %v3244, %v3244
        %v3430 = vmul.f32 %v3245, %v3245
        %v3431 = vmul.f32 %v3246, %v3246
        %v3432 = vmul.f32 %v3247, %v3247
        %v3433 = vld [vmem:[%s5] sm:$0xff]
        %v3434 = vld [vmem:[%s5 + $0x8] sm:$0xff]
        %v3435 = vld [vmem:[%s5 + $0x10] sm:$0xff]
        %v3436 = vld [vmem:[%s5 + $0x18] sm:$0xff]
        %v3437 = vld [vmem:[%s5 + $0x20] sm:$0xff]
        %v3438 = vld [vmem:[%s5 + $0x28] sm:$0xff]
        %v3439 = vld [vmem:[%s5 + $0x30] sm:$0xff]
        %v3440 = vld [vmem:[%s5 + $0x38] sm:$0xff]
        %v3441 = vld [vmem:[%s5 + $0x40] sm:$0xff]
        %v3442 = vld [vmem:[%s5 + $0x48] sm:$0xff]
        %v3443 = vld [vmem:[%s5 + $0x50] sm:$0xff]
        %v3444 = vld [vmem:[%s5 + $0x58] sm:$0xff]
        %v3445 = vld [vmem:[%s5 + $0x60] sm:$0xff]
        %v3446 = vld [vmem:[%s5 + $0x68] sm:$0xff]
        %v3447 = vld [vmem:[%s5 + $0x70] sm:$0xff]
        %v3448 = vld [vmem:[%s5 + $0x78] sm:$0xff]
        %v3449 = vld [vmem:[%s5 + $0x80] sm:$0xff]
        %v3450 = vld [vmem:[%s5 + $0x88] sm:$0xff]
        %v3451 = vld [vmem:[%s5 + $0x90] sm:$0xff]
        %v3452 = vld [vmem:[%s5 + $0x98] sm:$0xff]
        %v3453 = vld [vmem:[%s5 + $0xa0] sm:$0xff]
        %v3454 = vld [vmem:[%s5 + $0xa8] sm:$0xff]
        %v3455 = vld [vmem:[%s5 + $0xb0] sm:$0xff]
        %v3456 = vld [vmem:[%s5 + $0xb8] sm:$0xff]
        %v3457 = vld [vmem:[%s5 + $0xc0] sm:$0xff]
        %v3458 = vld [vmem:[%s5 + $0xc8] sm:$0xff]
        %v3459 = vld [vmem:[%s5 + $0xd0] sm:$0xff]
        %v3460 = vld [vmem:[%s5 + $0xd8] sm:$0xff]
        %v3461 = vld [vmem:[%s5 + $0xe0] sm:$0xff]
        %v3462 = vld [vmem:[%s5 + $0xe8] sm:$0xff]
        %v3463 = vld [vmem:[%s5 + $0xf0] sm:$0xff]
        %v3464 = vld [vmem:[%s5 + $0xf8] sm:$0xff]
        %3465 = vmatprep.subr.mxu0 0.0
        %3466 = vmatpush1.msra.mxu0 %v3433
        %3467 = vmatprep.subr.mxu0 0.0
        %3468 = vmatpush1.msra.mxu0 %v3434
        %3469 = vmatprep.subr.mxu0 0.0
        %3470 = vmatpush1.msra.mxu0 %v3435
        %3471 = vmatprep.subr.mxu0 0.0
        %3472 = vmatpush1.msra.mxu0 %v3436
        %3473 = vmatprep.subr.mxu0 0.0
        %3474 = vmatpush1.msra.mxu0 %v3437
        %3475 = vmatprep.subr.mxu0 0.0
        %3476 = vmatpush1.msra.mxu0 %v3438
        %3477 = vmatprep.subr.mxu0 0.0
        %3478 = vmatpush1.msra.mxu0 %v3439
        %3479 = vmatprep.subr.mxu0 0.0
        %3480 = vmatpush1.msra.mxu0 %v3440
        %3481 = vmatprep.subr.mxu0 0.0
        %3482 = vmatpush1.msra.mxu0 %v3441
        %3483 = vmatprep.subr.mxu0 0.0
        %3484 = vmatpush1.msra.mxu0 %v3442
        %3485 = vmatprep.subr.mxu0 0.0
        %3486 = vmatpush1.msra.mxu0 %v3443
        %3487 = vmatprep.subr.mxu0 0.0
        %3488 = vmatpush1.msra.mxu0 %v3444
        %3489 = vmatprep.subr.mxu0 0.0
        %3490 = vmatpush1.msra.mxu0 %v3445
        %3491 = vmatprep.subr.mxu0 0.0
        %3492 = vmatpush1.msra.mxu0 %v3446
        %3493 = vmatprep.subr.mxu0 0.0
        %3494 = vmatpush1.msra.mxu0 %v3447
        %3495 = vmatprep.subr.mxu0 0.0
        %3496 = vmatpush1.msra.mxu0 %v3448
        %3497 = vmatprep.subr.mxu0 0.0
        %3498 = vmatpush1.msra.mxu0 %v3449
        %3499 = vmatprep.subr.mxu0 0.0
        %3500 = vmatpush1.msra.mxu0 %v3450
        %3501 = vmatprep.subr.mxu0 0.0
        %3502 = vmatpush1.msra.mxu0 %v3451
        %3503 = vmatprep.subr.mxu0 0.0
        %3504 = vmatpush1.msra.mxu0 %v3452
        %3505 = vmatprep.subr.mxu0 0.0
        %3506 = vmatpush1.msra.mxu0 %v3453
        %3507 = vmatprep.subr.mxu0 0.0
        %3508 = vmatpush1.msra.mxu0 %v3454
        %3509 = vmatprep.subr.mxu0 0.0
        %3510 = vmatpush1.msra.mxu0 %v3455
        %3511 = vmatprep.subr.mxu0 0.0
        %3512 = vmatpush1.msra.mxu0 %v3456
        %3513 = vmatprep.subr.mxu0 0.0
        %3514 = vmatpush1.msra.mxu0 %v3457
        %3515 = vmatprep.subr.mxu0 0.0
        %3516 = vmatpush1.msra.mxu0 %v3458
        %3517 = vmatprep.subr.mxu0 0.0
        %3518 = vmatpush1.msra.mxu0 %v3459
        %3519 = vmatprep.subr.mxu0 0.0
        %3520 = vmatpush1.msra.mxu0 %v3460
        %3521 = vmatprep.subr.mxu0 0.0
        %3522 = vmatpush1.msra.mxu0 %v3461
        %3523 = vmatprep.subr.mxu0 0.0
        %3524 = vmatpush1.msra.mxu0 %v3462
        %3525 = vmatprep.subr.mxu0 0.0
        %3526 = vmatpush1.msra.mxu0 %v3463
        %3527 = vmatprep.subr.mxu0 0.0
        %3528 = vmatpush1.msra.mxu0 %v3464
        %3529 = vmatprep.mubr.f32.mxu0 %v3418
        %3530 = vmatmul.mubr.f32.gmra.mrb[0].mxu0 %v3417
        %v3531 = vpop.f32.mrb[0].mxu0
        %v3532 = vadd.f32 0.0, %v3531
        %v3533 = vpop.f32.mrb[0].mxu0
        %3534 = vmatprep.mubr.f32.mxu0 %v3420
        %3535 = vmatmul.mubr.f32.gmra.mrb[0].mxu0 %v3419
        %v3536 = vpop.f32.mrb[0].mxu0
        %v3537 = vadd.f32 0.0, %v3536
        %v3538 = vpop.f32.mrb[0].mxu0
        %3539 = vmatprep.mubr.f32.mxu0 %v3422
        %3540 = vmatmul.mubr.f32.gmra.mrb[0].mxu0 %v3421
        %v3541 = vpop.f32.mrb[0].mxu0
        %v3542 = vadd.f32 0.0, %v3541
        %v3543 = vpop.f32.mrb[0].mxu0
        %3544 = vmatprep.mubr.f32.mxu0 %v3424
        %3545 = vmatmul.mubr.f32.gmra.mrb[0].mxu0 %v3423
        %v3546 = vpop.f32.mrb[0].mxu0
        %v3547 = vadd.f32 0.0, %v3546
        %v3548 = vpop.f32.mrb[0].mxu0
        %3549 = vmatprep.mubr.f32.mxu0 %v3426
        %3550 = vmatmul.mubr.f32.gmra.mrb[0].mxu0 %v3425
        %v3551 = vpop.f32.mrb[0].mxu0
        %v3552 = vadd.f32 0.0, %v3551
        %v3553 = vpop.f32.mrb[0].mxu0
        %3554 = vmatprep.mubr.f32.mxu0 %v3428
        %3555 = vmatmul.mubr.f32.gmra.mrb[0].mxu0 %v3427
        %v3556 = vpop.f32.mrb[0].mxu0
        %v3557 = vadd.f32 0.0, %v3556
        %v3558 = vpop.f32.mrb[0].mxu0
        %3559 = vmatprep.mubr.f32.mxu0 %v3430
        %3560 = vmatmul.mubr.f32.gmra.mrb[0].mxu0 %v3429
        %v3561 = vpop.f32.mrb[0].mxu0
        %v3562 = vadd.f32 0.0, %v3561
        %v3563 = vpop.f32.mrb[0].mxu0
        %3564 = vmatprep.mubr.f32.mxu0 %v3432
        %3565 = vmatmul.mubr.f32.gmra.mrb[0].mxu0 %v3431
        %v3566 = vpop.f32.mrb[0].mxu0
        %v3567 = vadd.f32 0.0, %v3566
        %v3568 = vpop.f32.mrb[0].mxu0
        %3569 = vdwg.mxu0
        %v3570 = vmul.f32 %v3379, %v3379
        %v3571 = vmul.f32 %v3384, %v3384
        %v3572 = vmul.f32 %v3389, %v3389
        %v3573 = vmul.f32 %v3394, %v3394
        %v3574 = vmul.f32 %v3399, %v3399
        %v3575 = vmul.f32 %v3404, %v3404
        %v3576 = vmul.f32 %v3409, %v3409
        %v3577 = vmul.f32 %v3414, %v3414
        %v3578 = vsub.f32 %v3570, %v3532
        %v3579 = vsub.f32 %v3571, %v3537
        %v3580 = vsub.f32 %v3572, %v3542
        %v3581 = vsub.f32 %v3573, %v3547
        %v3582 = vsub.f32 %v3574, %v3552
        %v3583 = vsub.f32 %v3575, %v3557
        %v3584 = vsub.f32 %v3576, %v3562
        %v3585 = vsub.f32 %v3577, %v3567
        %v3586 = vmul.f32 %v3578, 0.5
        %v3587 = vmul.f32 %v3579, 0.5
        %v3588 = vmul.f32 %v3580, 0.5
        %v3589 = vmul.f32 %v3581, 0.5
        %v3590 = vmul.f32 %v3582, 0.5
        %v3591 = vmul.f32 %v3583, 0.5
        %v3592 = vmul.f32 %v3584, 0.5
        %v3593 = vmul.f32 %v3585, 0.5
        %v3594 = vld [vmem:[%s6] sm:$0xff]
        %v3595 = vld [vmem:[%s6 + $0x8] sm:$0xff]
        %v3596 = vld [vmem:[%s6 + $0x10] sm:$0xff]
        %v3597 = vld [vmem:[%s6 + $0x18] sm:$0xff]
        %v3598 = vld [vmem:[%s6 + $0x20] sm:$0xff]
        %v3599 = vld [vmem:[%s6 + $0x28] sm:$0xff]
        %v3600 = vld [vmem:[%s6 + $0x30] sm:$0xff]
        %v3601 = vld [vmem:[%s6 + $0x38] sm:$0xff]
        %v3602 = vld [vmem:[%s7] sm:$0x1]
        %v3604 = vlaneseq
        %v3605 = vshrl.u32 %v3604, 7
        %v3606 = vsub.s32 0, %v3605
        %v3607 = vrot.slane %v3602, %v3606
        %vm3609 = vcmask 523264
        %v3611 = vsel %vm3609, %v3586, 0
        %v3614 = vsel %vm3609, %v3587, 0
        %v3617 = vsel %vm3609, %v3588, 0
        %v3620 = vsel %vm3609, %v3589, 0
        %v3623 = vsel %vm3609, %v3590, 0
        %v3626 = vsel %vm3609, %v3591, 0
        %v3629 = vsel %vm3609, %v3592, 0
        %v3632 = vsel %vm3609, %v3593, 0
        %3634 = vmatprep.subr.mxu0 0.0
        %3635 = vmatpush1.msra.mxu0 %v3594
        %3636 = vmatprep.subr.mxu0 0.0
        %3637 = vmatpush1.msra.mxu0 %v3595
        %3638 = vmatprep.subr.mxu0 0.0
        %3639 = vmatpush1.msra.mxu0 %v3596
        %3640 = vmatprep.subr.mxu0 0.0
        %3641 = vmatpush1.msra.mxu0 %v3597
        %3642 = vmatprep.subr.mxu0 0.0
        %3643 = vmatpush1.msra.mxu0 %v3598
        %3644 = vmatprep.subr.mxu0 0.0
        %3645 = vmatpush1.msra.mxu0 %v3599
        %3646 = vmatprep.subr.mxu0 0.0
        %3647 = vmatpush1.msra.mxu0 %v3600
        %3648 = vmatprep.subr.mxu0 0.0
        %3649 = vmatpush1.msra.mxu0 %v3601
        %3650 = vmatprep.subr.mxu0 0.0
        %3651 = vmatpush1.msra.mxu0 0.0
        %3652 = vmatprep.subr.mxu0 0.0
        %3653 = vmatpush1.msra.mxu0 0.0
        %3654 = vmatprep.subr.mxu0 0.0
        %3655 = vmatpush1.msra.mxu0 0.0
        %3656 = vmatprep.subr.mxu0 0.0
        %3657 = vmatpush1.msra.mxu0 0.0
        %3658 = vmatprep.subr.mxu0 0.0
        %3659 = vmatpush1.msra.mxu0 0.0
        %3660 = vmatprep.subr.mxu0 0.0
        %3661 = vmatpush1.msra.mxu0 0.0
        %3662 = vmatprep.subr.mxu0 0.0
        %3663 = vmatpush1.msra.mxu0 0.0
        %3664 = vmatprep.subr.mxu0 0.0
        %3665 = vmatpush1.msra.mxu0 0.0
        %3666 = vmatprep.subr.mxu0 0.0
        %3667 = vmatpush1.msra.mxu0 0.0
        %3668 = vmatprep.subr.mxu0 0.0
        %3669 = vmatpush1.msra.mxu0 0.0
        %3670 = vmatprep.subr.mxu0 0.0
        %3671 = vmatpush1.msra.mxu0 0.0
        %3672 = vmatprep.subr.mxu0 0.0
        %3673 = vmatpush1.msra.mxu0 0.0
        %3674 = vmatprep.subr.mxu0 0.0
        %3675 = vmatpush1.msra.mxu0 0.0
        %3676 = vmatprep.subr.mxu0 0.0
        %3677 = vmatpush1.msra.mxu0 0.0
        %3678 = vmatprep.subr.mxu0 0.0
        %3679 = vmatpush1.msra.mxu0 0.0
        %3680 = vmatprep.subr.mxu0 0.0
        %3681 = vmatpush1.msra.mxu0 0.0
        %3682 = vmatprep.subr.mxu0 0.0
        %3683 = vmatpush1.msra.mxu0 0.0
        %3684 = vmatprep.subr.mxu0 0.0
        %3685 = vmatpush1.msra.mxu0 0.0
        %3686 = vmatprep.subr.mxu0 0.0
        %3687 = vmatpush1.msra.mxu0 0.0
        %3688 = vmatprep.subr.mxu0 0.0
        %3689 = vmatpush1.msra.mxu0 0.0
        %3690 = vmatprep.subr.mxu0 0.0
        %3691 = vmatpush1.msra.mxu0 0.0
        %3692 = vmatprep.subr.mxu0 0.0
        %3693 = vmatpush1.msra.mxu0 0.0
        %3694 = vmatprep.subr.mxu0 0.0
        %3695 = vmatpush1.msra.mxu0 0.0
        %3696 = vmatprep.subr.mxu0 0.0
        %3697 = vmatpush1.msra.mxu0 0.0
        %3698 = vmatprep.mubr.f32.mxu0 0.0
        %3699 = vmatmul.mubr.f32.gmra.mrb[0].mxu0 %v3611
        %v3700 = vpop.f32.mrb[0].mxu0
        %v3701 = vadd.f32 %v3607, %v3700
        %v3702 = vpop.f32.mrb[0].mxu0
        %3703 = vmatprep.mubr.f32.mxu0 0.0
        %3704 = vmatmul.mubr.f32.gmra.mrb[0].mxu0 %v3614
        %v3705 = vpop.f32.mrb[0].mxu0
        %v3706 = vadd.f32 %v3607, %v3705
        %v3707 = vpop.f32.mrb[0].mxu0
        %3708 = vmatprep.mubr.f32.mxu0 0.0
        %3709 = vmatmul.mubr.f32.gmra.mrb[0].mxu0 %v3617
        %v3710 = vpop.f32.mrb[0].mxu0
        %v3711 = vadd.f32 %v3607, %v3710
        %v3712 = vpop.f32.mrb[0].mxu0
        %3713 = vmatprep.mubr.f32.mxu0 0.0
        %3714 = vmatmul.mubr.f32.gmra.mrb[0].mxu0 %v3620
        %v3715 = vpop.f32.mrb[0].mxu0
        %v3716 = vadd.f32 %v3607, %v3715
        %v3717 = vpop.f32.mrb[0].mxu0
        %3718 = vmatprep.mubr.f32.mxu0 0.0
        %3719 = vmatmul.mubr.f32.gmra.mrb[0].mxu0 %v3623
        %v3720 = vpop.f32.mrb[0].mxu0
        %v3721 = vadd.f32 %v3607, %v3720
        %v3722 = vpop.f32.mrb[0].mxu0
        %3723 = vmatprep.mubr.f32.mxu0 0.0
        %3724 = vmatmul.mubr.f32.gmra.mrb[0].mxu0 %v3626
        %v3725 = vpop.f32.mrb[0].mxu0
        %v3726 = vadd.f32 %v3607, %v3725
        %v3727 = vpop.f32.mrb[0].mxu0
        %3728 = vmatprep.mubr.f32.mxu0 0.0
        %3729 = vmatmul.mubr.f32.gmra.mrb[0].mxu0 %v3629
        %v3730 = vpop.f32.mrb[0].mxu0
        %v3731 = vadd.f32 %v3607, %v3730
        %v3732 = vpop.f32.mrb[0].mxu0
        %3733 = vmatprep.mubr.f32.mxu0 0.0
        %3734 = vmatmul.mubr.f32.gmra.mrb[0].mxu0 %v3632
        %v3735 = vpop.f32.mrb[0].mxu0
        %v3736 = vadd.f32 %v3607, %v3735
        %v3737 = vpop.f32.mrb[0].mxu0
        %3738 = vdwg.mxu0
        %v3739 = vmax.f32 %v3701, 0.0
        %v3740 = vmax.f32 %v3706, 0.0
        %v3741 = vmax.f32 %v3711, 0.0
        %v3742 = vmax.f32 %v3716, 0.0
        %v3743 = vmax.f32 %v3721, 0.0
        %v3744 = vmax.f32 %v3726, 0.0
        %v3745 = vmax.f32 %v3731, 0.0
        %v3746 = vmax.f32 %v3736, 0.0
        %v3747 = vld [vmem:[%s8] sm:$0xff]
        %v3748 = vld [vmem:[%s8 + $0x8] sm:$0xff]
        %v3749 = vld [vmem:[%s8 + $0x10] sm:$0xff]
        %v3750 = vld [vmem:[%s8 + $0x18] sm:$0xff]
        %v3751 = vld [vmem:[%s8 + $0x20] sm:$0xff]
        %v3752 = vld [vmem:[%s8 + $0x28] sm:$0xff]
        %v3753 = vld [vmem:[%s8 + $0x30] sm:$0xff]
        %v3754 = vld [vmem:[%s8 + $0x38] sm:$0xff]
        %v3756 = vsel %vm3609, %v3739, 0
        %v3759 = vsel %vm3609, %v3740, 0
        %v3762 = vsel %vm3609, %v3741, 0
        %v3765 = vsel %vm3609, %v3742, 0
        %v3768 = vsel %vm3609, %v3743, 0
        %v3771 = vsel %vm3609, %v3744, 0
        %v3774 = vsel %vm3609, %v3745, 0
        %v3777 = vsel %vm3609, %v3746, 0
        %3779 = vmatprep.subr.mxu0 0.0
        %3780 = vmatpush1.msra.mxu0 %v3747
        %3781 = vmatprep.subr.mxu0 0.0
        %3782 = vmatpush1.msra.mxu0 %v3748
        %3783 = vmatprep.subr.mxu0 0.0
        %3784 = vmatpush1.msra.mxu0 %v3749
        %3785 = vmatprep.subr.mxu0 0.0
        %3786 = vmatpush1.msra.mxu0 %v3750
        %3787 = vmatprep.subr.mxu0 0.0
        %3788 = vmatpush1.msra.mxu0 %v3751
        %3789 = vmatprep.subr.mxu0 0.0
        %3790 = vmatpush1.msra.mxu0 %v3752
        %3791 = vmatprep.subr.mxu0 0.0
        %3792 = vmatpush1.msra.mxu0 %v3753
        %3793 = vmatprep.subr.mxu0 0.0
        %3794 = vmatpush1.msra.mxu0 %v3754
        %3795 = vmatprep.subr.mxu0 0.0
        %3796 = vmatpush1.msra.mxu0 0.0
        %3797 = vmatprep.subr.mxu0 0.0
        %3798 = vmatpush1.msra.mxu0 0.0
        %3799 = vmatprep.subr.mxu0 0.0
        %3800 = vmatpush1.msra.mxu0 0.0
        %3801 = vmatprep.subr.mxu0 0.0
        %3802 = vmatpush1.msra.mxu0 0.0
        %3803 = vmatprep.subr.mxu0 0.0
        %3804 = vmatpush1.msra.mxu0 0.0
        %3805 = vmatprep.subr.mxu0 0.0
        %3806 = vmatpush1.msra.mxu0 0.0
        %3807 = vmatprep.subr.mxu0 0.0
        %3808 = vmatpush1.msra.mxu0 0.0
        %3809 = vmatprep.subr.mxu0 0.0
        %3810 = vmatpush1.msra.mxu0 0.0
        %3811 = vmatprep.subr.mxu0 0.0
        %3812 = vmatpush1.msra.mxu0 0.0
        %3813 = vmatprep.subr.mxu0 0.0
        %3814 = vmatpush1.msra.mxu0 0.0
        %3815 = vmatprep.subr.mxu0 0.0
        %3816 = vmatpush1.msra.mxu0 0.0
        %3817 = vmatprep.subr.mxu0 0.0
        %3818 = vmatpush1.msra.mxu0 0.0
        %3819 = vmatprep.subr.mxu0 0.0
        %3820 = vmatpush1.msra.mxu0 0.0
        %3821 = vmatprep.subr.mxu0 0.0
        %3822 = vmatpush1.msra.mxu0 0.0
        %3823 = vmatprep.subr.mxu0 0.0
        %3824 = vmatpush1.msra.mxu0 0.0
        %3825 = vmatprep.subr.mxu0 0.0
        %3826 = vmatpush1.msra.mxu0 0.0
        %3827 = vmatprep.subr.mxu0 0.0
        %3828 = vmatpush1.msra.mxu0 0.0
        %3829 = vmatprep.subr.mxu0 0.0
        %3830 = vmatpush1.msra.mxu0 0.0
        %3831 = vmatprep.subr.mxu0 0.0
        %3832 = vmatpush1.msra.mxu0 0.0
        %3833 = vmatprep.subr.mxu0 0.0
        %3834 = vmatpush1.msra.mxu0 0.0
        %3835 = vmatprep.subr.mxu0 0.0
        %3836 = vmatpush1.msra.mxu0 0.0
        %3837 = vmatprep.subr.mxu0 0.0
        %3838 = vmatpush1.msra.mxu0 0.0
        %3839 = vmatprep.subr.mxu0 0.0
        %3840 = vmatpush1.msra.mxu0 0.0
        %3841 = vmatprep.subr.mxu0 0.0
        %3842 = vmatpush1.msra.mxu0 0.0
        %3843 = vmatprep.mubr.f32.mxu0 0.0
        %3844 = vmatmul.mubr.f32.gmra.mrb[0].mxu0 %v3756
        %v3845 = vpop.f32.mrb[0].mxu0
        %v3846 = vadd.f32 0.0, %v3845
        %v3847 = vpop.f32.mrb[0].mxu0
        %3848 = vmatprep.mubr.f32.mxu0 0.0
        %3849 = vmatmul.mubr.f32.gmra.mrb[0].mxu0 %v3759
        %v3850 = vpop.f32.mrb[0].mxu0
        %v3851 = vadd.f32 0.0, %v3850
        %v3852 = vpop.f32.mrb[0].mxu0
        %3853 = vmatprep.mubr.f32.mxu0 0.0
        %3854 = vmatmul.mubr.f32.gmra.mrb[0].mxu0 %v3762
        %v3855 = vpop.f32.mrb[0].mxu0
        %v3856 = vadd.f32 0.0, %v3855
        %v3857 = vpop.f32.mrb[0].mxu0
        %3858 = vmatprep.mubr.f32.mxu0 0.0
        %3859 = vmatmul.mubr.f32.gmra.mrb[0].mxu0 %v3765
        %v3860 = vpop.f32.mrb[0].mxu0
        %v3861 = vadd.f32 0.0, %v3860
        %v3862 = vpop.f32.mrb[0].mxu0
        %3863 = vmatprep.mubr.f32.mxu0 0.0
        %3864 = vmatmul.mubr.f32.gmra.mrb[0].mxu0 %v3768
        %v3865 = vpop.f32.mrb[0].mxu0
        %v3866 = vadd.f32 0.0, %v3865
        %v3867 = vpop.f32.mrb[0].mxu0
        %3868 = vmatprep.mubr.f32.mxu0 0.0
        %3869 = vmatmul.mubr.f32.gmra.mrb[0].mxu0 %v3771
        %v3870 = vpop.f32.mrb[0].mxu0
        %v3871 = vadd.f32 0.0, %v3870
        %v3872 = vpop.f32.mrb[0].mxu0
        %3873 = vmatprep.mubr.f32.mxu0 0.0
        %3874 = vmatmul.mubr.f32.gmra.mrb[0].mxu0 %v3774
        %v3875 = vpop.f32.mrb[0].mxu0
        %v3876 = vadd.f32 0.0, %v3875
        %v3877 = vpop.f32.mrb[0].mxu0
        %3878 = vmatprep.mubr.f32.mxu0 0.0
        %3879 = vmatmul.mubr.f32.gmra.mrb[0].mxu0 %v3777
        %v3880 = vpop.f32.mrb[0].mxu0
        %v3881 = vadd.f32 0.0, %v3880
        %v3882 = vpop.f32.mrb[0].mxu0
        %3883 = vdwg.mxu0
        %3884 = vmatprep.subr.mxu0 0.0
        %3885 = vmatpush1.msra.mxu0 %v3248
        %3886 = vmatprep.subr.mxu0 0.0
        %3887 = vmatpush1.msra.mxu0 %v3249
        %3888 = vmatprep.subr.mxu0 0.0
        %3889 = vmatpush1.msra.mxu0 %v3250
        %3890 = vmatprep.subr.mxu0 0.0
        %3891 = vmatpush1.msra.mxu0 %v3251
        %3892 = vmatprep.subr.mxu0 0.0
        %3893 = vmatpush1.msra.mxu0 %v3252
        %3894 = vmatprep.subr.mxu0 0.0
        %3895 = vmatpush1.msra.mxu0 %v3253
        %3896 = vmatprep.subr.mxu0 0.0
        %3897 = vmatpush1.msra.mxu0 %v3254
        %3898 = vmatprep.subr.mxu0 0.0
        %3899 = vmatpush1.msra.mxu0 %v3255
        %3900 = vmatprep.subr.mxu0 0.0
        %3901 = vmatpush1.msra.mxu0 %v3256
        %3902 = vmatprep.subr.mxu0 0.0
        %3903 = vmatpush1.msra.mxu0 %v3257
        %3904 = vmatprep.subr.mxu0 0.0
        %3905 = vmatpush1.msra.mxu0 %v3258
        %3906 = vmatprep.subr.mxu0 0.0
        %3907 = vmatpush1.msra.mxu0 %v3259
        %3908 = vmatprep.subr.mxu0 0.0
        %3909 = vmatpush1.msra.mxu0 %v3260
        %3910 = vmatprep.subr.mxu0 0.0
        %3911 = vmatpush1.msra.mxu0 %v3261
        %3912 = vmatprep.subr.mxu0 0.0
        %3913 = vmatpush1.msra.mxu0 %v3262
        %3914 = vmatprep.subr.mxu0 0.0
        %3915 = vmatpush1.msra.mxu0 %v3263
        %3916 = vmatprep.subr.mxu0 0.0
        %3917 = vmatpush1.msra.mxu0 %v3264
        %3918 = vmatprep.subr.mxu0 0.0
        %3919 = vmatpush1.msra.mxu0 %v3265
        %3920 = vmatprep.subr.mxu0 0.0
        %3921 = vmatpush1.msra.mxu0 %v3266
        %3922 = vmatprep.subr.mxu0 0.0
        %3923 = vmatpush1.msra.mxu0 %v3267
        %3924 = vmatprep.subr.mxu0 0.0
        %3925 = vmatpush1.msra.mxu0 %v3268
        %3926 = vmatprep.subr.mxu0 0.0
        %3927 = vmatpush1.msra.mxu0 %v3269
        %3928 = vmatprep.subr.mxu0 0.0
        %3929 = vmatpush1.msra.mxu0 %v3270
        %3930 = vmatprep.subr.mxu0 0.0
        %3931 = vmatpush1.msra.mxu0 %v3271
        %3932 = vmatprep.subr.mxu0 0.0
        %3933 = vmatpush1.msra.mxu0 %v3272
        %3934 = vmatprep.subr.mxu0 0.0
        %3935 = vmatpush1.msra.mxu0 %v3273
        %3936 = vmatprep.subr.mxu0 0.0
        %3937 = vmatpush1.msra.mxu0 %v3274
        %3938 = vmatprep.subr.mxu0 0.0
        %3939 = vmatpush1.msra.mxu0 %v3275
        %3940 = vmatprep.subr.mxu0 0.0
        %3941 = vmatpush1.msra.mxu0 %v3276
        %3942 = vmatprep.subr.mxu0 0.0
        %3943 = vmatpush1.msra.mxu0 %v3277
        %3944 = vmatprep.subr.mxu0 0.0
        %3945 = vmatpush1.msra.mxu0 %v3278
        %3946 = vmatprep.subr.mxu0 0.0
        %3947 = vmatpush1.msra.mxu0 %v3279
        %3948 = vmatprep.mubr.f32.mxu0 %v3233
        %3949 = vmatmul.mubr.f32.gmra.mrb[0].mxu0 %v3232
        %v3950 = vpop.f32.mrb[0].mxu0
        %v3951 = vadd.f32 %v3846, %v3950
        %v3952 = vpop.f32.mrb[0].mxu0
        %3953 = vmatprep.mubr.f32.mxu0 %v3235
        %3954 = vmatmul.mubr.f32.gmra.mrb[0].mxu0 %v3234
        %v3955 = vpop.f32.mrb[0].mxu0
        %v3956 = vadd.f32 %v3851, %v3955
        %v3957 = vpop.f32.mrb[0].mxu0
        %3958 = vmatprep.mubr.f32.mxu0 %v3237
        %3959 = vmatmul.mubr.f32.gmra.mrb[0].mxu0 %v3236
        %v3960 = vpop.f32.mrb[0].mxu0
        %v3961 = vadd.f32 %v3856, %v3960
        %v3962 = vpop.f32.mrb[0].mxu0
        %3963 = vmatprep.mubr.f32.mxu0 %v3239
        %3964 = vmatmul.mubr.f32.gmra.mrb[0].mxu0 %v3238
        %v3965 = vpop.f32.mrb[0].mxu0
        %v3966 = vadd.f32 %v3861, %v3965
        %v3967 = vpop.f32.mrb[0].mxu0
        %3968 = vmatprep.mubr.f32.mxu0 %v3241
        %3969 = vmatmul.mubr.f32.gmra.mrb[0].mxu0 %v3240
        %v3970 = vpop.f32.mrb[0].mxu0
        %v3971 = vadd.f32 %v3866, %v3970
        %v3972 = vpop.f32.mrb[0].mxu0
        %3973 = vmatprep.mubr.f32.mxu0 %v3243
        %3974 = vmatmul.mubr.f32.gmra.mrb[0].mxu0 %v3242
        %v3975 = vpop.f32.mrb[0].mxu0
        %v3976 = vadd.f32 %v3871, %v3975
        %v3977 = vpop.f32.mrb[0].mxu0
        %3978 = vmatprep.mubr.f32.mxu0 %v3245
        %3979 = vmatmul.mubr.f32.gmra.mrb[0].mxu0 %v3244
        %v3980 = vpop.f32.mrb[0].mxu0
        %v3981 = vadd.f32 %v3876, %v3980
        %v3982 = vpop.f32.mrb[0].mxu0
        %3983 = vmatprep.mubr.f32.mxu0 %v3247
        %3984 = vmatmul.mubr.f32.gmra.mrb[0].mxu0 %v3246
        %v3985 = vpop.f32.mrb[0].mxu0
        %v3986 = vadd.f32 %v3881, %v3985
        %v3987 = vpop.f32.mrb[0].mxu0
        %3988 = vdwg.mxu0
        %v3989 = vld [vmem:[%s9] sm:$0x1]
        %v3991 = vlaneseq
        %v3992 = vshrl.u32 %v3991, 7
        %v3993 = vsub.s32 0, %v3992
        %v3994 = vrot.slane %v3989, %v3993
        %v3996 = vadd.f32 %v3951, %v3994
        %v3997 = vadd.f32 %v3956, %v3994
        %v3998 = vadd.f32 %v3961, %v3994
        %v3999 = vadd.f32 %v3966, %v3994
        %v4000 = vadd.f32 %v3971, %v3994
        %v4001 = vadd.f32 %v3976, %v3994
        %v4002 = vadd.f32 %v3981, %v3994
        %v4003 = vadd.f32 %v3986, %v3994
        %4004 = vst [vmem:[%s384] sm:$0xff] %v3996
        %4005 = vst [vmem:[%s384 + $0x8] sm:$0xff] %v3997
        %4006 = vst [vmem:[%s384 + $0x10] sm:$0xff] %v3998
        %4007 = vst [vmem:[%s384 + $0x18] sm:$0xff] %v3999
        %4008 = vst [vmem:[%s384 + $0x20] sm:$0xff] %v4000
        %4009 = vst [vmem:[%s384 + $0x28] sm:$0xff] %v4001
        %4010 = vst [vmem:[%s384 + $0x30] sm:$0xff] %v4002
        %4011 = vst [vmem:[%s384 + $0x38] sm:$0xff] %v4003
        %s4012 = sand.u32 %s252, 1
        %s4013 = scalar_lea.sflag [#allocation4], %s4012
        %s4014 = sand.u32 %s252, 1
        %s4015 = smul.addr %s4014, 64
        %s4016 = scalar_lea.vmem [#allocation3], %s4015
        %s4017 = sand.u32 %s278, 1
        %s4018 = scalar_lea.sflag [#allocation6], %s4017
        %s4019 = sand.u32 %s278, 1
        %s4020 = smul.addr %s4019, 128
        %s4021 = scalar_lea.vmem [#allocation5], %s4020
        // Predicated region
        $region61: #{tpu_custom_call.1} parent=59 // pred_check
          %p4022 = pneg %p262
        $region62: #{tpu_custom_call.1} parent=59 // pred_check_branch
          %4024 = sbr.rel (%p4022) target = $region64
        $region63: #{tpu_custom_call.1} parent=59 // pred_region
          %s4025 = smul.u32 8, %s29
          %s4027 = ssub.s32 1024, 1024
          %4028 = vsyncadd %s4013, %s4027
          %s4029 = smul.addr %s4025, 128
          %s4030 = scalar_lea.hbm %s10, %s4029
          %s4031 = sshll.u32 %s4016, 4
          %s4032 = int_to_ptr.vmem [resolvable:$true] %s4031
          %4037 = dma.vmem_to_hbm [thread:$0]  %s4032, 1024, %s4030, %s4013, 128, 128, 8
        $region64: #{tpu_custom_call.1} parent=59 // pred_fallthru
          _
        // Predicated region
        $region65: #{tpu_custom_call.1} parent=59 // pred_check
          %p4038 = pneg %p288
        $region66: #{tpu_custom_call.1} parent=59 // pred_check_branch
          %4040 = sbr.rel (%p4038) target = $region68
        $region67: #{tpu_custom_call.1} parent=59 // pred_region
          %s4041 = smul.u32 8, %s29
          %s4043 = ssub.s32 2048, 2048
          %4044 = vsyncadd %s4018, %s4043
          %s4045 = smul.addr %s4041, 2
          %s4046 = smul.addr %s4045, 128
          %s4047 = scalar_lea.hbm %s11, %s4046
          %s4048 = sshll.u32 %s4021, 4
          %s4049 = int_to_ptr.vmem [resolvable:$true] %s4048
          %4054 = dma.vmem_to_hbm [thread:$0]  %s4049, 2048, %s4047, %s4018, 256, 256, 16
        $region68: #{tpu_custom_call.1} parent=59 // pred_fallthru
          _
      $region60: #{tpu_custom_call.1} parent=5 // pred_fallthru
        _
      %p4055 = scmp.le.s32.totalorder 2, %s24
      // Predicated region
      $region69: #{tpu_custom_call.1} parent=5 // pred_check
        %p4056 = pneg %p4055
      $region70: #{tpu_custom_call.1} parent=5 // pred_check_branch
        %4058 = sbr.rel (%p4056) target = $region72
      $region71: #{tpu_custom_call.1} parent=5 // pred_region
        %s4059 = ssub.s32 %s24, 2
        // Predicated region
        $region73: #{tpu_custom_call.1} parent=71 // pred_check
          %p4060 = pneg %p268
        $region74: #{tpu_custom_call.1} parent=71 // pred_check_branch
          %4062 = sbr.rel (%p4060) target = $region76
        $region75: #{tpu_custom_call.1} parent=71 // pred_region
          %s4063 = sand.u32 %s253, 1
          %s4064 = scalar_lea.sflag [#allocation4], %s4063
          %s4065 = sand.u32 %s253, 1
          %s4066 = smul.addr %s4065, 64
          %s4067 = scalar_lea.vmem [#allocation3], %s4066
          %4068 = dma.done %s4064, 1024
        $region76: #{tpu_custom_call.1} parent=71 // pred_fallthru
          _
        // Predicated region
        $region77: #{tpu_custom_call.1} parent=71 // pred_check
          %p4069 = pneg %p294
        $region78: #{tpu_custom_call.1} parent=71 // pred_check_branch
          %4071 = sbr.rel (%p4069) target = $region80
        $region79: #{tpu_custom_call.1} parent=71 // pred_region
          %s4072 = sand.u32 %s279, 1
          %s4073 = scalar_lea.sflag [#allocation6], %s4072
          %s4074 = sand.u32 %s279, 1
          %s4075 = smul.addr %s4074, 128
          %s4076 = scalar_lea.vmem [#allocation5], %s4075
          %4077 = dma.done %s4073, 2048
        $region80: #{tpu_custom_call.1} parent=71 // pred_fallthru
          _
      $region72: #{tpu_custom_call.1} parent=5 // pred_fallthru
        _
    $region6: #{tpu_custom_call.1} parent=1 // loop_footer
      %s28 = sadd.s32 1, %s24
    $region7: #{tpu_custom_call.1} parent=1 // loop_footer_branch
      %23 = sbr.rel target = $region3
    $region8: #{tpu_custom_call.1} parent=1 // loop_exit
      _
    %4078 = vsyncpa [#allocation4], 1
    %s4079 = scalar_lea.sflag [#allocation4], 1
    %4080 = vsyncpa %s4079, 1
    %4081 = vsyncpa [#allocation6], 1
    %s4082 = scalar_lea.sflag [#allocation6], 1
    %4083 = vsyncpa %s4082, 1

</llo_original>
